<compile_context>
chip_gen: v6e
topology: v6e:2x2x1
jax: 0.10.0
libtpu: 0.0.40
codegen_flags: <defaults>
</compile_context>

<pallas_src>
import jax
import jax.numpy as jnp
from jax.experimental import pallas as pl
from jax.experimental.pallas import tpu as pltpu

# ---------------- synthetic LM config ----------------
D   = 128          # hidden size
H   = 4            # attention heads
DH  = D // H       # head dim
F   = 256          # MLP hidden
L   = 2            # transformer layers
V   = 256          # vocab size
EPS = 1e-6

# ---------------- synthetic "tokenizer" outputs ----------------
# multimodal_prompt_wrap: '<Multimodal>' ... '</Multimodal>'
P_BEFORE_IDS     = jnp.array([1, 2], dtype=jnp.int32)
P_AFTER_IDS      = jnp.array([3, 4], dtype=jnp.int32)
# get_task_prompt(): task_specific_prompt token ids
TASK_PROMPT_IDS  = jnp.array([5, 6, 7, 8], dtype=jnp.int32)
# '<|im_start|>' bos token id
BOS_ID           = 9
# TODO(synk): real HF tokenizer / pretrained Qwen checkpoint have no Pallas
# equivalent; token ids and weights are synthetic and deterministic.


# =====================================================================
# Fused Pallas kernel: L transformer layers + final RMSNorm + tied LM
# head + shifted cross-entropy, one grid step per batch element.
# =====================================================================
def _fused_lm_kernel(x_ref, tgt_ref, ln1_ref, wqkv_ref, wo_ref, ln2_ref,
                     w13_ref, w2_ref, lnf_ref, embT_ref,
                     logits_ref, loss_ref):
    h = x_ref[0]                                        # (T, D) f32, resident in VMEM
    T = h.shape[0]

    # causal mask, built once per grid step and reused for all layers / heads
    row = jax.lax.broadcasted_iota(jnp.int32, (T, T), 0)
    col = jax.lax.broadcasted_iota(jnp.int32, (T, T), 1)
    causal = col <= row

    for l in range(L):                                  # static unroll over layers
        # --- attention block (pre-RMSNorm) ---
        var = jnp.mean(h * h, axis=-1, keepdims=True)
        xn = h * jax.lax.rsqrt(var + EPS) * ln1_ref[l]              # (T, D)
        # fused QKV projection; 1/sqrt(DH) already folded into the Q weight
        qkv = jnp.dot(xn, wqkv_ref[l], preferred_element_type=jnp.float32)  # (T, 3D)
        q = qkv[:, :D]
        k = qkv[:, D:2 * D]
        v = qkv[:, 2 * D:]
        wo = wo_ref[l]                                              # (D, D)

        attn = jnp.zeros((T, D), jnp.float32)
        for hh in range(H):                             # static unroll over heads
            sl = slice(hh * DH, (hh + 1) * DH)
            # scores via dot_general (no explicit kh.T materialization)
            s = jax.lax.dot_general(q[:, sl], k[:, sl],
                                    (((1,), (1,)), ((), ())),
                                    preferred_element_type=jnp.float32)      # (T, T)
            s = jnp.where(causal, s, -1e30)
            m = jnp.max(s, axis=-1, keepdims=True)
            p = jnp.exp(s - m)
            p = p * pl.reciprocal(jnp.sum(p, axis=-1, keepdims=True), approx=True)
            pv = jnp.dot(p, v[:, sl], preferred_element_type=jnp.float32)    # (T, DH)
            # fold this head's output projection in directly (no concat/relayout)
            attn = attn + jnp.dot(pv, wo[sl, :], preferred_element_type=jnp.float32)
        h = h + attn

        # --- SwiGLU MLP block (pre-RMSNorm) ---
        var2 = jnp.mean(h * h, axis=-1, keepdims=True)
        hn = h * jax.lax.rsqrt(var2 + EPS) * ln2_ref[l]
        gu = jnp.dot(hn, w13_ref[l], preferred_element_type=jnp.float32)     # (T, 2F)
        gate = gu[:, :F]
        up = gu[:, F:]
        act = gate * jax.nn.sigmoid(gate) * up          # SiLU(gate) * up
        h = h + jnp.dot(act, w2_ref[l], preferred_element_type=jnp.float32)

    # --- final RMSNorm + tied LM head ---
    var = jnp.mean(h * h, axis=-1, keepdims=True)
    xn = h * jax.lax.rsqrt(var + EPS) * lnf_ref[0]
    logits = jnp.dot(xn, embT_ref[...], preferred_element_type=jnp.float32)  # (T, V)
    logits_ref[0] = logits

    # --- shifted cross-entropy (ignore_index = -100), reduced in-kernel ---
    tgt = tgt_ref[0]                                     # (T, 1) int32, already shifted
    valid = (tgt >= 0).astype(jnp.float32)               # (T, 1) in {0, 1}
    m = jnp.max(logits, axis=-1, keepdims=True)
    lse = m + jnp.log(jnp.sum(jnp.exp(logits - m), axis=-1, keepdims=True))
    vcol = jax.lax.broadcasted_iota(jnp.int32, (T, V), 1)
    tgt_logit = jnp.sum(jnp.where(vcol == tgt, logits, 0.0),
                        axis=-1, keepdims=True)          # (T, 1); 0 at ignored rows
    per_tok = valid * lse - tgt_logit                    # per-token NLL (0 if ignored)
    loss_ref[0] = jnp.sum(per_tok, axis=0, keepdims=True)   # (1, 1) per-batch sum


def fused_lm(prep, opt_tokens, tgt3):
    """opt_tokens: (B, T, D) f32 ; tgt3: (B, T, 1) int32 (shifted, -100 = ignore)."""
    B, T, _ = opt_tokens.shape

    def const(arr):
        return pl.BlockSpec(arr.shape, lambda b, _n=arr.ndim: (0,) * _n)

    return pl.pallas_call(
        _fused_lm_kernel,
        out_shape=(jax.ShapeDtypeStruct((B, T, V), jnp.float32),
                   jax.ShapeDtypeStruct((B, 1, 1), jnp.float32)),
        grid=(B,),
        in_specs=[
            pl.BlockSpec((1, T, D), lambda b: (b, 0, 0)),   # hidden-state input
            pl.BlockSpec((1, T, 1), lambda b: (b, 0, 0)),   # shifted target ids
            const(prep["ln1"]),                             # (L, 1, D)
            const(prep["wqkv"]),                            # (L, D, 3D) (Q pre-scaled)
            const(prep["wo"]),                              # (L, D, D)
            const(prep["ln2"]),                             # (L, 1, D)
            const(prep["w13"]),                             # (L, D, 2F)
            const(prep["w2"]),                              # (L, F, D)
            const(prep["ln_f"]),                            # (1, 1, D)
            const(prep["emb_t"]),                           # (D, V) tied LM head
        ],
        out_specs=[pl.BlockSpec((1, T, V), lambda b: (b, 0, 0)),
                   pl.BlockSpec((1, 1, 1), lambda b: (b, 0, 0))],
        compiler_params=pltpu.CompilerParams(dimension_semantics=("parallel",)),
    )(opt_tokens, tgt3, prep["ln1"], prep["wqkv"], prep["wo"],
      prep["ln2"], prep["w13"], prep["w2"], prep["ln_f"], prep["emb_t"])


# =====================================================================
# Parameter init (deterministic, synthetic) + host-side fusion prep
# =====================================================================
def init_params(key):
    n_rand = 1 + 7 * L
    keys = jax.random.split(key, n_rand)
    params = {
        "embedding": jax.random.normal(keys[0], (V, D), jnp.float32) * 0.02,
        "ln_f": jnp.ones((1, D), jnp.float32),
        "layers": [],
    }
    ki = 1
    for _ in range(L):
        layer = {
            "ln1": jnp.ones((1, D), jnp.float32),
            "wq": jax.random.normal(keys[ki + 0], (D, D), jnp.float32) * 0.02,
            "wk": jax.random.normal(keys[ki + 1], (D, D), jnp.float32) * 0.02,
            "wv": jax.random.normal(keys[ki + 2], (D, D), jnp.float32) * 0.02,
            "wo": jax.random.normal(keys[ki + 3], (D, D), jnp.float32) * 0.02,
            "ln2": jnp.ones((1, D), jnp.float32),
            "w1": jax.random.normal(keys[ki + 4], (D, F), jnp.float32) * 0.02,
            "w3": jax.random.normal(keys[ki + 5], (D, F), jnp.float32) * 0.02,
            "w2": jax.random.normal(keys[ki + 6], (F, D), jnp.float32) * 0.02,
        }
        params["layers"].append(layer)
        ki += 7
    return params


def prepare_params(params):
    """One-time host-side weight fusion: QKV -> (D,3D) with attention scale
    folded into Q, gate/up -> (D,2F), layers stacked on a leading L axis."""
    scale = 1.0 / (DH ** 0.5)
    layers = params["layers"]
    return {
        "embedding": params["embedding"],
        "emb_t": params["embedding"].T,                                  # (D, V)
        "ln_f": params["ln_f"][None],                                    # (1, 1, D)
        "ln1": jnp.stack([lp["ln1"] for lp in layers]),                  # (L, 1, D)
        "ln2": jnp.stack([lp["ln2"] for lp in layers]),                  # (L, 1, D)
        "wqkv": jnp.stack([jnp.concatenate(
            [lp["wq"] * scale, lp["wk"], lp["wv"]], axis=1) for lp in layers]),  # (L, D, 3D)
        "wo": jnp.stack([lp["wo"] for lp in layers]),                    # (L, D, D)
        "w13": jnp.stack([jnp.concatenate(
            [lp["w1"], lp["w3"]], axis=1) for lp in layers]),            # (L, D, 2F)
        "w2": jnp.stack([lp["w2"] for lp in layers]),                    # (L, F, D)
    }


# =====================================================================
# Language_model.forward (train mode) in JAX + fused Pallas kernel
# =====================================================================
def language_model_forward(prep, fusion_embedding, label_ids):
    emb = prep["embedding"]
    B = fusion_embedding.shape[0]
    embed = lambda ids: jnp.take(emb, ids, axis=0)       # text_embedding()

    p_before = jnp.broadcast_to(P_BEFORE_IDS[None, :], (B, P_BEFORE_IDS.shape[0]))
    p_after  = jnp.broadcast_to(P_AFTER_IDS[None, :],  (B, P_AFTER_IDS.shape[0]))
    task     = jnp.broadcast_to(TASK_PROMPT_IDS[None, :], (B, TASK_PROMPT_IDS.shape[0]))
    bos      = jnp.full((B, 1), BOS_ID, jnp.int32)

    # multimodal_prompt_wrap: [p_before, fusion, p_after]
    wrapped = jnp.concatenate([embed(p_before), fusion_embedding, embed(p_after)], axis=1)
    # input_processing: append task prompt, prepend bos embedding
    opt_tokens = jnp.concatenate([wrapped, embed(task)], axis=1)
    opt_tokens = jnp.concatenate([embed(bos), opt_tokens], axis=1)
    prefix_len = opt_tokens.shape[1]
    # input_labels_construct (mode='train'): append label embeddings,
    # labels = [-100..., label_ids]
    opt_tokens = jnp.concatenate([opt_tokens, embed(label_ids)], axis=1)   # (B, T, D)
    labels = jnp.concatenate(
        [jnp.full((B, prefix_len), -100, jnp.int32), label_ids], axis=1)   # (B, T)

    # HF-style shifted targets: position t predicts labels[t+1]; -100 ignored
    shift = jnp.concatenate([labels[:, 1:], jnp.full((B, 1), -100, jnp.int32)], axis=1)
    tgt3 = shift[..., None].astype(jnp.int32)                              # (B, T, 1)

    # fused causal-LM backbone + LM head + per-batch summed CE (single kernel)
    logits, loss_sums = fused_lm(prep, opt_tokens, tgt3)

    n_valid = jnp.maximum(jnp.sum((shift != -100).astype(jnp.float32)), 1.0)
    loss = jnp.sum(loss_sums) / n_valid                  # mean CE over non-ignored tokens

    return {"loss": loss, "logits": logits}


if __name__ == "__main__":
    key = jax.random.PRNGKey(0)
    kp, kf = jax.random.split(key)
    params = init_params(kp)
    prep = prepare_params(params)                        # one-time weight fusion (host)

    # small deterministic example: batch=2, fusion seq=5, hidden=128
    B, S_FUSION = 2, 5
    fusion = jax.random.normal(kf, (B, S_FUSION, D), jnp.float32) * 0.02
    # synthetic "tokenized" regression labels (e.g. '+0.5' / '-1.3' -> fixed ids)
    label_ids = jnp.array([[10, 11], [12, 13]], dtype=jnp.int32)

    out = jax.jit(language_model_forward)(prep, fusion, label_ids)
    jax.block_until_ready(out)

    T_TOTAL = 1 + 2 + S_FUSION + 2 + 4 + 2               # bos+before+fusion+after+task+labels
    assert jnp.isfinite(out["loss"])
    assert out["logits"].shape == (B, T_TOTAL, V)
    print("KERNEL_OK")
</pallas_src>

<mosaic_0001>
module attributes {stable_mosaic.version = 11 : i64} {
  func.func @_fused_lm_kernel(%arg0: i32, %arg1: memref<1x16x128xf32, #tpu.memory_space<vmem>>, %arg2: memref<1x16x1xi32, #tpu.memory_space<vmem>>, %arg3: memref<2x1x128xf32, #tpu.memory_space<vmem>>, %arg4: memref<2x128x384xf32, #tpu.memory_space<vmem>>, %arg5: memref<2x128x128xf32, #tpu.memory_space<vmem>>, %arg6: memref<2x1x128xf32, #tpu.memory_space<vmem>>, %arg7: memref<2x128x512xf32, #tpu.memory_space<vmem>>, %arg8: memref<2x256x128xf32, #tpu.memory_space<vmem>>, %arg9: memref<1x1x128xf32, #tpu.memory_space<vmem>>, %arg10: memref<128x256xf32, #tpu.memory_space<vmem>>, %arg11: memref<1x16x256xf32, #tpu.memory_space<vmem>>, %arg12: memref<1x1x1xf32, #tpu.memory_space<vmem>>) attributes {dimension_semantics = [#tpu.dimension_semantics<parallel>], iteration_bounds = array<i64: 2>, scalar_prefetch = 0 : i64, scratch_operands = 0 : i64, tpu.core_type = #tpu.core_type<tc>, window_params = [{transform_indices = @transform_0, window_bounds = array<i64: 1, 16, 128>}, {transform_indices = @transform_1, window_bounds = array<i64: 1, 16, 1>}, {pipeline_mode = #tpu.pipeline_mode<synchronous>, transform_indices = @transform_2, window_bounds = array<i64: 2, 1, 128>}, {pipeline_mode = #tpu.pipeline_mode<synchronous>, transform_indices = @transform_3, window_bounds = array<i64: 2, 128, 384>}, {pipeline_mode = #tpu.pipeline_mode<synchronous>, transform_indices = @transform_4, window_bounds = array<i64: 2, 128, 128>}, {pipeline_mode = #tpu.pipeline_mode<synchronous>, transform_indices = @transform_5, window_bounds = array<i64: 2, 1, 128>}, {pipeline_mode = #tpu.pipeline_mode<synchronous>, transform_indices = @transform_6, window_bounds = array<i64: 2, 128, 512>}, {pipeline_mode = #tpu.pipeline_mode<synchronous>, transform_indices = @transform_7, window_bounds = array<i64: 2, 256, 128>}, {pipeline_mode = #tpu.pipeline_mode<synchronous>, transform_indices = @transform_8, window_bounds = array<i64: 1, 1, 128>}, {pipeline_mode = #tpu.pipeline_mode<synchronous>, transform_indices = @transform_9, window_bounds = array<i64: 128, 256>}, {transform_indices = @transform_10, window_bounds = array<i64: 1, 16, 256>}, {transform_indices = @transform_11, window_bounds = array<i64: 1, 1, 1>}]} {
    %c0 = arith.constant 0 : index
    %c0_0 = arith.constant 0 : index
    %c0_1 = arith.constant 0 : index
    %0 = vector.load %arg1[%c0, %c0_0, %c0_1] : memref<1x16x128xf32, #tpu.memory_space<vmem>>, vector<1x16x128xf32>
    %1 = vector.shape_cast %0 : vector<1x16x128xf32> to vector<16x128xf32>
    %2 = tpu.iota {dimensions = array<i32: 0>} : vector<16x16xi32>
    %3 = tpu.iota {dimensions = array<i32: 1>} : vector<16x16xi32>
    %4 = arith.cmpi sle, %3, %2 : vector<16x16xi32>
    %5 = arith.mulf %1, %1 : vector<16x128xf32>
    %cst = arith.constant dense<0.000000e+00> : vector<16xf32>
    %6 = vector.multi_reduction <add>, %5, %cst [1] : vector<16x128xf32> to vector<16xf32>
    %7 = vector.shape_cast %6 : vector<16xf32> to vector<16x1xf32>
    %cst_2 = arith.constant 1.280000e+02 : f32
    %8 = vector.broadcast %cst_2 : f32 to vector<16x1xf32>
    %9 = arith.divf %7, %8 : vector<16x1xf32>
    %cst_3 = arith.constant 9.99999997E-7 : f32
    %10 = vector.broadcast %cst_3 : f32 to vector<16x1xf32>
    %11 = arith.addf %9, %10 : vector<16x1xf32>
    %12 = math.rsqrt %11 : vector<16x1xf32>
    %13 = vector.broadcast %12 : vector<16x1xf32> to vector<16x128xf32>
    %14 = arith.mulf %1, %13 : vector<16x128xf32>
    %c0_4 = arith.constant 0 : index
    %c0_5 = arith.constant 0 : index
    %c0_6 = arith.constant 0 : index
    %15 = vector.load %arg3[%c0_4, %c0_5, %c0_6] : memref<2x1x128xf32, #tpu.memory_space<vmem>>, vector<1x1x128xf32>
    %16 = vector.shape_cast %15 : vector<1x1x128xf32> to vector<1x128xf32>
    %17 = vector.broadcast %16 : vector<1x128xf32> to vector<16x128xf32>
    %18 = arith.mulf %14, %17 : vector<16x128xf32>
    %c0_7 = arith.constant 0 : index
    %c0_8 = arith.constant 0 : index
    %c0_9 = arith.constant 0 : index
    %19 = vector.load %arg4[%c0_7, %c0_8, %c0_9] : memref<2x128x384xf32, #tpu.memory_space<vmem>>, vector<1x128x384xf32>
    %20 = vector.shape_cast %19 : vector<1x128x384xf32> to vector<128x384xf32>
    %cst_10 = arith.constant dense<0.000000e+00> : vector<16x384xf32>
    %21 = tpu.matmul %18, %20, %cst_10 {dimension_numbers = #tpu.dot_dimension_numbers<[1], [0], [0], [1], [0, 0, 1, 1], [], []>} : vector<16x128xf32>, vector<128x384xf32>, vector<16x384xf32> -> vector<16x384xf32>
    %22 = vector.extract_strided_slice %21 {offsets = [0, 0], sizes = [16, 128], strides = [1, 1]} : vector<16x384xf32> to vector<16x128xf32>
    %23 = vector.extract_strided_slice %21 {offsets = [0, 128], sizes = [16, 128], strides = [1, 1]} : vector<16x384xf32> to vector<16x128xf32>
    %24 = vector.extract_strided_slice %21 {offsets = [0, 256], sizes = [16, 128], strides = [1, 1]} : vector<16x384xf32> to vector<16x128xf32>
    %c0_11 = arith.constant 0 : index
    %c0_12 = arith.constant 0 : index
    %c0_13 = arith.constant 0 : index
    %25 = vector.load %arg5[%c0_11, %c0_12, %c0_13] : memref<2x128x128xf32, #tpu.memory_space<vmem>>, vector<1x128x128xf32>
    %26 = vector.shape_cast %25 : vector<1x128x128xf32> to vector<128x128xf32>
    %cst_14 = arith.constant 0.000000e+00 : f32
    %27 = vector.broadcast %cst_14 : f32 to vector<16x128xf32>
    %28 = vector.extract_strided_slice %22 {offsets = [0, 0], sizes = [16, 32], strides = [1, 1]} : vector<16x128xf32> to vector<16x32xf32>
    %29 = vector.extract_strided_slice %23 {offsets = [0, 0], sizes = [16, 32], strides = [1, 1]} : vector<16x128xf32> to vector<16x32xf32>
    %cst_15 = arith.constant dense<0.000000e+00> : vector<16x16xf32>
    %30 = tpu.matmul %28, %29, %cst_15 {dimension_numbers = #tpu.dot_dimension_numbers<[1], [1], [0], [0], [0, 0, 1, 0], [], []>} : vector<16x32xf32>, vector<16x32xf32>, vector<16x16xf32> -> vector<16x16xf32>
    %cst_16 = arith.constant -1.000000e+30 : f32
    %31 = vector.broadcast %cst_16 : f32 to vector<16x16xf32>
    %32 = arith.select %4, %30, %31 : vector<16x16xi1>, vector<16x16xf32>
    %cst_17 = arith.constant dense<0xFF800000> : vector<16xf32>
    %33 = vector.multi_reduction <maximumf>, %32, %cst_17 [1] : vector<16x16xf32> to vector<16xf32>
    %34 = vector.shape_cast %33 : vector<16xf32> to vector<16x1xf32>
    %35 = vector.broadcast %34 : vector<16x1xf32> to vector<16x16xf32>
    %36 = arith.subf %32, %35 : vector<16x16xf32>
    %37 = math.exp %36 : vector<16x16xf32>
    %cst_18 = arith.constant dense<0.000000e+00> : vector<16xf32>
    %38 = vector.multi_reduction <add>, %37, %cst_18 [1] : vector<16x16xf32> to vector<16xf32>
    %39 = vector.shape_cast %38 : vector<16xf32> to vector<16x1xf32>
    %40 = tpu.reciprocal %39 {approx = true} : vector<16x1xf32> -> vector<16x1xf32>
    %41 = vector.broadcast %40 : vector<16x1xf32> to vector<16x16xf32>
    %42 = arith.mulf %37, %41 : vector<16x16xf32>
    %43 = vector.extract_strided_slice %24 {offsets = [0, 0], sizes = [16, 32], strides = [1, 1]} : vector<16x128xf32> to vector<16x32xf32>
    %cst_19 = arith.constant dense<0.000000e+00> : vector<16x32xf32>
    %44 = tpu.matmul %42, %43, %cst_19 {dimension_numbers = #tpu.dot_dimension_numbers<[1], [0], [0], [1], [0, 0, 1, 1], [], []>} : vector<16x16xf32>, vector<16x32xf32>, vector<16x32xf32> -> vector<16x32xf32>
    %45 = vector.extract_strided_slice %26 {offsets = [0, 0], sizes = [32, 128], strides = [1, 1]} : vector<128x128xf32> to vector<32x128xf32>
    %cst_20 = arith.constant dense<0.000000e+00> : vector<16x128xf32>
    %46 = tpu.matmul %44, %45, %cst_20 {dimension_numbers = #tpu.dot_dimension_numbers<[1], [0], [0], [1], [0, 0, 1, 1], [], []>} : vector<16x32xf32>, vector<32x128xf32>, vector<16x128xf32> -> vector<16x128xf32>
    %47 = arith.addf %27, %46 : vector<16x128xf32>
    %48 = vector.extract_strided_slice %22 {offsets = [0, 32], sizes = [16, 32], strides = [1, 1]} : vector<16x128xf32> to vector<16x32xf32>
    %49 = vector.extract_strided_slice %23 {offsets = [0, 32], sizes = [16, 32], strides = [1, 1]} : vector<16x128xf32> to vector<16x32xf32>
    %cst_21 = arith.constant dense<0.000000e+00> : vector<16x16xf32>
    %50 = tpu.matmul %48, %49, %cst_21 {dimension_numbers = #tpu.dot_dimension_numbers<[1], [1], [0], [0], [0, 0, 1, 0], [], []>} : vector<16x32xf32>, vector<16x32xf32>, vector<16x16xf32> -> vector<16x16xf32>
    %cst_22 = arith.constant -1.000000e+30 : f32
    %51 = vector.broadcast %cst_22 : f32 to vector<16x16xf32>
    %52 = arith.select %4, %50, %51 : vector<16x16xi1>, vector<16x16xf32>
    %cst_23 = arith.constant dense<0xFF800000> : vector<16xf32>
    %53 = vector.multi_reduction <maximumf>, %52, %cst_23 [1] : vector<16x16xf32> to vector<16xf32>
    %54 = vector.shape_cast %53 : vector<16xf32> to vector<16x1xf32>
    %55 = vector.broadcast %54 : vector<16x1xf32> to vector<16x16xf32>
    %56 = arith.subf %52, %55 : vector<16x16xf32>
    %57 = math.exp %56 : vector<16x16xf32>
    %cst_24 = arith.constant dense<0.000000e+00> : vector<16xf32>
    %58 = vector.multi_reduction <add>, %57, %cst_24 [1] : vector<16x16xf32> to vector<16xf32>
    %59 = vector.shape_cast %58 : vector<16xf32> to vector<16x1xf32>
    %60 = tpu.reciprocal %59 {approx = true} : vector<16x1xf32> -> vector<16x1xf32>
    %61 = vector.broadcast %60 : vector<16x1xf32> to vector<16x16xf32>
    %62 = arith.mulf %57, %61 : vector<16x16xf32>
    %63 = vector.extract_strided_slice %24 {offsets = [0, 32], sizes = [16, 32], strides = [1, 1]} : vector<16x128xf32> to vector<16x32xf32>
    %cst_25 = arith.constant dense<0.000000e+00> : vector<16x32xf32>
    %64 = tpu.matmul %62, %63, %cst_25 {dimension_numbers = #tpu.dot_dimension_numbers<[1], [0], [0], [1], [0, 0, 1, 1], [], []>} : vector<16x16xf32>, vector<16x32xf32>, vector<16x32xf32> -> vector<16x32xf32>
    %65 = vector.extract_strided_slice %26 {offsets = [32, 0], sizes = [32, 128], strides = [1, 1]} : vector<128x128xf32> to vector<32x128xf32>
    %cst_26 = arith.constant dense<0.000000e+00> : vector<16x128xf32>
    %66 = tpu.matmul %64, %65, %cst_26 {dimension_numbers = #tpu.dot_dimension_numbers<[1], [0], [0], [1], [0, 0, 1, 1], [], []>} : vector<16x32xf32>, vector<32x128xf32>, vector<16x128xf32> -> vector<16x128xf32>
    %67 = arith.addf %47, %66 : vector<16x128xf32>
    %68 = vector.extract_strided_slice %22 {offsets = [0, 64], sizes = [16, 32], strides = [1, 1]} : vector<16x128xf32> to vector<16x32xf32>
    %69 = vector.extract_strided_slice %23 {offsets = [0, 64], sizes = [16, 32], strides = [1, 1]} : vector<16x128xf32> to vector<16x32xf32>
    %cst_27 = arith.constant dense<0.000000e+00> : vector<16x16xf32>
    %70 = tpu.matmul %68, %69, %cst_27 {dimension_numbers = #tpu.dot_dimension_numbers<[1], [1], [0], [0], [0, 0, 1, 0], [], []>} : vector<16x32xf32>, vector<16x32xf32>, vector<16x16xf32> -> vector<16x16xf32>
    %cst_28 = arith.constant -1.000000e+30 : f32
    %71 = vector.broadcast %cst_28 : f32 to vector<16x16xf32>
    %72 = arith.select %4, %70, %71 : vector<16x16xi1>, vector<16x16xf32>
    %cst_29 = arith.constant dense<0xFF800000> : vector<16xf32>
    %73 = vector.multi_reduction <maximumf>, %72, %cst_29 [1] : vector<16x16xf32> to vector<16xf32>
    %74 = vector.shape_cast %73 : vector<16xf32> to vector<16x1xf32>
    %75 = vector.broadcast %74 : vector<16x1xf32> to vector<16x16xf32>
    %76 = arith.subf %72, %75 : vector<16x16xf32>
    %77 = math.exp %76 : vector<16x16xf32>
    %cst_30 = arith.constant dense<0.000000e+00> : vector<16xf32>
    %78 = vector.multi_reduction <add>, %77, %cst_30 [1] : vector<16x16xf32> to vector<16xf32>
    %79 = vector.shape_cast %78 : vector<16xf32> to vector<16x1xf32>
    %80 = tpu.reciprocal %79 {approx = true} : vector<16x1xf32> -> vector<16x1xf32>
    %81 = vector.broadcast %80 : vector<16x1xf32> to vector<16x16xf32>
    %82 = arith.mulf %77, %81 : vector<16x16xf32>
    %83 = vector.extract_strided_slice %24 {offsets = [0, 64], sizes = [16, 32], strides = [1, 1]} : vector<16x128xf32> to vector<16x32xf32>
    %cst_31 = arith.constant dense<0.000000e+00> : vector<16x32xf32>
    %84 = tpu.matmul %82, %83, %cst_31 {dimension_numbers = #tpu.dot_dimension_numbers<[1], [0], [0], [1], [0, 0, 1, 1], [], []>} : vector<16x16xf32>, vector<16x32xf32>, vector<16x32xf32> -> vector<16x32xf32>
    %85 = vector.extract_strided_slice %26 {offsets = [64, 0], sizes = [32, 128], strides = [1, 1]} : vector<128x128xf32> to vector<32x128xf32>
    %cst_32 = arith.constant dense<0.000000e+00> : vector<16x128xf32>
    %86 = tpu.matmul %84, %85, %cst_32 {dimension_numbers = #tpu.dot_dimension_numbers<[1], [0], [0], [1], [0, 0, 1, 1], [], []>} : vector<16x32xf32>, vector<32x128xf32>, vector<16x128xf32> -> vector<16x128xf32>
    %87 = arith.addf %67, %86 : vector<16x128xf32>
    %88 = vector.extract_strided_slice %22 {offsets = [0, 96], sizes = [16, 32], strides = [1, 1]} : vector<16x128xf32> to vector<16x32xf32>
    %89 = vector.extract_strided_slice %23 {offsets = [0, 96], sizes = [16, 32], strides = [1, 1]} : vector<16x128xf32> to vector<16x32xf32>
    %cst_33 = arith.constant dense<0.000000e+00> : vector<16x16xf32>
    %90 = tpu.matmul %88, %89, %cst_33 {dimension_numbers = #tpu.dot_dimension_numbers<[1], [1], [0], [0], [0, 0, 1, 0], [], []>} : vector<16x32xf32>, vector<16x32xf32>, vector<16x16xf32> -> vector<16x16xf32>
    %cst_34 = arith.constant -1.000000e+30 : f32
    %91 = vector.broadcast %cst_34 : f32 to vector<16x16xf32>
    %92 = arith.select %4, %90, %91 : vector<16x16xi1>, vector<16x16xf32>
    %cst_35 = arith.constant dense<0xFF800000> : vector<16xf32>
    %93 = vector.multi_reduction <maximumf>, %92, %cst_35 [1] : vector<16x16xf32> to vector<16xf32>
    %94 = vector.shape_cast %93 : vector<16xf32> to vector<16x1xf32>
    %95 = vector.broadcast %94 : vector<16x1xf32> to vector<16x16xf32>
    %96 = arith.subf %92, %95 : vector<16x16xf32>
    %97 = math.exp %96 : vector<16x16xf32>
    %cst_36 = arith.constant dense<0.000000e+00> : vector<16xf32>
    %98 = vector.multi_reduction <add>, %97, %cst_36 [1] : vector<16x16xf32> to vector<16xf32>
    %99 = vector.shape_cast %98 : vector<16xf32> to vector<16x1xf32>
    %100 = tpu.reciprocal %99 {approx = true} : vector<16x1xf32> -> vector<16x1xf32>
    %101 = vector.broadcast %100 : vector<16x1xf32> to vector<16x16xf32>
    %102 = arith.mulf %97, %101 : vector<16x16xf32>
    %103 = vector.extract_strided_slice %24 {offsets = [0, 96], sizes = [16, 32], strides = [1, 1]} : vector<16x128xf32> to vector<16x32xf32>
    %cst_37 = arith.constant dense<0.000000e+00> : vector<16x32xf32>
    %104 = tpu.matmul %102, %103, %cst_37 {dimension_numbers = #tpu.dot_dimension_numbers<[1], [0], [0], [1], [0, 0, 1, 1], [], []>} : vector<16x16xf32>, vector<16x32xf32>, vector<16x32xf32> -> vector<16x32xf32>
    %105 = vector.extract_strided_slice %26 {offsets = [96, 0], sizes = [32, 128], strides = [1, 1]} : vector<128x128xf32> to vector<32x128xf32>
    %cst_38 = arith.constant dense<0.000000e+00> : vector<16x128xf32>
    %106 = tpu.matmul %104, %105, %cst_38 {dimension_numbers = #tpu.dot_dimension_numbers<[1], [0], [0], [1], [0, 0, 1, 1], [], []>} : vector<16x32xf32>, vector<32x128xf32>, vector<16x128xf32> -> vector<16x128xf32>
    %107 = arith.addf %87, %106 : vector<16x128xf32>
    %108 = arith.addf %1, %107 : vector<16x128xf32>
    %109 = arith.mulf %108, %108 : vector<16x128xf32>
    %cst_39 = arith.constant dense<0.000000e+00> : vector<16xf32>
    %110 = vector.multi_reduction <add>, %109, %cst_39 [1] : vector<16x128xf32> to vector<16xf32>
    %111 = vector.shape_cast %110 : vector<16xf32> to vector<16x1xf32>
    %cst_40 = arith.constant 1.280000e+02 : f32
    %112 = vector.broadcast %cst_40 : f32 to vector<16x1xf32>
    %113 = arith.divf %111, %112 : vector<16x1xf32>
    %cst_41 = arith.constant 9.99999997E-7 : f32
    %114 = vector.broadcast %cst_41 : f32 to vector<16x1xf32>
    %115 = arith.addf %113, %114 : vector<16x1xf32>
    %116 = math.rsqrt %115 : vector<16x1xf32>
    %117 = vector.broadcast %116 : vector<16x1xf32> to vector<16x128xf32>
    %118 = arith.mulf %108, %117 : vector<16x128xf32>
    %c0_42 = arith.constant 0 : index
    %c0_43 = arith.constant 0 : index
    %c0_44 = arith.constant 0 : index
    %119 = vector.load %arg6[%c0_42, %c0_43, %c0_44] : memref<2x1x128xf32, #tpu.memory_space<vmem>>, vector<1x1x128xf32>
    %120 = vector.shape_cast %119 : vector<1x1x128xf32> to vector<1x128xf32>
    %121 = vector.broadcast %120 : vector<1x128xf32> to vector<16x128xf32>
    %122 = arith.mulf %118, %121 : vector<16x128xf32>
    %c0_45 = arith.constant 0 : index
    %c0_46 = arith.constant 0 : index
    %c0_47 = arith.constant 0 : index
    %123 = vector.load %arg7[%c0_45, %c0_46, %c0_47] : memref<2x128x512xf32, #tpu.memory_space<vmem>>, vector<1x128x512xf32>
    %124 = vector.shape_cast %123 : vector<1x128x512xf32> to vector<128x512xf32>
    %cst_48 = arith.constant dense<0.000000e+00> : vector<16x512xf32>
    %125 = tpu.matmul %122, %124, %cst_48 {dimension_numbers = #tpu.dot_dimension_numbers<[1], [0], [0], [1], [0, 0, 1, 1], [], []>} : vector<16x128xf32>, vector<128x512xf32>, vector<16x512xf32> -> vector<16x512xf32>
    %126 = vector.extract_strided_slice %125 {offsets = [0, 0], sizes = [16, 256], strides = [1, 1]} : vector<16x512xf32> to vector<16x256xf32>
    %127 = vector.extract_strided_slice %125 {offsets = [0, 256], sizes = [16, 256], strides = [1, 1]} : vector<16x512xf32> to vector<16x256xf32>
    %128 = arith.negf %126 : vector<16x256xf32>
    %129 = math.exp %128 : vector<16x256xf32>
    %cst_49 = arith.constant 1.000000e+00 : f32
    %130 = vector.broadcast %cst_49 : f32 to vector<16x256xf32>
    %131 = arith.addf %130, %129 : vector<16x256xf32>
    %132 = arith.divf %130, %131 : vector<16x256xf32>
    %133 = arith.mulf %126, %132 : vector<16x256xf32>
    %134 = arith.mulf %133, %127 : vector<16x256xf32>
    %c0_50 = arith.constant 0 : index
    %c0_51 = arith.constant 0 : index
    %c0_52 = arith.constant 0 : index
    %135 = vector.load %arg8[%c0_50, %c0_51, %c0_52] : memref<2x256x128xf32, #tpu.memory_space<vmem>>, vector<1x256x128xf32>
    %136 = vector.shape_cast %135 : vector<1x256x128xf32> to vector<256x128xf32>
    %cst_53 = arith.constant dense<0.000000e+00> : vector<16x128xf32>
    %137 = tpu.matmul %134, %136, %cst_53 {dimension_numbers = #tpu.dot_dimension_numbers<[1], [0], [0], [1], [0, 0, 1, 1], [], []>} : vector<16x256xf32>, vector<256x128xf32>, vector<16x128xf32> -> vector<16x128xf32>
    %138 = arith.addf %108, %137 : vector<16x128xf32>
    %139 = arith.mulf %138, %138 : vector<16x128xf32>
    %cst_54 = arith.constant dense<0.000000e+00> : vector<16xf32>
    %140 = vector.multi_reduction <add>, %139, %cst_54 [1] : vector<16x128xf32> to vector<16xf32>
    %141 = vector.shape_cast %140 : vector<16xf32> to vector<16x1xf32>
    %cst_55 = arith.constant 1.280000e+02 : f32
    %142 = vector.broadcast %cst_55 : f32 to vector<16x1xf32>
    %143 = arith.divf %141, %142 : vector<16x1xf32>
    %cst_56 = arith.constant 9.99999997E-7 : f32
    %144 = vector.broadcast %cst_56 : f32 to vector<16x1xf32>
    %145 = arith.addf %143, %144 : vector<16x1xf32>
    %146 = math.rsqrt %145 : vector<16x1xf32>
    %147 = vector.broadcast %146 : vector<16x1xf32> to vector<16x128xf32>
    %148 = arith.mulf %138, %147 : vector<16x128xf32>
    %c1 = arith.constant 1 : index
    %c0_57 = arith.constant 0 : index
    %c0_58 = arith.constant 0 : index
    %149 = vector.load %arg3[%c1, %c0_57, %c0_58] : memref<2x1x128xf32, #tpu.memory_space<vmem>>, vector<1x1x128xf32>
    %150 = vector.shape_cast %149 : vector<1x1x128xf32> to vector<1x128xf32>
    %151 = vector.broadcast %150 : vector<1x128xf32> to vector<16x128xf32>
    %152 = arith.mulf %148, %151 : vector<16x128xf32>
    %c1_59 = arith.constant 1 : index
    %c0_60 = arith.constant 0 : index
    %c0_61 = arith.constant 0 : index
    %153 = vector.load %arg4[%c1_59, %c0_60, %c0_61] : memref<2x128x384xf32, #tpu.memory_space<vmem>>, vector<1x128x384xf32>
    %154 = vector.shape_cast %153 : vector<1x128x384xf32> to vector<128x384xf32>
    %cst_62 = arith.constant dense<0.000000e+00> : vector<16x384xf32>
    %155 = tpu.matmul %152, %154, %cst_62 {dimension_numbers = #tpu.dot_dimension_numbers<[1], [0], [0], [1], [0, 0, 1, 1], [], []>} : vector<16x128xf32>, vector<128x384xf32>, vector<16x384xf32> -> vector<16x384xf32>
    %156 = vector.extract_strided_slice %155 {offsets = [0, 0], sizes = [16, 128], strides = [1, 1]} : vector<16x384xf32> to vector<16x128xf32>
    %157 = vector.extract_strided_slice %155 {offsets = [0, 128], sizes = [16, 128], strides = [1, 1]} : vector<16x384xf32> to vector<16x128xf32>
    %158 = vector.extract_strided_slice %155 {offsets = [0, 256], sizes = [16, 128], strides = [1, 1]} : vector<16x384xf32> to vector<16x128xf32>
    %c1_63 = arith.constant 1 : index
    %c0_64 = arith.constant 0 : index
    %c0_65 = arith.constant 0 : index
    %159 = vector.load %arg5[%c1_63, %c0_64, %c0_65] : memref<2x128x128xf32, #tpu.memory_space<vmem>>, vector<1x128x128xf32>
    %160 = vector.shape_cast %159 : vector<1x128x128xf32> to vector<128x128xf32>
    %cst_66 = arith.constant 0.000000e+00 : f32
    %161 = vector.broadcast %cst_66 : f32 to vector<16x128xf32>
    %162 = vector.extract_strided_slice %156 {offsets = [0, 0], sizes = [16, 32], strides = [1, 1]} : vector<16x128xf32> to vector<16x32xf32>
    %163 = vector.extract_strided_slice %157 {offsets = [0, 0], sizes = [16, 32], strides = [1, 1]} : vector<16x128xf32> to vector<16x32xf32>
    %cst_67 = arith.constant dense<0.000000e+00> : vector<16x16xf32>
    %164 = tpu.matmul %162, %163, %cst_67 {dimension_numbers = #tpu.dot_dimension_numbers<[1], [1], [0], [0], [0, 0, 1, 0], [], []>} : vector<16x32xf32>, vector<16x32xf32>, vector<16x16xf32> -> vector<16x16xf32>
    %cst_68 = arith.constant -1.000000e+30 : f32
    %165 = vector.broadcast %cst_68 : f32 to vector<16x16xf32>
    %166 = arith.select %4, %164, %165 : vector<16x16xi1>, vector<16x16xf32>
    %cst_69 = arith.constant dense<0xFF800000> : vector<16xf32>
    %167 = vector.multi_reduction <maximumf>, %166, %cst_69 [1] : vector<16x16xf32> to vector<16xf32>
    %168 = vector.shape_cast %167 : vector<16xf32> to vector<16x1xf32>
    %169 = vector.broadcast %168 : vector<16x1xf32> to vector<16x16xf32>
    %170 = arith.subf %166, %169 : vector<16x16xf32>
    %171 = math.exp %170 : vector<16x16xf32>
    %cst_70 = arith.constant dense<0.000000e+00> : vector<16xf32>
    %172 = vector.multi_reduction <add>, %171, %cst_70 [1] : vector<16x16xf32> to vector<16xf32>
    %173 = vector.shape_cast %172 : vector<16xf32> to vector<16x1xf32>
    %174 = tpu.reciprocal %173 {approx = true} : vector<16x1xf32> -> vector<16x1xf32>
    %175 = vector.broadcast %174 : vector<16x1xf32> to vector<16x16xf32>
    %176 = arith.mulf %171, %175 : vector<16x16xf32>
    %177 = vector.extract_strided_slice %158 {offsets = [0, 0], sizes = [16, 32], strides = [1, 1]} : vector<16x128xf32> to vector<16x32xf32>
    %cst_71 = arith.constant dense<0.000000e+00> : vector<16x32xf32>
    %178 = tpu.matmul %176, %177, %cst_71 {dimension_numbers = #tpu.dot_dimension_numbers<[1], [0], [0], [1], [0, 0, 1, 1], [], []>} : vector<16x16xf32>, vector<16x32xf32>, vector<16x32xf32> -> vector<16x32xf32>
    %179 = vector.extract_strided_slice %160 {offsets = [0, 0], sizes = [32, 128], strides = [1, 1]} : vector<128x128xf32> to vector<32x128xf32>
    %cst_72 = arith.constant dense<0.000000e+00> : vector<16x128xf32>
    %180 = tpu.matmul %178, %179, %cst_72 {dimension_numbers = #tpu.dot_dimension_numbers<[1], [0], [0], [1], [0, 0, 1, 1], [], []>} : vector<16x32xf32>, vector<32x128xf32>, vector<16x128xf32> -> vector<16x128xf32>
    %181 = arith.addf %161, %180 : vector<16x128xf32>
    %182 = vector.extract_strided_slice %156 {offsets = [0, 32], sizes = [16, 32], strides = [1, 1]} : vector<16x128xf32> to vector<16x32xf32>
    %183 = vector.extract_strided_slice %157 {offsets = [0, 32], sizes = [16, 32], strides = [1, 1]} : vector<16x128xf32> to vector<16x32xf32>
    %cst_73 = arith.constant dense<0.000000e+00> : vector<16x16xf32>
    %184 = tpu.matmul %182, %183, %cst_73 {dimension_numbers = #tpu.dot_dimension_numbers<[1], [1], [0], [0], [0, 0, 1, 0], [], []>} : vector<16x32xf32>, vector<16x32xf32>, vector<16x16xf32> -> vector<16x16xf32>
    %cst_74 = arith.constant -1.000000e+30 : f32
    %185 = vector.broadcast %cst_74 : f32 to vector<16x16xf32>
    %186 = arith.select %4, %184, %185 : vector<16x16xi1>, vector<16x16xf32>
    %cst_75 = arith.constant dense<0xFF800000> : vector<16xf32>
    %187 = vector.multi_reduction <maximumf>, %186, %cst_75 [1] : vector<16x16xf32> to vector<16xf32>
    %188 = vector.shape_cast %187 : vector<16xf32> to vector<16x1xf32>
    %189 = vector.broadcast %188 : vector<16x1xf32> to vector<16x16xf32>
    %190 = arith.subf %186, %189 : vector<16x16xf32>
    %191 = math.exp %190 : vector<16x16xf32>
    %cst_76 = arith.constant dense<0.000000e+00> : vector<16xf32>
    %192 = vector.multi_reduction <add>, %191, %cst_76 [1] : vector<16x16xf32> to vector<16xf32>
    %193 = vector.shape_cast %192 : vector<16xf32> to vector<16x1xf32>
    %194 = tpu.reciprocal %193 {approx = true} : vector<16x1xf32> -> vector<16x1xf32>
    %195 = vector.broadcast %194 : vector<16x1xf32> to vector<16x16xf32>
    %196 = arith.mulf %191, %195 : vector<16x16xf32>
    %197 = vector.extract_strided_slice %158 {offsets = [0, 32], sizes = [16, 32], strides = [1, 1]} : vector<16x128xf32> to vector<16x32xf32>
    %cst_77 = arith.constant dense<0.000000e+00> : vector<16x32xf32>
    %198 = tpu.matmul %196, %197, %cst_77 {dimension_numbers = #tpu.dot_dimension_numbers<[1], [0], [0], [1], [0, 0, 1, 1], [], []>} : vector<16x16xf32>, vector<16x32xf32>, vector<16x32xf32> -> vector<16x32xf32>
    %199 = vector.extract_strided_slice %160 {offsets = [32, 0], sizes = [32, 128], strides = [1, 1]} : vector<128x128xf32> to vector<32x128xf32>
    %cst_78 = arith.constant dense<0.000000e+00> : vector<16x128xf32>
    %200 = tpu.matmul %198, %199, %cst_78 {dimension_numbers = #tpu.dot_dimension_numbers<[1], [0], [0], [1], [0, 0, 1, 1], [], []>} : vector<16x32xf32>, vector<32x128xf32>, vector<16x128xf32> -> vector<16x128xf32>
    %201 = arith.addf %181, %200 : vector<16x128xf32>
    %202 = vector.extract_strided_slice %156 {offsets = [0, 64], sizes = [16, 32], strides = [1, 1]} : vector<16x128xf32> to vector<16x32xf32>
    %203 = vector.extract_strided_slice %157 {offsets = [0, 64], sizes = [16, 32], strides = [1, 1]} : vector<16x128xf32> to vector<16x32xf32>
    %cst_79 = arith.constant dense<0.000000e+00> : vector<16x16xf32>
    %204 = tpu.matmul %202, %203, %cst_79 {dimension_numbers = #tpu.dot_dimension_numbers<[1], [1], [0], [0], [0, 0, 1, 0], [], []>} : vector<16x32xf32>, vector<16x32xf32>, vector<16x16xf32> -> vector<16x16xf32>
    %cst_80 = arith.constant -1.000000e+30 : f32
    %205 = vector.broadcast %cst_80 : f32 to vector<16x16xf32>
    %206 = arith.select %4, %204, %205 : vector<16x16xi1>, vector<16x16xf32>
    %cst_81 = arith.constant dense<0xFF800000> : vector<16xf32>
    %207 = vector.multi_reduction <maximumf>, %206, %cst_81 [1] : vector<16x16xf32> to vector<16xf32>
    %208 = vector.shape_cast %207 : vector<16xf32> to vector<16x1xf32>
    %209 = vector.broadcast %208 : vector<16x1xf32> to vector<16x16xf32>
    %210 = arith.subf %206, %209 : vector<16x16xf32>
    %211 = math.exp %210 : vector<16x16xf32>
    %cst_82 = arith.constant dense<0.000000e+00> : vector<16xf32>
    %212 = vector.multi_reduction <add>, %211, %cst_82 [1] : vector<16x16xf32> to vector<16xf32>
    %213 = vector.shape_cast %212 : vector<16xf32> to vector<16x1xf32>
    %214 = tpu.reciprocal %213 {approx = true} : vector<16x1xf32> -> vector<16x1xf32>
    %215 = vector.broadcast %214 : vector<16x1xf32> to vector<16x16xf32>
    %216 = arith.mulf %211, %215 : vector<16x16xf32>
    %217 = vector.extract_strided_slice %158 {offsets = [0, 64], sizes = [16, 32], strides = [1, 1]} : vector<16x128xf32> to vector<16x32xf32>
    %cst_83 = arith.constant dense<0.000000e+00> : vector<16x32xf32>
    %218 = tpu.matmul %216, %217, %cst_83 {dimension_numbers = #tpu.dot_dimension_numbers<[1], [0], [0], [1], [0, 0, 1, 1], [], []>} : vector<16x16xf32>, vector<16x32xf32>, vector<16x32xf32> -> vector<16x32xf32>
    %219 = vector.extract_strided_slice %160 {offsets = [64, 0], sizes = [32, 128], strides = [1, 1]} : vector<128x128xf32> to vector<32x128xf32>
    %cst_84 = arith.constant dense<0.000000e+00> : vector<16x128xf32>
    %220 = tpu.matmul %218, %219, %cst_84 {dimension_numbers = #tpu.dot_dimension_numbers<[1], [0], [0], [1], [0, 0, 1, 1], [], []>} : vector<16x32xf32>, vector<32x128xf32>, vector<16x128xf32> -> vector<16x128xf32>
    %221 = arith.addf %201, %220 : vector<16x128xf32>
    %222 = vector.extract_strided_slice %156 {offsets = [0, 96], sizes = [16, 32], strides = [1, 1]} : vector<16x128xf32> to vector<16x32xf32>
    %223 = vector.extract_strided_slice %157 {offsets = [0, 96], sizes = [16, 32], strides = [1, 1]} : vector<16x128xf32> to vector<16x32xf32>
    %cst_85 = arith.constant dense<0.000000e+00> : vector<16x16xf32>
    %224 = tpu.matmul %222, %223, %cst_85 {dimension_numbers = #tpu.dot_dimension_numbers<[1], [1], [0], [0], [0, 0, 1, 0], [], []>} : vector<16x32xf32>, vector<16x32xf32>, vector<16x16xf32> -> vector<16x16xf32>
    %cst_86 = arith.constant -1.000000e+30 : f32
    %225 = vector.broadcast %cst_86 : f32 to vector<16x16xf32>
    %226 = arith.select %4, %224, %225 : vector<16x16xi1>, vector<16x16xf32>
    %cst_87 = arith.constant dense<0xFF800000> : vector<16xf32>
    %227 = vector.multi_reduction <maximumf>, %226, %cst_87 [1] : vector<16x16xf32> to vector<16xf32>
    %228 = vector.shape_cast %227 : vector<16xf32> to vector<16x1xf32>
    %229 = vector.broadcast %228 : vector<16x1xf32> to vector<16x16xf32>
    %230 = arith.subf %226, %229 : vector<16x16xf32>
    %231 = math.exp %230 : vector<16x16xf32>
    %cst_88 = arith.constant dense<0.000000e+00> : vector<16xf32>
    %232 = vector.multi_reduction <add>, %231, %cst_88 [1] : vector<16x16xf32> to vector<16xf32>
    %233 = vector.shape_cast %232 : vector<16xf32> to vector<16x1xf32>
    %234 = tpu.reciprocal %233 {approx = true} : vector<16x1xf32> -> vector<16x1xf32>
    %235 = vector.broadcast %234 : vector<16x1xf32> to vector<16x16xf32>
    %236 = arith.mulf %231, %235 : vector<16x16xf32>
    %237 = vector.extract_strided_slice %158 {offsets = [0, 96], sizes = [16, 32], strides = [1, 1]} : vector<16x128xf32> to vector<16x32xf32>
    %cst_89 = arith.constant dense<0.000000e+00> : vector<16x32xf32>
    %238 = tpu.matmul %236, %237, %cst_89 {dimension_numbers = #tpu.dot_dimension_numbers<[1], [0], [0], [1], [0, 0, 1, 1], [], []>} : vector<16x16xf32>, vector<16x32xf32>, vector<16x32xf32> -> vector<16x32xf32>
    %239 = vector.extract_strided_slice %160 {offsets = [96, 0], sizes = [32, 128], strides = [1, 1]} : vector<128x128xf32> to vector<32x128xf32>
    %cst_90 = arith.constant dense<0.000000e+00> : vector<16x128xf32>
    %240 = tpu.matmul %238, %239, %cst_90 {dimension_numbers = #tpu.dot_dimension_numbers<[1], [0], [0], [1], [0, 0, 1, 1], [], []>} : vector<16x32xf32>, vector<32x128xf32>, vector<16x128xf32> -> vector<16x128xf32>
    %241 = arith.addf %221, %240 : vector<16x128xf32>
    %242 = arith.addf %138, %241 : vector<16x128xf32>
    %243 = arith.mulf %242, %242 : vector<16x128xf32>
    %cst_91 = arith.constant dense<0.000000e+00> : vector<16xf32>
    %244 = vector.multi_reduction <add>, %243, %cst_91 [1] : vector<16x128xf32> to vector<16xf32>
    %245 = vector.shape_cast %244 : vector<16xf32> to vector<16x1xf32>
    %cst_92 = arith.constant 1.280000e+02 : f32
    %246 = vector.broadcast %cst_92 : f32 to vector<16x1xf32>
    %247 = arith.divf %245, %246 : vector<16x1xf32>
    %cst_93 = arith.constant 9.99999997E-7 : f32
    %248 = vector.broadcast %cst_93 : f32 to vector<16x1xf32>
    %249 = arith.addf %247, %248 : vector<16x1xf32>
    %250 = math.rsqrt %249 : vector<16x1xf32>
    %251 = vector.broadcast %250 : vector<16x1xf32> to vector<16x128xf32>
    %252 = arith.mulf %242, %251 : vector<16x128xf32>
    %c1_94 = arith.constant 1 : index
    %c0_95 = arith.constant 0 : index
    %c0_96 = arith.constant 0 : index
    %253 = vector.load %arg6[%c1_94, %c0_95, %c0_96] : memref<2x1x128xf32, #tpu.memory_space<vmem>>, vector<1x1x128xf32>
    %254 = vector.shape_cast %253 : vector<1x1x128xf32> to vector<1x128xf32>
    %255 = vector.broadcast %254 : vector<1x128xf32> to vector<16x128xf32>
    %256 = arith.mulf %252, %255 : vector<16x128xf32>
    %c1_97 = arith.constant 1 : index
    %c0_98 = arith.constant 0 : index
    %c0_99 = arith.constant 0 : index
    %257 = vector.load %arg7[%c1_97, %c0_98, %c0_99] : memref<2x128x512xf32, #tpu.memory_space<vmem>>, vector<1x128x512xf32>
    %258 = vector.shape_cast %257 : vector<1x128x512xf32> to vector<128x512xf32>
    %cst_100 = arith.constant dense<0.000000e+00> : vector<16x512xf32>
    %259 = tpu.matmul %256, %258, %cst_100 {dimension_numbers = #tpu.dot_dimension_numbers<[1], [0], [0], [1], [0, 0, 1, 1], [], []>} : vector<16x128xf32>, vector<128x512xf32>, vector<16x512xf32> -> vector<16x512xf32>
    %260 = vector.extract_strided_slice %259 {offsets = [0, 0], sizes = [16, 256], strides = [1, 1]} : vector<16x512xf32> to vector<16x256xf32>
    %261 = vector.extract_strided_slice %259 {offsets = [0, 256], sizes = [16, 256], strides = [1, 1]} : vector<16x512xf32> to vector<16x256xf32>
    %262 = arith.negf %260 : vector<16x256xf32>
    %263 = math.exp %262 : vector<16x256xf32>
    %cst_101 = arith.constant 1.000000e+00 : f32
    %264 = vector.broadcast %cst_101 : f32 to vector<16x256xf32>
    %265 = arith.addf %264, %263 : vector<16x256xf32>
    %266 = arith.divf %264, %265 : vector<16x256xf32>
    %267 = arith.mulf %260, %266 : vector<16x256xf32>
    %268 = arith.mulf %267, %261 : vector<16x256xf32>
    %c1_102 = arith.constant 1 : index
    %c0_103 = arith.constant 0 : index
    %c0_104 = arith.constant 0 : index
    %269 = vector.load %arg8[%c1_102, %c0_103, %c0_104] : memref<2x256x128xf32, #tpu.memory_space<vmem>>, vector<1x256x128xf32>
    %270 = vector.shape_cast %269 : vector<1x256x128xf32> to vector<256x128xf32>
    %cst_105 = arith.constant dense<0.000000e+00> : vector<16x128xf32>
    %271 = tpu.matmul %268, %270, %cst_105 {dimension_numbers = #tpu.dot_dimension_numbers<[1], [0], [0], [1], [0, 0, 1, 1], [], []>} : vector<16x256xf32>, vector<256x128xf32>, vector<16x128xf32> -> vector<16x128xf32>
    %272 = arith.addf %242, %271 : vector<16x128xf32>
    %273 = arith.mulf %272, %272 : vector<16x128xf32>
    %cst_106 = arith.constant dense<0.000000e+00> : vector<16xf32>
    %274 = vector.multi_reduction <add>, %273, %cst_106 [1] : vector<16x128xf32> to vector<16xf32>
    %275 = vector.shape_cast %274 : vector<16xf32> to vector<16x1xf32>
    %cst_107 = arith.constant 1.280000e+02 : f32
    %276 = vector.broadcast %cst_107 : f32 to vector<16x1xf32>
    %277 = arith.divf %275, %276 : vector<16x1xf32>
    %cst_108 = arith.constant 9.99999997E-7 : f32
    %278 = vector.broadcast %cst_108 : f32 to vector<16x1xf32>
    %279 = arith.addf %277, %278 : vector<16x1xf32>
    %280 = math.rsqrt %279 : vector<16x1xf32>
    %281 = vector.broadcast %280 : vector<16x1xf32> to vector<16x128xf32>
    %282 = arith.mulf %272, %281 : vector<16x128xf32>
    %c0_109 = arith.constant 0 : index
    %c0_110 = arith.constant 0 : index
    %c0_111 = arith.constant 0 : index
    %283 = vector.load %arg9[%c0_109, %c0_110, %c0_111] : memref<1x1x128xf32, #tpu.memory_space<vmem>>, vector<1x1x128xf32>
    %284 = vector.shape_cast %283 : vector<1x1x128xf32> to vector<1x128xf32>
    %285 = vector.broadcast %284 : vector<1x128xf32> to vector<16x128xf32>
    %286 = arith.mulf %282, %285 : vector<16x128xf32>
    %c0_112 = arith.constant 0 : index
    %c0_113 = arith.constant 0 : index
    %287 = vector.load %arg10[%c0_112, %c0_113] : memref<128x256xf32, #tpu.memory_space<vmem>>, vector<128x256xf32>
    %cst_114 = arith.constant dense<0.000000e+00> : vector<16x256xf32>
    %288 = tpu.matmul %286, %287, %cst_114 {dimension_numbers = #tpu.dot_dimension_numbers<[1], [0], [0], [1], [0, 0, 1, 1], [], []>} : vector<16x128xf32>, vector<128x256xf32>, vector<16x256xf32> -> vector<16x256xf32>
    %c0_115 = arith.constant 0 : index
    %c0_116 = arith.constant 0 : index
    %c0_117 = arith.constant 0 : index
    %289 = vector.load %arg11[%c0_115, %c0_116, %c0_117] : memref<1x16x256xf32, #tpu.memory_space<vmem>>, vector<1x16x256xf32>
    %290 = vector.shape_cast %289 : vector<1x16x256xf32> to vector<16x256xf32>
    %291 = vector.shape_cast %288 : vector<16x256xf32> to vector<1x16x256xf32>
    tpu.vector_store %arg11[%c0_115, %c0_116, %c0_117], %291 {strides = array<i32>} : memref<1x16x256xf32, #tpu.memory_space<vmem>>, vector<1x16x256xf32>,
    %c0_118 = arith.constant 0 : index
    %c0_119 = arith.constant 0 : index
    %c0_120 = arith.constant 0 : index
    %292 = vector.load %arg2[%c0_118, %c0_119, %c0_120] : memref<1x16x1xi32, #tpu.memory_space<vmem>>, vector<1x16x1xi32>
    %293 = vector.shape_cast %292 : vector<1x16x1xi32> to vector<16x1xi32>
    %c0_i32 = arith.constant 0 : i32
    %294 = vector.broadcast %c0_i32 : i32 to vector<16x1xi32>
    %295 = arith.cmpi sge, %293, %294 : vector<16x1xi32>
    %296 = arith.extui %295 : vector<16x1xi1> to vector<16x1xi32>
    %297 = arith.sitofp %296 : vector<16x1xi32> to vector<16x1xf32>
    %cst_121 = arith.constant dense<0xFF800000> : vector<16xf32>
    %298 = vector.multi_reduction <maximumf>, %288, %cst_121 [1] : vector<16x256xf32> to vector<16xf32>
    %299 = vector.shape_cast %298 : vector<16xf32> to vector<16x1xf32>
    %300 = vector.broadcast %299 : vector<16x1xf32> to vector<16x256xf32>
    %301 = arith.subf %288, %300 : vector<16x256xf32>
    %302 = math.exp %301 : vector<16x256xf32>
    %cst_122 = arith.constant dense<0.000000e+00> : vector<16xf32>
    %303 = vector.multi_reduction <add>, %302, %cst_122 [1] : vector<16x256xf32> to vector<16xf32>
    %304 = vector.shape_cast %303 : vector<16xf32> to vector<16x1xf32>
    %305 = math.log %304 : vector<16x1xf32>
    %306 = arith.addf %299, %305 : vector<16x1xf32>
    %307 = tpu.iota {dimensions = array<i32: 1>} : vector<16x256xi32>
    %308 = vector.broadcast %293 : vector<16x1xi32> to vector<16x256xi32>
    %309 = arith.cmpi eq, %307, %308 : vector<16x256xi32>
    %cst_123 = arith.constant 0.000000e+00 : f32
    %310 = vector.broadcast %cst_123 : f32 to vector<16x256xf32>
    %311 = arith.select %309, %288, %310 : vector<16x256xi1>, vector<16x256xf32>
    %cst_124 = arith.constant dense<0.000000e+00> : vector<16xf32>
    %312 = vector.multi_reduction <add>, %311, %cst_124 [1] : vector<16x256xf32> to vector<16xf32>
    %313 = vector.shape_cast %312 : vector<16xf32> to vector<16x1xf32>
    %314 = arith.mulf %297, %306 : vector<16x1xf32>
    %315 = arith.subf %314, %313 : vector<16x1xf32>
    %cst_125 = arith.constant dense<0.000000e+00> : vector<1xf32>
    %316 = vector.multi_reduction <add>, %315, %cst_125 [0] : vector<16x1xf32> to vector<1xf32>
    %317 = vector.shape_cast %316 : vector<1xf32> to vector<1x1xf32>
    %c0_126 = arith.constant 0 : index
    %c0_127 = arith.constant 0 : index
    %c0_128 = arith.constant 0 : index
    %318 = vector.load %arg12[%c0_126, %c0_127, %c0_128] : memref<1x1x1xf32, #tpu.memory_space<vmem>>, vector<1x1x1xf32>
    %319 = vector.shape_cast %318 : vector<1x1x1xf32> to vector<1x1xf32>
    %320 = vector.shape_cast %317 : vector<1x1xf32> to vector<1x1x1xf32>
    tpu.vector_store %arg12[%c0_126, %c0_127, %c0_128], %320 {strides = array<i32>} : memref<1x1x1xf32, #tpu.memory_space<vmem>>, vector<1x1x1xf32>,
    return
  }
  func.func @transform_0(%arg0: i32) -> (i32, i32, i32) {
    %c0_i32 = arith.constant 0 : i32
    %c0_i32_0 = arith.constant 0 : i32
    %c0_i32_1 = arith.constant 0 : i32
    return %arg0, %c0_i32, %c0_i32_0 : i32, i32, i32
  }
  func.func @transform_1(%arg0: i32) -> (i32, i32, i32) {
    %c0_i32 = arith.constant 0 : i32
    %c0_i32_0 = arith.constant 0 : i32
    %c0_i32_1 = arith.constant 0 : i32
    return %arg0, %c0_i32, %c0_i32_0 : i32, i32, i32
  }
  func.func @transform_2(%arg0: i32) -> (i32, i32, i32) {
    %c0_i32 = arith.constant 0 : i32
    %c0_i32_0 = arith.constant 0 : i32
    %c0_i32_1 = arith.constant 0 : i32
    %c0_i32_2 = arith.constant 0 : i32
    return %c0_i32, %c0_i32_0, %c0_i32_1 : i32, i32, i32
  }
  func.func @transform_3(%arg0: i32) -> (i32, i32, i32) {
    %c0_i32 = arith.constant 0 : i32
    %c0_i32_0 = arith.constant 0 : i32
    %c0_i32_1 = arith.constant 0 : i32
    %c0_i32_2 = arith.constant 0 : i32
    return %c0_i32, %c0_i32_0, %c0_i32_1 : i32, i32, i32
  }
  func.func @transform_4(%arg0: i32) -> (i32, i32, i32) {
    %c0_i32 = arith.constant 0 : i32
    %c0_i32_0 = arith.constant 0 : i32
    %c0_i32_1 = arith.constant 0 : i32
    %c0_i32_2 = arith.constant 0 : i32
    return %c0_i32, %c0_i32_0, %c0_i32_1 : i32, i32, i32
  }
  func.func @transform_5(%arg0: i32) -> (i32, i32, i32) {
    %c0_i32 = arith.constant 0 : i32
    %c0_i32_0 = arith.constant 0 : i32
    %c0_i32_1 = arith.constant 0 : i32
    %c0_i32_2 = arith.constant 0 : i32
    return %c0_i32, %c0_i32_0, %c0_i32_1 : i32, i32, i32
  }
  func.func @transform_6(%arg0: i32) -> (i32, i32, i32) {
    %c0_i32 = arith.constant 0 : i32
    %c0_i32_0 = arith.constant 0 : i32
    %c0_i32_1 = arith.constant 0 : i32
    %c0_i32_2 = arith.constant 0 : i32
    return %c0_i32, %c0_i32_0, %c0_i32_1 : i32, i32, i32
  }
  func.func @transform_7(%arg0: i32) -> (i32, i32, i32) {
    %c0_i32 = arith.constant 0 : i32
    %c0_i32_0 = arith.constant 0 : i32
    %c0_i32_1 = arith.constant 0 : i32
    %c0_i32_2 = arith.constant 0 : i32
    return %c0_i32, %c0_i32_0, %c0_i32_1 : i32, i32, i32
  }
  func.func @transform_8(%arg0: i32) -> (i32, i32, i32) {
    %c0_i32 = arith.constant 0 : i32
    %c0_i32_0 = arith.constant 0 : i32
    %c0_i32_1 = arith.constant 0 : i32
    %c0_i32_2 = arith.constant 0 : i32
    return %c0_i32, %c0_i32_0, %c0_i32_1 : i32, i32, i32
  }
  func.func @transform_9(%arg0: i32) -> (i32, i32) {
    %c0_i32 = arith.constant 0 : i32
    %c0_i32_0 = arith.constant 0 : i32
    %c0_i32_1 = arith.constant 0 : i32
    return %c0_i32, %c0_i32_0 : i32, i32
  }
  func.func @transform_10(%arg0: i32) -> (i32, i32, i32) {
    %c0_i32 = arith.constant 0 : i32
    %c0_i32_0 = arith.constant 0 : i32
    %c0_i32_1 = arith.constant 0 : i32
    return %arg0, %c0_i32, %c0_i32_0 : i32, i32, i32
  }
  func.func @transform_11(%arg0: i32) -> (i32, i32, i32) {
    %c0_i32 = arith.constant 0 : i32
    %c0_i32_0 = arith.constant 0 : i32
    %c0_i32_1 = arith.constant 0 : i32
    return %arg0, %c0_i32, %c0_i32_0 : i32, i32, i32
  }
}

</mosaic_0001>

<llo_original>
// kernel: language_model_forward.1
$region0: #{language_model_forward.1}
  #allocation0 [shape = 'u32[]', space=smem, size = 0x4, offset = 0x4, fixed_abs, tag = 'smem constant byte address 0x4 - core index']
  #allocation1 [shape = 'u32[144,128]{1,0:T(1,128)}', space=vmem, size = 0x12000, scoped, tag = 'internal scratch']
  %s0 = inlined_call_operand.vmem [shape: f32[2,16,128], index: 0, kind: input, shape index: {}]
  %s1 = inlined_call_operand.vmem [shape: s32[2,16,1], index: 1, kind: input, shape index: {}]
  %s2 = inlined_call_operand.vmem [shape: f32[2,1,128], index: 2, kind: input, shape index: {}]
  %s3 = inlined_call_operand.hbm [shape: f32[2,128,384], index: 3, kind: input, shape index: {}]
  %s4 = inlined_call_operand.vmem [shape: f32[2,128,128], index: 4, kind: input, shape index: {}]
  %s5 = inlined_call_operand.vmem [shape: f32[2,1,128], index: 5, kind: input, shape index: {}]
  %s6 = inlined_call_operand.hbm [shape: f32[2,128,512], index: 6, kind: input, shape index: {}]
  %s7 = inlined_call_operand.hbm [shape: f32[2,256,128], index: 7, kind: input, shape index: {}]
  %s8 = inlined_call_operand.vmem [shape: f32[1,1,128], index: 8, kind: input, shape index: {}]
  %s9 = inlined_call_operand.hbm [shape: f32[128,256], index: 9, kind: input, shape index: {}]
  %s10 = inlined_call_operand.hbm [shape: f32[2,16,256], index: 10, kind: output, shape index: {0}]
  %s11 = inlined_call_operand.vmem [shape: f32[2,1,1], index: 11, kind: output, shape index: {1}]
  %12 = xla_tuple %s10, %s11
  %s13 = sld [smem:[#allocation0]]
  $region97: #{language_model_forward.1} parent=0
    _
  %s15 = ssub.s32 1, %s13
  %s16 = scalar_select 0, %s15, %s13
  $region1: #{language_model_forward.1} parent=0
    #allocation2 [shape = 'u8[393216]{0}', space=vmem, size = 0x60000, scoped, tag = 'input window, operand 3, single buffered']
    #allocation3 [shape = 's32[2]{0}', space=sflag, size = 0x8, scoped, tag = 'scoped memory for language_model_forward.1']
    #allocation4 [shape = 's32[2]{0}', space=sflag, size = 0x8, scoped, tag = 'scoped memory for language_model_forward.1']
    #allocation5 [shape = 'u8[524288]{0}', space=vmem, size = 0x80000, scoped, tag = 'input window, operand 6, single buffered']
    #allocation6 [shape = 's32[1]{0}', space=sflag, size = 0x4, scoped, tag = 'scoped memory for language_model_forward.1']
    #allocation7 [shape = 'u8[262144]{0}', space=vmem, size = 0x40000, scoped, tag = 'input window, operand 7, single buffered']
    #allocation8 [shape = 'u8[131072]{0}', space=vmem, size = 0x20000, scoped, tag = 'input window, operand 9, single buffered']
    #allocation9 [shape = 's32[1]{0}', space=sflag, size = 0x4, scoped, tag = 'scoped memory for language_model_forward.1']
    #allocation10 [shape = 'u8[32768]{0}', space=vmem, size = 0x8000, scoped, tag = 'output window, operand 0']
    %17 = vsyncpa [#allocation3], 0
    %18 = vsyncpa [#allocation6], 0
    %19 = vsyncpa [#allocation9], 0
    %20 = vsyncpa [#allocation4], 0
    %s21 = scalar_lea.sflag [#allocation4], 1
    %22 = vsyncpa %s21, 0
    loop: start=0, step=1, limit=4
    $region2: #{language_model_forward.1} parent=1 // loop_pre_header
      _
    $region3: #{language_model_forward.1} parent=1 // loop_header
      %s24 = sphi 0, %s28
      %p25 = scmp.ge.s32.totalorder %s24, 4
      %s34 = sphi 0, %s36
      %s37 = sphi 0, %s34
      %s38 = sphi 0, %s37
      %s54 = sphi 0, %s38
      %s60 = sphi 0, %s62
      %s63 = sphi 0, %s60
      %s64 = sphi 0, %s63
      %s80 = sphi 0, %s64
      %s84 = sphi 0, %s84
      %s86 = sphi 0, %s84
      %s87 = sphi 0, %s86
      %s101 = sphi 0, %s87
      %s105 = sphi 0, %s105
      %s107 = sphi 0, %s105
      %s108 = sphi 0, %s107
      %s122 = sphi 0, %s108
      %s126 = sphi 0, %s126
      %s128 = sphi 0, %s126
      %s129 = sphi 0, %s128
      %s143 = sphi 0, %s129
      %s147 = sphi 0, %s147
      %s149 = sphi 0, %s147
      %s150 = sphi 0, %s149
      %s164 = sphi 0, %s150
      %s168 = sphi 0, %s168
      %s170 = sphi 0, %s168
      %s171 = sphi 0, %s170
      %s185 = sphi 0, %s171
      %s189 = sphi 0, %s189
      %s191 = sphi 0, %s189
      %s192 = sphi 0, %s191
      %s206 = sphi 0, %s192
      %s210 = sphi 0, %s210
      %s212 = sphi 0, %s210
      %s213 = sphi 0, %s212
      %s227 = sphi 0, %s213
      %s231 = sphi 0, %s231
      %s233 = sphi 0, %s231
      %s234 = sphi 0, %s233
      %s248 = sphi 0, %s234
      %s254 = sphi 0, %s256
      %s257 = sphi 0, %s254
      %s258 = sphi 0, %s257
      %s274 = sphi 0, %s258
      %s280 = sphi 0, %s282
      %s283 = sphi 0, %s280
      %s284 = sphi 0, %s283
      %s300 = sphi 0, %s284
    $region4: #{language_model_forward.1} parent=1 // loop_header_branch
      %27 = sbr.rel (%p25) target = $region8
    $region5: #{language_model_forward.1} parent=1 // loop_body
      %s29 = ssub.s32 %s24, 1
      %s30 = ssub.s32 %s24, 2
      %s31 = sadd.s32 %s24, 1
      %s32 = ssub.s32 %s24, %s31
      %p33 = scmp.eq.s32.totalorder %s32, 0
      %s35 = sadd.s32 %s34, 1
      %s36 = scalar_select %p33, %s34, %s35
      %p39 = pneg %p33
      %p40 = scmp.eq.s32.totalorder %s24, 1
      %p41 = por %p39, %p40
      %p42 = scmp.ne.s32.totalorder %s34, %s37
      %p43 = scmp.eq.s32.totalorder %s24, 0
      %p44 = por %p42, %p43
      %p45 = scmp.ne.s32.totalorder %s34, %s37
      %p46 = scmp.eq.s32.totalorder %s29, 1
      %p47 = por %p45, %p46
      %p48 = scmp.ne.s32.totalorder %s37, %s38
      %p49 = scmp.eq.s32.totalorder %s29, 0
      %p50 = por %p48, %p49
      %p51 = scmp.ne.s32.totalorder %s37, %s38
      %p52 = scmp.eq.s32.totalorder %s30, 1
      %p53 = por %p51, %p52
      %p55 = scmp.ne.s32.totalorder %s38, %s54
      %p56 = scmp.eq.s32.totalorder %s30, 0
      %p57 = por %p55, %p56
      %s58 = ssub.s32 %s24, %s31
      %p59 = scmp.eq.s32.totalorder %s58, 0
      %s61 = sadd.s32 %s60, 1
      %s62 = scalar_select %p59, %s60, %s61
      %p65 = pneg %p59
      %p66 = scmp.eq.s32.totalorder %s24, 1
      %p67 = por %p65, %p66
      %p68 = scmp.ne.s32.totalorder %s60, %s63
      %p69 = scmp.eq.s32.totalorder %s24, 0
      %p70 = por %p68, %p69
      %p71 = scmp.ne.s32.totalorder %s60, %s63
      %p72 = scmp.eq.s32.totalorder %s29, 1
      %p73 = por %p71, %p72
      %p74 = scmp.ne.s32.totalorder %s63, %s64
      %p75 = scmp.eq.s32.totalorder %s29, 0
      %p76 = por %p74, %p75
      %p77 = scmp.ne.s32.totalorder %s63, %s64
      %p78 = scmp.eq.s32.totalorder %s30, 1
      %p79 = por %p77, %p78
      %p81 = scmp.ne.s32.totalorder %s64, %s80
      %p82 = scmp.eq.s32.totalorder %s30, 0
      %p83 = por %p81, %p82
      %s85 = sadd.s32 %s84, 1
      %p88 = scmp.eq.s32.totalorder %s24, 1
      %p89 = scmp.ne.s32.totalorder %s84, %s86
      %p90 = scmp.eq.s32.totalorder %s24, 0
      %p91 = por %p89, %p90
      %p92 = scmp.ne.s32.totalorder %s84, %s86
      %p93 = scmp.eq.s32.totalorder %s29, 1
      %p94 = por %p92, %p93
      %p95 = scmp.ne.s32.totalorder %s86, %s87
      %p96 = scmp.eq.s32.totalorder %s29, 0
      %p97 = por %p95, %p96
      %p98 = scmp.ne.s32.totalorder %s86, %s87
      %p99 = scmp.eq.s32.totalorder %s30, 1
      %p100 = por %p98, %p99
      %p102 = scmp.ne.s32.totalorder %s87, %s101
      %p103 = scmp.eq.s32.totalorder %s30, 0
      %p104 = por %p102, %p103
      %s106 = sadd.s32 %s105, 1
      %p109 = scmp.eq.s32.totalorder %s24, 1
      %p110 = scmp.ne.s32.totalorder %s105, %s107
      %p111 = scmp.eq.s32.totalorder %s24, 0
      %p112 = por %p110, %p111
      %p113 = scmp.ne.s32.totalorder %s105, %s107
      %p114 = scmp.eq.s32.totalorder %s29, 1
      %p115 = por %p113, %p114
      %p116 = scmp.ne.s32.totalorder %s107, %s108
      %p117 = scmp.eq.s32.totalorder %s29, 0
      %p118 = por %p116, %p117
      %p119 = scmp.ne.s32.totalorder %s107, %s108
      %p120 = scmp.eq.s32.totalorder %s30, 1
      %p121 = por %p119, %p120
      %p123 = scmp.ne.s32.totalorder %s108, %s122
      %p124 = scmp.eq.s32.totalorder %s30, 0
      %p125 = por %p123, %p124
      %s127 = sadd.s32 %s126, 1
      %p130 = scmp.eq.s32.totalorder %s24, 1
      %p131 = scmp.ne.s32.totalorder %s126, %s128
      %p132 = scmp.eq.s32.totalorder %s24, 0
      %p133 = por %p131, %p132
      %p134 = scmp.ne.s32.totalorder %s126, %s128
      %p135 = scmp.eq.s32.totalorder %s29, 1
      %p136 = por %p134, %p135
      %p137 = scmp.ne.s32.totalorder %s128, %s129
      %p138 = scmp.eq.s32.totalorder %s29, 0
      %p139 = por %p137, %p138
      %p140 = scmp.ne.s32.totalorder %s128, %s129
      %p141 = scmp.eq.s32.totalorder %s30, 1
      %p142 = por %p140, %p141
      %p144 = scmp.ne.s32.totalorder %s129, %s143
      %p145 = scmp.eq.s32.totalorder %s30, 0
      %p146 = por %p144, %p145
      %s148 = sadd.s32 %s147, 1
      %p151 = scmp.eq.s32.totalorder %s24, 1
      %p152 = scmp.ne.s32.totalorder %s147, %s149
      %p153 = scmp.eq.s32.totalorder %s24, 0
      %p154 = por %p152, %p153
      %p155 = scmp.ne.s32.totalorder %s147, %s149
      %p156 = scmp.eq.s32.totalorder %s29, 1
      %p157 = por %p155, %p156
      %p158 = scmp.ne.s32.totalorder %s149, %s150
      %p159 = scmp.eq.s32.totalorder %s29, 0
      %p160 = por %p158, %p159
      %p161 = scmp.ne.s32.totalorder %s149, %s150
      %p162 = scmp.eq.s32.totalorder %s30, 1
      %p163 = por %p161, %p162
      %p165 = scmp.ne.s32.totalorder %s150, %s164
      %p166 = scmp.eq.s32.totalorder %s30, 0
      %p167 = por %p165, %p166
      %s169 = sadd.s32 %s168, 1
      %p172 = scmp.eq.s32.totalorder %s24, 1
      %p173 = scmp.ne.s32.totalorder %s168, %s170
      %p174 = scmp.eq.s32.totalorder %s24, 0
      %p175 = por %p173, %p174
      %p176 = scmp.ne.s32.totalorder %s168, %s170
      %p177 = scmp.eq.s32.totalorder %s29, 1
      %p178 = por %p176, %p177
      %p179 = scmp.ne.s32.totalorder %s170, %s171
      %p180 = scmp.eq.s32.totalorder %s29, 0
      %p181 = por %p179, %p180
      %p182 = scmp.ne.s32.totalorder %s170, %s171
      %p183 = scmp.eq.s32.totalorder %s30, 1
      %p184 = por %p182, %p183
      %p186 = scmp.ne.s32.totalorder %s171, %s185
      %p187 = scmp.eq.s32.totalorder %s30, 0
      %p188 = por %p186, %p187
      %s190 = sadd.s32 %s189, 1
      %p193 = scmp.eq.s32.totalorder %s24, 1
      %p194 = scmp.ne.s32.totalorder %s189, %s191
      %p195 = scmp.eq.s32.totalorder %s24, 0
      %p196 = por %p194, %p195
      %p197 = scmp.ne.s32.totalorder %s189, %s191
      %p198 = scmp.eq.s32.totalorder %s29, 1
      %p199 = por %p197, %p198
      %p200 = scmp.ne.s32.totalorder %s191, %s192
      %p201 = scmp.eq.s32.totalorder %s29, 0
      %p202 = por %p200, %p201
      %p203 = scmp.ne.s32.totalorder %s191, %s192
      %p204 = scmp.eq.s32.totalorder %s30, 1
      %p205 = por %p203, %p204
      %p207 = scmp.ne.s32.totalorder %s192, %s206
      %p208 = scmp.eq.s32.totalorder %s30, 0
      %p209 = por %p207, %p208
      %s211 = sadd.s32 %s210, 1
      %p214 = scmp.eq.s32.totalorder %s24, 1
      %p215 = scmp.ne.s32.totalorder %s210, %s212
      %p216 = scmp.eq.s32.totalorder %s24, 0
      %p217 = por %p215, %p216
      %p218 = scmp.ne.s32.totalorder %s210, %s212
      %p219 = scmp.eq.s32.totalorder %s29, 1
      %p220 = por %p218, %p219
      %p221 = scmp.ne.s32.totalorder %s212, %s213
      %p222 = scmp.eq.s32.totalorder %s29, 0
      %p223 = por %p221, %p222
      %p224 = scmp.ne.s32.totalorder %s212, %s213
      %p225 = scmp.eq.s32.totalorder %s30, 1
      %p226 = por %p224, %p225
      %p228 = scmp.ne.s32.totalorder %s213, %s227
      %p229 = scmp.eq.s32.totalorder %s30, 0
      %p230 = por %p228, %p229
      %s232 = sadd.s32 %s231, 1
      %p235 = scmp.eq.s32.totalorder %s24, 1
      %p236 = scmp.ne.s32.totalorder %s231, %s233
      %p237 = scmp.eq.s32.totalorder %s24, 0
      %p238 = por %p236, %p237
      %p239 = scmp.ne.s32.totalorder %s231, %s233
      %p240 = scmp.eq.s32.totalorder %s29, 1
      %p241 = por %p239, %p240
      %p242 = scmp.ne.s32.totalorder %s233, %s234
      %p243 = scmp.eq.s32.totalorder %s29, 0
      %p244 = por %p242, %p243
      %p245 = scmp.ne.s32.totalorder %s233, %s234
      %p246 = scmp.eq.s32.totalorder %s30, 1
      %p247 = por %p245, %p246
      %p249 = scmp.ne.s32.totalorder %s234, %s248
      %p250 = scmp.eq.s32.totalorder %s30, 0
      %p251 = por %p249, %p250
      %s252 = ssub.s32 %s24, %s31
      %p253 = scmp.eq.s32.totalorder %s252, 0
      %s255 = sadd.s32 %s254, 1
      %s256 = scalar_select %p253, %s254, %s255
      %p259 = pneg %p253
      %p260 = scmp.eq.s32.totalorder %s24, 1
      %p261 = por %p259, %p260
      %p262 = scmp.ne.s32.totalorder %s254, %s257
      %p263 = scmp.eq.s32.totalorder %s24, 0
      %p264 = por %p262, %p263
      %p265 = scmp.ne.s32.totalorder %s254, %s257
      %p266 = scmp.eq.s32.totalorder %s29, 1
      %p267 = por %p265, %p266
      %p268 = scmp.ne.s32.totalorder %s257, %s258
      %p269 = scmp.eq.s32.totalorder %s29, 0
      %p270 = por %p268, %p269
      %p271 = scmp.ne.s32.totalorder %s257, %s258
      %p272 = scmp.eq.s32.totalorder %s30, 1
      %p273 = por %p271, %p272
      %p275 = scmp.ne.s32.totalorder %s258, %s274
      %p276 = scmp.eq.s32.totalorder %s30, 0
      %p277 = por %p275, %p276
      %s278 = ssub.s32 %s24, %s31
      %p279 = scmp.eq.s32.totalorder %s278, 0
      %s281 = sadd.s32 %s280, 1
      %s282 = scalar_select %p279, %s280, %s281
      %p285 = pneg %p279
      %p286 = scmp.eq.s32.totalorder %s24, 1
      %p287 = por %p285, %p286
      %p288 = scmp.ne.s32.totalorder %s280, %s283
      %p289 = scmp.eq.s32.totalorder %s24, 0
      %p290 = por %p288, %p289
      %p291 = scmp.ne.s32.totalorder %s280, %s283
      %p292 = scmp.eq.s32.totalorder %s29, 1
      %p293 = por %p291, %p292
      %p294 = scmp.ne.s32.totalorder %s283, %s284
      %p295 = scmp.eq.s32.totalorder %s29, 0
      %p296 = por %p294, %p295
      %p297 = scmp.ne.s32.totalorder %s283, %s284
      %p298 = scmp.eq.s32.totalorder %s30, 1
      %p299 = por %p297, %p298
      %p301 = scmp.ne.s32.totalorder %s284, %s300
      %p302 = scmp.eq.s32.totalorder %s30, 0
      %p303 = por %p301, %p302
      %p304 = scmp.le.s32.totalorder 1, %s24
      %p305 = scmp.lt.s32.totalorder %s24, 3
      %p306 = pnand %p304, %p305
      %p307 = pneg %p306
      // Predicated region
      $region9: #{language_model_forward.1} parent=5 // pred_check
        _
      $region10: #{language_model_forward.1} parent=5 // pred_check_branch
        %309 = sbr.rel (%p306) target = $region12
      $region11: #{language_model_forward.1} parent=5 // pred_region
        %s310 = ssub.s32 %s24, 1
        // Predicated region
        $region13: #{language_model_forward.1} parent=11 // pred_check
          %p311 = pneg %p97
        $region14: #{language_model_forward.1} parent=11 // pred_check_branch
          %313 = sbr.rel (%p311) target = $region16
        $region15: #{language_model_forward.1} parent=11 // pred_region
          _
        $region16: #{language_model_forward.1} parent=11 // pred_fallthru
          _
        // Predicated region
        $region17: #{language_model_forward.1} parent=11 // pred_check
          %p314 = pneg %p118
        $region18: #{language_model_forward.1} parent=11 // pred_check_branch
          %316 = sbr.rel (%p314) target = $region20
        $region19: #{language_model_forward.1} parent=11 // pred_region
          %s318 = ssub.s32 12288, 12288
          %319 = vsyncadd [#allocation3], %s318
          %s320 = sshll.u32 [#allocation2], 4
          %s321 = int_to_ptr.vmem [resolvable:$true] %s320
          %326 = dma.hbm_to_vmem [thread:$0]  %s3, 12288, %s321, [#allocation3], 384, 384, 24
        $region20: #{language_model_forward.1} parent=11 // pred_fallthru
          _
        // Predicated region
        $region21: #{language_model_forward.1} parent=11 // pred_check
          %p327 = pneg %p139
        $region22: #{language_model_forward.1} parent=11 // pred_check_branch
          %329 = sbr.rel (%p327) target = $region24
        $region23: #{language_model_forward.1} parent=11 // pred_region
          _
        $region24: #{language_model_forward.1} parent=11 // pred_fallthru
          _
        // Predicated region
        $region25: #{language_model_forward.1} parent=11 // pred_check
          %p330 = pneg %p160
        $region26: #{language_model_forward.1} parent=11 // pred_check_branch
          %332 = sbr.rel (%p330) target = $region28
        $region27: #{language_model_forward.1} parent=11 // pred_region
          _
        $region28: #{language_model_forward.1} parent=11 // pred_fallthru
          _
        // Predicated region
        $region29: #{language_model_forward.1} parent=11 // pred_check
          %p333 = pneg %p181
        $region30: #{language_model_forward.1} parent=11 // pred_check_branch
          %335 = sbr.rel (%p333) target = $region32
        $region31: #{language_model_forward.1} parent=11 // pred_region
          %s337 = ssub.s32 16384, 16384
          %338 = vsyncadd [#allocation6], %s337
          %s339 = sshll.u32 [#allocation5], 4
          %s340 = int_to_ptr.vmem [resolvable:$true] %s339
          %345 = dma.hbm_to_vmem [thread:$0]  %s6, 16384, %s340, [#allocation6], 512, 512, 32
        $region32: #{language_model_forward.1} parent=11 // pred_fallthru
          _
        // Predicated region
        $region33: #{language_model_forward.1} parent=11 // pred_check
          %p346 = pneg %p202
        $region34: #{language_model_forward.1} parent=11 // pred_check_branch
          %348 = sbr.rel (%p346) target = $region36
        $region35: #{language_model_forward.1} parent=11 // pred_region
          %s350 = ssub.s32 8192, 8192
          %351 = vsyncadd [#allocation6], %s350
          %s352 = sshll.u32 [#allocation7], 4
          %s353 = int_to_ptr.vmem [resolvable:$true] %s352
          %358 = dma.hbm_to_vmem [thread:$0]  %s7, 8192, %s353, [#allocation6], 128, 128, 8
        $region36: #{language_model_forward.1} parent=11 // pred_fallthru
          _
        // Predicated region
        $region37: #{language_model_forward.1} parent=11 // pred_check
          %p359 = pneg %p223
        $region38: #{language_model_forward.1} parent=11 // pred_check_branch
          %361 = sbr.rel (%p359) target = $region40
        $region39: #{language_model_forward.1} parent=11 // pred_region
          _
        $region40: #{language_model_forward.1} parent=11 // pred_fallthru
          _
        // Predicated region
        $region41: #{language_model_forward.1} parent=11 // pred_check
          %p362 = pneg %p244
        $region42: #{language_model_forward.1} parent=11 // pred_check_branch
          %364 = sbr.rel (%p362) target = $region44
        $region43: #{language_model_forward.1} parent=11 // pred_region
          %s366 = ssub.s32 4096, 4096
          %367 = vsyncadd [#allocation9], %s366
          %s368 = sshll.u32 [#allocation8], 4
          %s369 = int_to_ptr.vmem [resolvable:$true] %s368
          %374 = dma.hbm_to_vmem [thread:$0]  %s9, 4096, %s369, [#allocation9], 256, 256, 16
        $region44: #{language_model_forward.1} parent=11 // pred_fallthru
          _
      $region12: #{language_model_forward.1} parent=5 // pred_fallthru
        _
      %p375 = scmp.lt.s32.totalorder %s24, 2
      // Predicated region
      $region45: #{language_model_forward.1} parent=5 // pred_check
        %p376 = pneg %p375
      $region46: #{language_model_forward.1} parent=5 // pred_check_branch
        %378 = sbr.rel (%p376) target = $region48
      $region47: #{language_model_forward.1} parent=5 // pred_region
        // Predicated region
        $region49: #{language_model_forward.1} parent=47 // pred_check
          %p379 = pneg %p44
        $region50: #{language_model_forward.1} parent=47 // pred_check_branch
          %381 = sbr.rel (%p379) target = $region52
        $region51: #{language_model_forward.1} parent=47 // pred_region
          %p382 = scmp.lt.s32.totalorder %s24, 1
          %s383 = scalar_select %p382, %s24, 1
          %s384 = smul.addr %s383, 2
          %s385 = smul.addr %s384, 8
          %s386 = scalar_lea.vmem %s0, %s385
        $region52: #{language_model_forward.1} parent=47 // pred_fallthru
          _
        // Predicated region
        $region53: #{language_model_forward.1} parent=47 // pred_check
          %p387 = pneg %p70
        $region54: #{language_model_forward.1} parent=47 // pred_check_branch
          %389 = sbr.rel (%p387) target = $region56
        $region55: #{language_model_forward.1} parent=47 // pred_region
          %p390 = scmp.lt.s32.totalorder %s24, 1
          %s391 = scalar_select %p390, %s24, 1
          %s392 = smul.addr %s391, 2
          %s393 = smul.addr %s392, 8
          %s394 = scalar_lea.vmem %s1, %s393
        $region56: #{language_model_forward.1} parent=47 // pred_fallthru
          _
      $region48: #{language_model_forward.1} parent=5 // pred_fallthru
        _
      %p395 = scmp.le.s32.totalorder 1, %s24
      %p396 = scmp.lt.s32.totalorder %s24, 3
      %p397 = pnand %p395, %p396
      %p398 = pneg %p397
      // Predicated region
      $region57: #{language_model_forward.1} parent=5 // pred_check
        _
      $region58: #{language_model_forward.1} parent=5 // pred_check_branch
        %400 = sbr.rel (%p397) target = $region60
      $region59: #{language_model_forward.1} parent=5 // pred_region
        %s401 = ssub.s32 %s24, 1
        // Predicated region
        $region61: #{language_model_forward.1} parent=59 // pred_check
          %p402 = pneg %p118
        $region62: #{language_model_forward.1} parent=59 // pred_check_branch
          %404 = sbr.rel (%p402) target = $region64
        $region63: #{language_model_forward.1} parent=59 // pred_region
          %405 = dma.done [#allocation3], 12288
        $region64: #{language_model_forward.1} parent=59 // pred_fallthru
          _
        // Predicated region
        $region65: #{language_model_forward.1} parent=59 // pred_check
          %p406 = pneg %p181
        $region66: #{language_model_forward.1} parent=59 // pred_check_branch
          %408 = sbr.rel (%p406) target = $region68
        $region67: #{language_model_forward.1} parent=59 // pred_region
          %409 = dma.done [#allocation6], 16384
        $region68: #{language_model_forward.1} parent=59 // pred_fallthru
          _
        // Predicated region
        $region69: #{language_model_forward.1} parent=59 // pred_check
          %p410 = pneg %p202
        $region70: #{language_model_forward.1} parent=59 // pred_check_branch
          %412 = sbr.rel (%p410) target = $region72
        $region71: #{language_model_forward.1} parent=59 // pred_region
          %413 = dma.done [#allocation6], 8192
        $region72: #{language_model_forward.1} parent=59 // pred_fallthru
          _
        // Predicated region
        $region73: #{language_model_forward.1} parent=59 // pred_check
          %p414 = pneg %p244
        $region74: #{language_model_forward.1} parent=59 // pred_check_branch
          %416 = sbr.rel (%p414) target = $region76
        $region75: #{language_model_forward.1} parent=59 // pred_region
          %417 = dma.done [#allocation9], 4096
        $region76: #{language_model_forward.1} parent=59 // pred_fallthru
          _
        %p418 = scmp.lt.s32.totalorder %s29, 1
        %s419 = scalar_select %p418, %s29, 1
        %s420 = smul.addr %s419, 2
        %s421 = smul.addr %s420, 8
        %s422 = scalar_lea.vmem %s0, %s421
        %p423 = pneg %p50
        %p424 = pneg %p47
        %p425 = scmp.lt.s32.totalorder %s29, 1
        %s426 = scalar_select %p425, %s29, 1
        %s427 = smul.addr %s426, 2
        %s428 = smul.addr %s427, 8
        %s429 = scalar_lea.vmem %s1, %s428
        %p430 = pneg %p76
        %p431 = pneg %p73
        %p432 = pneg %p97
        %p433 = pneg %p94
        %p434 = pneg %p118
        %p435 = pneg %p115
        %p436 = pneg %p139
        %p437 = pneg %p136
        %p438 = pneg %p160
        %p439 = pneg %p157
        %p440 = pneg %p181
        %p441 = pneg %p178
        %p442 = pneg %p202
        %p443 = pneg %p199
        %p444 = pneg %p223
        %p445 = pneg %p220
        %p446 = pneg %p244
        %p447 = pneg %p241
        %p448 = pneg %p270
        %p449 = pneg %p267
        %s450 = sand.u32 %s257, 1
        %s451 = scalar_lea.sflag [#allocation4], %s450
        %s452 = sand.u32 %s257, 1
        %s453 = smul.addr %s452, 32
        %s454 = scalar_lea.vmem [#allocation10], %s453
        %p455 = pneg %p296
        %p456 = pneg %p293
        %p457 = scmp.lt.s32.totalorder %s29, 1
        %s458 = scalar_select %p457, %s29, 1
        %s459 = scalar_lea.vmem %s11, %s458
        %p460 = scmp.lt.s32.totalorder %s29, 1
        %s461 = scalar_select %p460, %s29, 1
        %s462 = smul.addr %s461, 2
        %s463 = smul.addr %s462, 8
        %s464 = scalar_lea.vmem %s0, %s463
        %p465 = scmp.lt.s32.totalorder %s29, 1
        %s466 = scalar_select %p465, %s29, 1
        %s467 = smul.addr %s466, 2
        %s468 = smul.addr %s467, 8
        %s469 = scalar_lea.vmem %s1, %s468
        %p470 = scmp.lt.s32.totalorder %s29, 1
        %s471 = scalar_select %p470, %s29, 1
        %s472 = scalar_lea.vmem %s11, %s471
        %v473 = vld [vmem:[%s464] sm:$0xff]
        %v474 = vld [vmem:[%s464 + $0x8] sm:$0xff]
        %v475 = vlaneseq
        %v476 = vshrl.u32 %v475, 7
        %v477 = vadd.s32 %v476, 8
        %v478 = vlaneseq
        %v479 = vand.u32 %v478, 127
        %vm480 = vcmp.le.s32.totalorder %v479, %v476
        %vm481 = vcmp.le.s32.totalorder %v479, %v477
        %v482 = vmul.f32 %v473, %v473
        %v483 = vmul.f32 %v474, %v474
        %484 = vadd.xlane.f32.xlu0 %v482
        %v485 = vpop.xlane.xlu0 %484
        %486 = vadd.xlane.f32.xlu0 %v483
        %v487 = vpop.xlane.xlu0 %486
        %v488 = vrcp.pop 128.0
        %v489 = vmul.f32 %v485, %v488
        %v490 = vmul.f32 %v487, %v488
        %v491 = vadd.f32 %v489, 1e-06
        %v492 = vadd.f32 %v490, 1e-06
        %v493 = vrsqrt.pop %v491
        %v494 = vrsqrt.pop %v492
        %v495 = vmul.f32 %v473, %v493
        %v496 = vmul.f32 %v474, %v494
        %v497 = vld [vmem:[%s2] sm:$0x1]
        %v499 = vlaneseq
        %v500 = vshrl.u32 %v499, 7
        %v501 = vsub.s32 0, %v500
        %v502 = vrot.slane %v497, %v501
        %v504 = vmul.f32 %v495, %v502
        %v505 = vmul.f32 %v496, %v502
        %v506 = vld [vmem:[#allocation2] sm:$0xff]
        %v507 = vld [vmem:[#allocation2 + $0x8] sm:$0xff]
        %v508 = vld [vmem:[#allocation2 + $0x10] sm:$0xff]
        %v509 = vld [vmem:[#allocation2 + $0x18] sm:$0xff]
        %v510 = vld [vmem:[#allocation2 + $0x20] sm:$0xff]
        %v511 = vld [vmem:[#allocation2 + $0x28] sm:$0xff]
        %v512 = vld [vmem:[#allocation2 + $0x30] sm:$0xff]
        %v513 = vld [vmem:[#allocation2 + $0x38] sm:$0xff]
        %v514 = vld [vmem:[#allocation2 + $0x40] sm:$0xff]
        %v515 = vld [vmem:[#allocation2 + $0x48] sm:$0xff]
        %v516 = vld [vmem:[#allocation2 + $0x50] sm:$0xff]
        %v517 = vld [vmem:[#allocation2 + $0x58] sm:$0xff]
        %v518 = vld [vmem:[#allocation2 + $0x60] sm:$0xff]
        %v519 = vld [vmem:[#allocation2 + $0x68] sm:$0xff]
        %v520 = vld [vmem:[#allocation2 + $0x70] sm:$0xff]
        %v521 = vld [vmem:[#allocation2 + $0x78] sm:$0xff]
        %v522 = vld [vmem:[#allocation2 + $0x80] sm:$0xff]
        %v523 = vld [vmem:[#allocation2 + $0x88] sm:$0xff]
        %v524 = vld [vmem:[#allocation2 + $0x90] sm:$0xff]
        %v525 = vld [vmem:[#allocation2 + $0x98] sm:$0xff]
        %v526 = vld [vmem:[#allocation2 + $0xa0] sm:$0xff]
        %v527 = vld [vmem:[#allocation2 + $0xa8] sm:$0xff]
        %v528 = vld [vmem:[#allocation2 + $0xb0] sm:$0xff]
        %v529 = vld [vmem:[#allocation2 + $0xb8] sm:$0xff]
        %v530 = vld [vmem:[#allocation2 + $0xc0] sm:$0xff]
        %v531 = vld [vmem:[#allocation2 + $0xc8] sm:$0xff]
        %v532 = vld [vmem:[#allocation2 + $0xd0] sm:$0xff]
        %v533 = vld [vmem:[#allocation2 + $0xd8] sm:$0xff]
        %v534 = vld [vmem:[#allocation2 + $0xe0] sm:$0xff]
        %v535 = vld [vmem:[#allocation2 + $0xe8] sm:$0xff]
        %v536 = vld [vmem:[#allocation2 + $0xf0] sm:$0xff]
        %v537 = vld [vmem:[#allocation2 + $0xf8] sm:$0xff]
        %v538 = vld [vmem:[#allocation2 + $0x100] sm:$0xff]
        %v539 = vld [vmem:[#allocation2 + $0x108] sm:$0xff]
        %v540 = vld [vmem:[#allocation2 + $0x110] sm:$0xff]
        %v541 = vld [vmem:[#allocation2 + $0x118] sm:$0xff]
        %v542 = vld [vmem:[#allocation2 + $0x120] sm:$0xff]
        %v543 = vld [vmem:[#allocation2 + $0x128] sm:$0xff]
        %v544 = vld [vmem:[#allocation2 + $0x130] sm:$0xff]
        %v545 = vld [vmem:[#allocation2 + $0x138] sm:$0xff]
        %v546 = vld [vmem:[#allocation2 + $0x140] sm:$0xff]
        %v547 = vld [vmem:[#allocation2 + $0x148] sm:$0xff]
        %v548 = vld [vmem:[#allocation2 + $0x150] sm:$0xff]
        %v549 = vld [vmem:[#allocation2 + $0x158] sm:$0xff]
        %v550 = vld [vmem:[#allocation2 + $0x160] sm:$0xff]
        %v551 = vld [vmem:[#allocation2 + $0x168] sm:$0xff]
        %v552 = vld [vmem:[#allocation2 + $0x170] sm:$0xff]
        %v553 = vld [vmem:[#allocation2 + $0x178] sm:$0xff]
        %554 = vmatprep.subr.mxu0 %v552
        %555 = vmatpush1.msra.mxu0 %v551
        %556 = vmatprep.subr.mxu0 %v549
        %557 = vmatpush1.msra.mxu0 %v548
        %558 = vmatprep.subr.mxu0 %v546
        %559 = vmatpush1.msra.mxu0 %v545
        %560 = vmatprep.subr.mxu0 %v543
        %561 = vmatpush1.msra.mxu0 %v542
        %562 = vmatprep.subr.mxu0 %v540
        %563 = vmatpush1.msra.mxu0 %v539
        %564 = vmatprep.subr.mxu0 %v537
        %565 = vmatpush1.msra.mxu0 %v536
        %566 = vmatprep.subr.mxu0 %v534
        %567 = vmatpush1.msra.mxu0 %v533
        %568 = vmatprep.subr.mxu0 %v531
        %569 = vmatpush1.msra.mxu0 %v530
        %570 = vmatprep.subr.mxu0 %v528
        %571 = vmatpush1.msra.mxu0 %v527
        %572 = vmatprep.subr.mxu0 %v525
        %573 = vmatpush1.msra.mxu0 %v524
        %574 = vmatprep.subr.mxu0 %v522
        %575 = vmatpush1.msra.mxu0 %v521
        %576 = vmatprep.subr.mxu0 %v519
        %577 = vmatpush1.msra.mxu0 %v518
        %578 = vmatprep.subr.mxu0 %v516
        %579 = vmatpush1.msra.mxu0 %v515
        %580 = vmatprep.subr.mxu0 %v513
        %581 = vmatpush1.msra.mxu0 %v512
        %582 = vmatprep.subr.mxu0 %v510
        %583 = vmatpush1.msra.mxu0 %v509
        %584 = vmatprep.subr.mxu0 %v507
        %585 = vmatpush1.msra.mxu0 %v506
        %586 = vmatprep.subr.mxu0 0.0
        %587 = vmatpush2.msra.mxu0 0.0
        %588 = vmatprep.subr.mxu0 0.0
        %589 = vmatpush2.msra.mxu0 0.0
        %590 = vmatprep.subr.mxu0 0.0
        %591 = vmatpush2.msra.mxu0 0.0
        %592 = vmatprep.subr.mxu0 0.0
        %593 = vmatpush2.msra.mxu0 0.0
        %594 = vmatprep.subr.mxu0 0.0
        %595 = vmatpush2.msra.mxu0 0.0
        %596 = vmatprep.subr.mxu0 0.0
        %597 = vmatpush2.msra.mxu0 0.0
        %598 = vmatprep.subr.mxu0 0.0
        %599 = vmatpush2.msra.mxu0 0.0
        %600 = vmatprep.subr.mxu0 0.0
        %601 = vmatpush2.msra.mxu0 0.0
        %602 = vmatprep.subr.mxu0 0.0
        %603 = vmatpush2.msra.mxu0 0.0
        %604 = vmatprep.subr.mxu0 0.0
        %605 = vmatpush2.msra.mxu0 0.0
        %606 = vmatprep.subr.mxu0 0.0
        %607 = vmatpush2.msra.mxu0 0.0
        %608 = vmatprep.subr.mxu0 0.0
        %609 = vmatpush2.msra.mxu0 0.0
        %610 = vmatprep.subr.mxu0 0.0
        %611 = vmatpush2.msra.mxu0 0.0
        %612 = vmatprep.subr.mxu0 0.0
        %613 = vmatpush2.msra.mxu0 0.0
        %614 = vmatprep.subr.mxu0 0.0
        %615 = vmatpush2.msra.mxu0 0.0
        %616 = vmatprep.subr.mxu0 0.0
        %617 = vmatpush2.msra.mxu0 0.0
        %618 = vmatprep.mubr.f32.mxu0 0.0
        %619 = vmatmul.mubr.f32.gmra.mxu0 %v504
        %v620 = vpop.f32.mrf.mxu0
        %v621 = vadd.f32 0.0, %v620
        %v622 = vpop.f32.mrf.mxu0
        %v623 = vadd.f32 0.0, %v622
        %624 = vmatprep.mubr.f32.mxu0 0.0
        %625 = vmatmul.mubr.f32.gmra.mxu0 %v505
        %v626 = vpop.f32.mrf.mxu0
        %v627 = vadd.f32 0.0, %v626
        %v628 = vpop.f32.mrf.mxu0
        %v629 = vadd.f32 0.0, %v628
        %630 = vdwg.mxu0
        %631 = vmatprep.subr.mxu0 0.0
        %632 = vmatpush1.msra.mxu0 %v553
        %633 = vmatprep.subr.mxu0 0.0
        %634 = vmatpush1.msra.mxu0 %v550
        %635 = vmatprep.subr.mxu0 0.0
        %636 = vmatpush1.msra.mxu0 %v547
        %637 = vmatprep.subr.mxu0 0.0
        %638 = vmatpush1.msra.mxu0 %v544
        %639 = vmatprep.subr.mxu0 0.0
        %640 = vmatpush1.msra.mxu0 %v541
        %641 = vmatprep.subr.mxu0 0.0
        %642 = vmatpush1.msra.mxu0 %v538
        %643 = vmatprep.subr.mxu0 0.0
        %644 = vmatpush1.msra.mxu0 %v535
        %645 = vmatprep.subr.mxu0 0.0
        %646 = vmatpush1.msra.mxu0 %v532
        %647 = vmatprep.subr.mxu0 0.0
        %648 = vmatpush1.msra.mxu0 %v529
        %649 = vmatprep.subr.mxu0 0.0
        %650 = vmatpush1.msra.mxu0 %v526
        %651 = vmatprep.subr.mxu0 0.0
        %652 = vmatpush1.msra.mxu0 %v523
        %653 = vmatprep.subr.mxu0 0.0
        %654 = vmatpush1.msra.mxu0 %v520
        %655 = vmatprep.subr.mxu0 0.0
        %656 = vmatpush1.msra.mxu0 %v517
        %657 = vmatprep.subr.mxu0 0.0
        %658 = vmatpush1.msra.mxu0 %v514
        %659 = vmatprep.subr.mxu0 0.0
        %660 = vmatpush1.msra.mxu0 %v511
        %661 = vmatprep.subr.mxu0 0.0
        %662 = vmatpush1.msra.mxu0 %v508
        %663 = vmatprep.subr.mxu0 0.0
        %664 = vmatpush2.msra.mxu0 0.0
        %665 = vmatprep.subr.mxu0 0.0
        %666 = vmatpush2.msra.mxu0 0.0
        %667 = vmatprep.subr.mxu0 0.0
        %668 = vmatpush2.msra.mxu0 0.0
        %669 = vmatprep.subr.mxu0 0.0
        %670 = vmatpush2.msra.mxu0 0.0
        %671 = vmatprep.subr.mxu0 0.0
        %672 = vmatpush2.msra.mxu0 0.0
        %673 = vmatprep.subr.mxu0 0.0
        %674 = vmatpush2.msra.mxu0 0.0
        %675 = vmatprep.subr.mxu0 0.0
        %676 = vmatpush2.msra.mxu0 0.0
        %677 = vmatprep.subr.mxu0 0.0
        %678 = vmatpush2.msra.mxu0 0.0
        %679 = vmatprep.subr.mxu0 0.0
        %680 = vmatpush2.msra.mxu0 0.0
        %681 = vmatprep.subr.mxu0 0.0
        %682 = vmatpush2.msra.mxu0 0.0
        %683 = vmatprep.subr.mxu0 0.0
        %684 = vmatpush2.msra.mxu0 0.0
        %685 = vmatprep.subr.mxu0 0.0
        %686 = vmatpush2.msra.mxu0 0.0
        %687 = vmatprep.subr.mxu0 0.0
        %688 = vmatpush2.msra.mxu0 0.0
        %689 = vmatprep.subr.mxu0 0.0
        %690 = vmatpush2.msra.mxu0 0.0
        %691 = vmatprep.subr.mxu0 0.0
        %692 = vmatpush2.msra.mxu0 0.0
        %693 = vmatprep.subr.mxu0 0.0
        %694 = vmatpush2.msra.mxu0 0.0
        %695 = vmatprep.mubr.f32.mxu0 0.0
        %696 = vmatmul.mubr.f32.gmra.mxu0 %v504
        %v697 = vpop.f32.mrf.mxu0
        %v698 = vadd.f32 0.0, %v697
        %v699 = vpop.f32.mrf.mxu0
        %700 = vmatprep.mubr.f32.mxu0 0.0
        %701 = vmatmul.mubr.f32.gmra.mxu0 %v505
        %v702 = vpop.f32.mrf.mxu0
        %v703 = vadd.f32 0.0, %v702
        %v704 = vpop.f32.mrf.mxu0
        %705 = vdwg.mxu0
        %v706 = vld [vmem:[%s4] sm:$0xff]
        %v707 = vld [vmem:[%s4 + $0x8] sm:$0xff]
        %v708 = vld [vmem:[%s4 + $0x10] sm:$0xff]
        %v709 = vld [vmem:[%s4 + $0x18] sm:$0xff]
        %v710 = vld [vmem:[%s4 + $0x20] sm:$0xff]
        %v711 = vld [vmem:[%s4 + $0x28] sm:$0xff]
        %v712 = vld [vmem:[%s4 + $0x30] sm:$0xff]
        %v713 = vld [vmem:[%s4 + $0x38] sm:$0xff]
        %v714 = vld [vmem:[%s4 + $0x40] sm:$0xff]
        %v715 = vld [vmem:[%s4 + $0x48] sm:$0xff]
        %v716 = vld [vmem:[%s4 + $0x50] sm:$0xff]
        %v717 = vld [vmem:[%s4 + $0x58] sm:$0xff]
        %v718 = vld [vmem:[%s4 + $0x60] sm:$0xff]
        %v719 = vld [vmem:[%s4 + $0x68] sm:$0xff]
        %v720 = vld [vmem:[%s4 + $0x70] sm:$0xff]
        %v721 = vld [vmem:[%s4 + $0x78] sm:$0xff]
        %vm722 = vcmask 261120
        %v724 = vsel %vm722, %v621, 0
        %v727 = vsel %vm722, %v627, 0
        %v730 = vsel %vm722, %v623, 0
        %v733 = vsel %vm722, %v629, 0
        %735 = vmatprep.subr.mxu0 0.0
        %736 = vmatpush1.xpose.msra.mxu0 0.0
        %737 = vmatprep.subr.mxu0 0.0
        %738 = vmatpush1.xpose.msra.mxu0 0.0
        %739 = vmatprep.subr.mxu0 0.0
        %740 = vmatpush1.xpose.msra.mxu0 0.0
        %741 = vmatprep.subr.mxu0 0.0
        %742 = vmatpush1.xpose.msra.mxu0 0.0
        %743 = vmatprep.subr.mxu0 0.0
        %744 = vmatpush1.xpose.msra.mxu0 0.0
        %745 = vmatprep.subr.mxu0 0.0
        %746 = vmatpush1.xpose.msra.mxu0 0.0
        %747 = vmatprep.subr.mxu0 0.0
        %748 = vmatpush1.xpose.msra.mxu0 0.0
        %749 = vmatprep.subr.mxu0 0.0
        %750 = vmatpush1.xpose.msra.mxu0 0.0
        %751 = vmatprep.subr.mxu0 0.0
        %752 = vmatpush1.xpose.msra.mxu0 0.0
        %753 = vmatprep.subr.mxu0 0.0
        %754 = vmatpush1.xpose.msra.mxu0 0.0
        %755 = vmatprep.subr.mxu0 0.0
        %756 = vmatpush1.xpose.msra.mxu0 0.0
        %757 = vmatprep.subr.mxu0 0.0
        %758 = vmatpush1.xpose.msra.mxu0 0.0
        %759 = vmatprep.subr.mxu0 0.0
        %760 = vmatpush1.xpose.msra.mxu0 0.0
        %761 = vmatprep.subr.mxu0 0.0
        %762 = vmatpush1.xpose.msra.mxu0 0.0
        %763 = vmatprep.subr.mxu0 0.0
        %764 = vmatpush1.xpose.msra.mxu0 %v733
        %765 = vmatprep.subr.mxu0 0.0
        %766 = vmatpush1.xpose.msra.mxu0 %v730
        %767 = vmatprep.subr.mxu0 0.0
        %768 = vmatpush2.xpose.msra.mxu0 0.0
        %769 = vmatprep.subr.mxu0 0.0
        %770 = vmatpush2.xpose.msra.mxu0 0.0
        %771 = vmatprep.subr.mxu0 0.0
        %772 = vmatpush2.xpose.msra.mxu0 0.0
        %773 = vmatprep.subr.mxu0 0.0
        %774 = vmatpush2.xpose.msra.mxu0 0.0
        %775 = vmatprep.subr.mxu0 0.0
        %776 = vmatpush2.xpose.msra.mxu0 0.0
        %777 = vmatprep.subr.mxu0 0.0
        %778 = vmatpush2.xpose.msra.mxu0 0.0
        %779 = vmatprep.subr.mxu0 0.0
        %780 = vmatpush2.xpose.msra.mxu0 0.0
        %781 = vmatprep.subr.mxu0 0.0
        %782 = vmatpush2.xpose.msra.mxu0 0.0
        %783 = vmatprep.subr.mxu0 0.0
        %784 = vmatpush2.xpose.msra.mxu0 0.0
        %785 = vmatprep.subr.mxu0 0.0
        %786 = vmatpush2.xpose.msra.mxu0 0.0
        %787 = vmatprep.subr.mxu0 0.0
        %788 = vmatpush2.xpose.msra.mxu0 0.0
        %789 = vmatprep.subr.mxu0 0.0
        %790 = vmatpush2.xpose.msra.mxu0 0.0
        %791 = vmatprep.subr.mxu0 0.0
        %792 = vmatpush2.xpose.msra.mxu0 0.0
        %793 = vmatprep.subr.mxu0 0.0
        %794 = vmatpush2.xpose.msra.mxu0 0.0
        %795 = vmatprep.subr.mxu0 0.0
        %796 = vmatpush2.xpose.msra.mxu0 0.0
        %797 = vmatprep.subr.mxu0 0.0
        %798 = vmatpush2.xpose.msra.mxu0 0.0
        %799 = vmatprep.mubr.f32.mxu0 0.0
        %800 = vmatmul.mubr.f32.gmra.mxu0 %v724
        %v801 = vpop.f32.mrf.mxu0
        %v802 = vadd.f32 0.0, %v801
        %v803 = vpop.f32.mrf.mxu0
        %804 = vmatprep.mubr.f32.mxu0 0.0
        %805 = vmatmul.mubr.f32.gmra.mxu0 %v727
        %v806 = vpop.f32.mrf.mxu0
        %v807 = vadd.f32 0.0, %v806
        %v808 = vpop.f32.mrf.mxu0
        %809 = vdwg.mxu0
        %v810 = vsel %vm480, %v802, -1e+30
        %v811 = vsel %vm481, %v807, -1e+30
        %vm812 = vcmask 130048
        %v813 = vsel %vm812, %v810, -inf
        %814 = vmax.xlane.f32.xlu0 %v813
        %v815 = vpop.xlane.xlu0 %814
        %v816 = vsel %vm812, %v811, -inf
        %817 = vmax.xlane.f32.xlu0 %v816
        %v818 = vpop.xlane.xlu0 %817
        %v819 = vsub.f32 %v810, %v815
        %v820 = vsub.f32 %v811, %v818
        %v821 = vmul.f32 %v819, 1.442695
        %v822 = vpow.pop %v821
        %v823 = vmul.f32 %v820, 1.442695
        %v824 = vpow.pop %v823
        %v825 = vsel %vm812, %v822, 0.0
        %826 = vadd.xlane.f32.xlu0 %v825
        %v827 = vpop.xlane.xlu0 %826
        %v828 = vsel %vm812, %v824, 0.0
        %829 = vadd.xlane.f32.xlu0 %v828
        %v830 = vpop.xlane.xlu0 %829
        %v831 = vrcp.pop %v827
        %v832 = vrcp.pop %v830
        %v833 = vmul.f32 %v822, %v831
        %v834 = vmul.f32 %v824, %v832
        %v836 = vsel %vm812, %v833, 0
        %v839 = vsel %vm812, %v834, 0
        %841 = vmatprep.subr.mxu0 0.0
        %842 = vmatpush1.msra.mxu0 0.0
        %843 = vmatprep.subr.mxu0 0.0
        %844 = vmatpush1.msra.mxu0 0.0
        %845 = vmatprep.subr.mxu0 0.0
        %846 = vmatpush1.msra.mxu0 0.0
        %847 = vmatprep.subr.mxu0 0.0
        %848 = vmatpush1.msra.mxu0 0.0
        %849 = vmatprep.subr.mxu0 0.0
        %850 = vmatpush1.msra.mxu0 0.0
        %851 = vmatprep.subr.mxu0 0.0
        %852 = vmatpush1.msra.mxu0 0.0
        %853 = vmatprep.subr.mxu0 0.0
        %854 = vmatpush1.msra.mxu0 0.0
        %855 = vmatprep.subr.mxu0 0.0
        %856 = vmatpush1.msra.mxu0 0.0
        %857 = vmatprep.subr.mxu0 0.0
        %858 = vmatpush1.msra.mxu0 0.0
        %859 = vmatprep.subr.mxu0 0.0
        %860 = vmatpush1.msra.mxu0 0.0
        %861 = vmatprep.subr.mxu0 0.0
        %862 = vmatpush1.msra.mxu0 0.0
        %863 = vmatprep.subr.mxu0 0.0
        %864 = vmatpush1.msra.mxu0 0.0
        %865 = vmatprep.subr.mxu0 0.0
        %866 = vmatpush1.msra.mxu0 0.0
        %867 = vmatprep.subr.mxu0 0.0
        %868 = vmatpush1.msra.mxu0 0.0
        %869 = vmatprep.subr.mxu0 0.0
        %870 = vmatpush1.msra.mxu0 %v703
        %871 = vmatprep.subr.mxu0 0.0
        %872 = vmatpush1.msra.mxu0 %v698
        %873 = vmatprep.subr.mxu0 0.0
        %874 = vmatpush2.msra.mxu0 0.0
        %875 = vmatprep.subr.mxu0 0.0
        %876 = vmatpush2.msra.mxu0 0.0
        %877 = vmatprep.subr.mxu0 0.0
        %878 = vmatpush2.msra.mxu0 0.0
        %879 = vmatprep.subr.mxu0 0.0
        %880 = vmatpush2.msra.mxu0 0.0
        %881 = vmatprep.subr.mxu0 0.0
        %882 = vmatpush2.msra.mxu0 0.0
        %883 = vmatprep.subr.mxu0 0.0
        %884 = vmatpush2.msra.mxu0 0.0
        %885 = vmatprep.subr.mxu0 0.0
        %886 = vmatpush2.msra.mxu0 0.0
        %887 = vmatprep.subr.mxu0 0.0
        %888 = vmatpush2.msra.mxu0 0.0
        %889 = vmatprep.subr.mxu0 0.0
        %890 = vmatpush2.msra.mxu0 0.0
        %891 = vmatprep.subr.mxu0 0.0
        %892 = vmatpush2.msra.mxu0 0.0
        %893 = vmatprep.subr.mxu0 0.0
        %894 = vmatpush2.msra.mxu0 0.0
        %895 = vmatprep.subr.mxu0 0.0
        %896 = vmatpush2.msra.mxu0 0.0
        %897 = vmatprep.subr.mxu0 0.0
        %898 = vmatpush2.msra.mxu0 0.0
        %899 = vmatprep.subr.mxu0 0.0
        %900 = vmatpush2.msra.mxu0 0.0
        %901 = vmatprep.subr.mxu0 0.0
        %902 = vmatpush2.msra.mxu0 0.0
        %903 = vmatprep.subr.mxu0 0.0
        %904 = vmatpush2.msra.mxu0 0.0
        %905 = vmatprep.mubr.f32.mxu0 0.0
        %906 = vmatmul.mubr.f32.gmra.mxu0 %v836
        %v907 = vpop.f32.mrf.mxu0
        %v908 = vadd.f32 0.0, %v907
        %v909 = vpop.f32.mrf.mxu0
        %910 = vmatprep.mubr.f32.mxu0 0.0
        %911 = vmatmul.mubr.f32.gmra.mxu0 %v839
        %v912 = vpop.f32.mrf.mxu0
        %v913 = vadd.f32 0.0, %v912
        %v914 = vpop.f32.mrf.mxu0
        %915 = vdwg.mxu0
        %916 = vrot.lane.b32.xlu0 %v621, 96
        %v917 = vpop.permute.xlu0 %916
        %918 = vrot.lane.b32.xlu0 %v627, 96
        %v919 = vpop.permute.xlu0 %918
        %920 = vrot.lane.b32.xlu0 %v623, 96
        %v921 = vpop.permute.xlu0 %920
        %922 = vrot.lane.b32.xlu0 %v629, 96
        %v923 = vpop.permute.xlu0 %922
        %v924 = vsel %vm722, %v917, 0
        %v926 = vsel %vm722, %v919, 0
        %v928 = vsel %vm722, %v921, 0
        %v930 = vsel %vm722, %v923, 0
        %932 = vmatprep.subr.mxu0 0.0
        %933 = vmatpush1.xpose.msra.mxu0 0.0
        %934 = vmatprep.subr.mxu0 0.0
        %935 = vmatpush1.xpose.msra.mxu0 0.0
        %936 = vmatprep.subr.mxu0 0.0
        %937 = vmatpush1.xpose.msra.mxu0 0.0
        %938 = vmatprep.subr.mxu0 0.0
        %939 = vmatpush1.xpose.msra.mxu0 0.0
        %940 = vmatprep.subr.mxu0 0.0
        %941 = vmatpush1.xpose.msra.mxu0 0.0
        %942 = vmatprep.subr.mxu0 0.0
        %943 = vmatpush1.xpose.msra.mxu0 0.0
        %944 = vmatprep.subr.mxu0 0.0
        %945 = vmatpush1.xpose.msra.mxu0 0.0
        %946 = vmatprep.subr.mxu0 0.0
        %947 = vmatpush1.xpose.msra.mxu0 0.0
        %948 = vmatprep.subr.mxu0 0.0
        %949 = vmatpush1.xpose.msra.mxu0 0.0
        %950 = vmatprep.subr.mxu0 0.0
        %951 = vmatpush1.xpose.msra.mxu0 0.0
        %952 = vmatprep.subr.mxu0 0.0
        %953 = vmatpush1.xpose.msra.mxu0 0.0
        %954 = vmatprep.subr.mxu0 0.0
        %955 = vmatpush1.xpose.msra.mxu0 0.0
        %956 = vmatprep.subr.mxu0 0.0
        %957 = vmatpush1.xpose.msra.mxu0 0.0
        %958 = vmatprep.subr.mxu0 0.0
        %959 = vmatpush1.xpose.msra.mxu0 0.0
        %960 = vmatprep.subr.mxu0 0.0
        %961 = vmatpush1.xpose.msra.mxu0 %v930
        %962 = vmatprep.subr.mxu0 0.0
        %963 = vmatpush1.xpose.msra.mxu0 %v928
        %964 = vmatprep.subr.mxu0 0.0
        %965 = vmatpush2.xpose.msra.mxu0 0.0
        %966 = vmatprep.subr.mxu0 0.0
        %967 = vmatpush2.xpose.msra.mxu0 0.0
        %968 = vmatprep.subr.mxu0 0.0
        %969 = vmatpush2.xpose.msra.mxu0 0.0
        %970 = vmatprep.subr.mxu0 0.0
        %971 = vmatpush2.xpose.msra.mxu0 0.0
        %972 = vmatprep.subr.mxu0 0.0
        %973 = vmatpush2.xpose.msra.mxu0 0.0
        %974 = vmatprep.subr.mxu0 0.0
        %975 = vmatpush2.xpose.msra.mxu0 0.0
        %976 = vmatprep.subr.mxu0 0.0
        %977 = vmatpush2.xpose.msra.mxu0 0.0
        %978 = vmatprep.subr.mxu0 0.0
        %979 = vmatpush2.xpose.msra.mxu0 0.0
        %980 = vmatprep.subr.mxu0 0.0
        %981 = vmatpush2.xpose.msra.mxu0 0.0
        %982 = vmatprep.subr.mxu0 0.0
        %983 = vmatpush2.xpose.msra.mxu0 0.0
        %984 = vmatprep.subr.mxu0 0.0
        %985 = vmatpush2.xpose.msra.mxu0 0.0
        %986 = vmatprep.subr.mxu0 0.0
        %987 = vmatpush2.xpose.msra.mxu0 0.0
        %988 = vmatprep.subr.mxu0 0.0
        %989 = vmatpush2.xpose.msra.mxu0 0.0
        %990 = vmatprep.subr.mxu0 0.0
        %991 = vmatpush2.xpose.msra.mxu0 0.0
        %992 = vmatprep.subr.mxu0 0.0
        %993 = vmatpush2.xpose.msra.mxu0 0.0
        %994 = vmatprep.subr.mxu0 0.0
        %995 = vmatpush2.xpose.msra.mxu0 0.0
        %996 = vmatprep.mubr.f32.mxu0 0.0
        %997 = vmatmul.mubr.f32.gmra.mxu0 %v924
        %v998 = vpop.f32.mrf.mxu0
        %v999 = vadd.f32 0.0, %v998
        %v1000 = vpop.f32.mrf.mxu0
        %1001 = vmatprep.mubr.f32.mxu0 0.0
        %1002 = vmatmul.mubr.f32.gmra.mxu0 %v926
        %v1003 = vpop.f32.mrf.mxu0
        %v1004 = vadd.f32 0.0, %v1003
        %v1005 = vpop.f32.mrf.mxu0
        %1006 = vdwg.mxu0
        %v1007 = vsel %vm480, %v999, -1e+30
        %v1008 = vsel %vm481, %v1004, -1e+30
        %v1009 = vsel %vm812, %v1007, -inf
        %1010 = vmax.xlane.f32.xlu0 %v1009
        %v1011 = vpop.xlane.xlu0 %1010
        %v1012 = vsel %vm812, %v1008, -inf
        %1013 = vmax.xlane.f32.xlu0 %v1012
        %v1014 = vpop.xlane.xlu0 %1013
        %v1015 = vsub.f32 %v1007, %v1011
        %v1016 = vsub.f32 %v1008, %v1014
        %v1017 = vmul.f32 %v1015, 1.442695
        %v1018 = vpow.pop %v1017
        %v1019 = vmul.f32 %v1016, 1.442695
        %v1020 = vpow.pop %v1019
        %v1021 = vsel %vm812, %v1018, 0.0
        %1022 = vadd.xlane.f32.xlu0 %v1021
        %v1023 = vpop.xlane.xlu0 %1022
        %v1024 = vsel %vm812, %v1020, 0.0
        %1025 = vadd.xlane.f32.xlu0 %v1024
        %v1026 = vpop.xlane.xlu0 %1025
        %v1027 = vrcp.pop %v1023
        %v1028 = vrcp.pop %v1026
        %v1029 = vmul.f32 %v1018, %v1027
        %v1030 = vmul.f32 %v1020, %v1028
        %1033 = vrot.lane.b32.xlu0 %v698, 96
        %v1034 = vpop.permute.xlu0 %1033
        %1035 = vrot.lane.b32.xlu0 %v703, 96
        %v1036 = vpop.permute.xlu0 %1035
        %v1040 = vsel %vm812, %v1029, 0
        %v1043 = vsel %vm812, %v1030, 0
        %1045 = vmatprep.subr.mxu0 0.0
        %1046 = vmatpush1.msra.mxu0 0.0
        %1047 = vmatprep.subr.mxu0 0.0
        %1048 = vmatpush1.msra.mxu0 0.0
        %1049 = vmatprep.subr.mxu0 0.0
        %1050 = vmatpush1.msra.mxu0 0.0
        %1051 = vmatprep.subr.mxu0 0.0
        %1052 = vmatpush1.msra.mxu0 0.0
        %1053 = vmatprep.subr.mxu0 0.0
        %1054 = vmatpush1.msra.mxu0 0.0
        %1055 = vmatprep.subr.mxu0 0.0
        %1056 = vmatpush1.msra.mxu0 0.0
        %1057 = vmatprep.subr.mxu0 0.0
        %1058 = vmatpush1.msra.mxu0 0.0
        %1059 = vmatprep.subr.mxu0 0.0
        %1060 = vmatpush1.msra.mxu0 0.0
        %1061 = vmatprep.subr.mxu0 0.0
        %1062 = vmatpush1.msra.mxu0 0.0
        %1063 = vmatprep.subr.mxu0 0.0
        %1064 = vmatpush1.msra.mxu0 0.0
        %1065 = vmatprep.subr.mxu0 0.0
        %1066 = vmatpush1.msra.mxu0 0.0
        %1067 = vmatprep.subr.mxu0 0.0
        %1068 = vmatpush1.msra.mxu0 0.0
        %1069 = vmatprep.subr.mxu0 0.0
        %1070 = vmatpush1.msra.mxu0 0.0
        %1071 = vmatprep.subr.mxu0 0.0
        %1072 = vmatpush1.msra.mxu0 0.0
        %1073 = vmatprep.subr.mxu0 0.0
        %1074 = vmatpush1.msra.mxu0 %v1036
        %1075 = vmatprep.subr.mxu0 0.0
        %1076 = vmatpush1.msra.mxu0 %v1034
        %1077 = vmatprep.subr.mxu0 0.0
        %1078 = vmatpush2.msra.mxu0 0.0
        %1079 = vmatprep.subr.mxu0 0.0
        %1080 = vmatpush2.msra.mxu0 0.0
        %1081 = vmatprep.subr.mxu0 0.0
        %1082 = vmatpush2.msra.mxu0 0.0
        %1083 = vmatprep.subr.mxu0 0.0
        %1084 = vmatpush2.msra.mxu0 0.0
        %1085 = vmatprep.subr.mxu0 0.0
        %1086 = vmatpush2.msra.mxu0 0.0
        %1087 = vmatprep.subr.mxu0 0.0
        %1088 = vmatpush2.msra.mxu0 0.0
        %1089 = vmatprep.subr.mxu0 0.0
        %1090 = vmatpush2.msra.mxu0 0.0
        %1091 = vmatprep.subr.mxu0 0.0
        %1092 = vmatpush2.msra.mxu0 0.0
        %1093 = vmatprep.subr.mxu0 0.0
        %1094 = vmatpush2.msra.mxu0 0.0
        %1095 = vmatprep.subr.mxu0 0.0
        %1096 = vmatpush2.msra.mxu0 0.0
        %1097 = vmatprep.subr.mxu0 0.0
        %1098 = vmatpush2.msra.mxu0 0.0
        %1099 = vmatprep.subr.mxu0 0.0
        %1100 = vmatpush2.msra.mxu0 0.0
        %1101 = vmatprep.subr.mxu0 0.0
        %1102 = vmatpush2.msra.mxu0 0.0
        %1103 = vmatprep.subr.mxu0 0.0
        %1104 = vmatpush2.msra.mxu0 0.0
        %1105 = vmatprep.subr.mxu0 0.0
        %1106 = vmatpush2.msra.mxu0 0.0
        %1107 = vmatprep.subr.mxu0 0.0
        %1108 = vmatpush2.msra.mxu0 0.0
        %1109 = vmatprep.mubr.f32.mxu0 0.0
        %1110 = vmatmul.mubr.f32.gmra.mxu0 %v1040
        %v1111 = vpop.f32.mrf.mxu0
        %v1112 = vadd.f32 0.0, %v1111
        %v1113 = vpop.f32.mrf.mxu0
        %1114 = vmatprep.mubr.f32.mxu0 0.0
        %1115 = vmatmul.mubr.f32.gmra.mxu0 %v1043
        %v1116 = vpop.f32.mrf.mxu0
        %v1117 = vadd.f32 0.0, %v1116
        %v1118 = vpop.f32.mrf.mxu0
        %1119 = vdwg.mxu0
        %v1121 = vsel %vm722, %v1112, 0
        %v1124 = vsel %vm722, %v1117, 0
        %1126 = vmatprep.subr.mxu0 0.0
        %1127 = vmatpush1.msra.mxu0 0.0
        %1128 = vmatprep.subr.mxu0 0.0
        %1129 = vmatpush1.msra.mxu0 0.0
        %1130 = vmatprep.subr.mxu0 0.0
        %1131 = vmatpush1.msra.mxu0 0.0
        %1132 = vmatprep.subr.mxu0 0.0
        %1133 = vmatpush1.msra.mxu0 0.0
        %1134 = vmatprep.subr.mxu0 0.0
        %1135 = vmatpush1.msra.mxu0 0.0
        %1136 = vmatprep.subr.mxu0 0.0
        %1137 = vmatpush1.msra.mxu0 0.0
        %1138 = vmatprep.subr.mxu0 0.0
        %1139 = vmatpush1.msra.mxu0 0.0
        %1140 = vmatprep.subr.mxu0 0.0
        %1141 = vmatpush1.msra.mxu0 0.0
        %1142 = vmatprep.subr.mxu0 0.0
        %1143 = vmatpush1.msra.mxu0 0.0
        %1144 = vmatprep.subr.mxu0 0.0
        %1145 = vmatpush1.msra.mxu0 0.0
        %1146 = vmatprep.subr.mxu0 0.0
        %1147 = vmatpush1.msra.mxu0 0.0
        %1148 = vmatprep.subr.mxu0 0.0
        %1149 = vmatpush1.msra.mxu0 0.0
        %1150 = vmatprep.subr.mxu0 0.0
        %1151 = vmatpush1.msra.mxu0 %v713
        %1152 = vmatprep.subr.mxu0 0.0
        %1153 = vmatpush1.msra.mxu0 %v712
        %1154 = vmatprep.subr.mxu0 0.0
        %1155 = vmatpush1.msra.mxu0 %v711
        %1156 = vmatprep.subr.mxu0 0.0
        %1157 = vmatpush1.msra.mxu0 %v710
        %1158 = vmatprep.subr.mxu0 0.0
        %1159 = vmatpush2.msra.mxu0 0.0
        %1160 = vmatprep.subr.mxu0 0.0
        %1161 = vmatpush2.msra.mxu0 0.0
        %1162 = vmatprep.subr.mxu0 0.0
        %1163 = vmatpush2.msra.mxu0 0.0
        %1164 = vmatprep.subr.mxu0 0.0
        %1165 = vmatpush2.msra.mxu0 0.0
        %1166 = vmatprep.subr.mxu0 0.0
        %1167 = vmatpush2.msra.mxu0 0.0
        %1168 = vmatprep.subr.mxu0 0.0
        %1169 = vmatpush2.msra.mxu0 0.0
        %1170 = vmatprep.subr.mxu0 0.0
        %1171 = vmatpush2.msra.mxu0 0.0
        %1172 = vmatprep.subr.mxu0 0.0
        %1173 = vmatpush2.msra.mxu0 0.0
        %1174 = vmatprep.subr.mxu0 0.0
        %1175 = vmatpush2.msra.mxu0 0.0
        %1176 = vmatprep.subr.mxu0 0.0
        %1177 = vmatpush2.msra.mxu0 0.0
        %1178 = vmatprep.subr.mxu0 0.0
        %1179 = vmatpush2.msra.mxu0 0.0
        %1180 = vmatprep.subr.mxu0 0.0
        %1181 = vmatpush2.msra.mxu0 0.0
        %1182 = vmatprep.subr.mxu0 0.0
        %1183 = vmatpush2.msra.mxu0 0.0
        %1184 = vmatprep.subr.mxu0 0.0
        %1185 = vmatpush2.msra.mxu0 0.0
        %1186 = vmatprep.subr.mxu0 0.0
        %1187 = vmatpush2.msra.mxu0 0.0
        %1188 = vmatprep.subr.mxu0 0.0
        %1189 = vmatpush2.msra.mxu0 0.0
        %1190 = vmatprep.mubr.f32.mxu0 0.0
        %1191 = vmatmul.mubr.f32.gmra.mxu0 %v1121
        %v1192 = vpop.f32.mrf.mxu0
        %v1193 = vadd.f32 0.0, %v1192
        %v1194 = vpop.f32.mrf.mxu0
        %1195 = vmatprep.mubr.f32.mxu0 0.0
        %1196 = vmatmul.mubr.f32.gmra.mxu0 %v1124
        %v1197 = vpop.f32.mrf.mxu0
        %v1198 = vadd.f32 0.0, %v1197
        %v1199 = vpop.f32.mrf.mxu0
        %1200 = vdwg.mxu0
        %v1202 = vsel %vm722, %v908, 0
        %v1205 = vsel %vm722, %v913, 0
        %1207 = vmatprep.subr.mxu0 0.0
        %1208 = vmatpush1.msra.mxu0 0.0
        %1209 = vmatprep.subr.mxu0 0.0
        %1210 = vmatpush1.msra.mxu0 0.0
        %1211 = vmatprep.subr.mxu0 0.0
        %1212 = vmatpush1.msra.mxu0 0.0
        %1213 = vmatprep.subr.mxu0 0.0
        %1214 = vmatpush1.msra.mxu0 0.0
        %1215 = vmatprep.subr.mxu0 0.0
        %1216 = vmatpush1.msra.mxu0 0.0
        %1217 = vmatprep.subr.mxu0 0.0
        %1218 = vmatpush1.msra.mxu0 0.0
        %1219 = vmatprep.subr.mxu0 0.0
        %1220 = vmatpush1.msra.mxu0 0.0
        %1221 = vmatprep.subr.mxu0 0.0
        %1222 = vmatpush1.msra.mxu0 0.0
        %1223 = vmatprep.subr.mxu0 0.0
        %1224 = vmatpush1.msra.mxu0 0.0
        %1225 = vmatprep.subr.mxu0 0.0
        %1226 = vmatpush1.msra.mxu0 0.0
        %1227 = vmatprep.subr.mxu0 0.0
        %1228 = vmatpush1.msra.mxu0 0.0
        %1229 = vmatprep.subr.mxu0 0.0
        %1230 = vmatpush1.msra.mxu0 0.0
        %1231 = vmatprep.subr.mxu0 0.0
        %1232 = vmatpush1.msra.mxu0 %v709
        %1233 = vmatprep.subr.mxu0 0.0
        %1234 = vmatpush1.msra.mxu0 %v708
        %1235 = vmatprep.subr.mxu0 0.0
        %1236 = vmatpush1.msra.mxu0 %v707
        %1237 = vmatprep.subr.mxu0 0.0
        %1238 = vmatpush1.msra.mxu0 %v706
        %1239 = vmatprep.subr.mxu0 0.0
        %1240 = vmatpush2.msra.mxu0 0.0
        %1241 = vmatprep.subr.mxu0 0.0
        %1242 = vmatpush2.msra.mxu0 0.0
        %1243 = vmatprep.subr.mxu0 0.0
        %1244 = vmatpush2.msra.mxu0 0.0
        %1245 = vmatprep.subr.mxu0 0.0
        %1246 = vmatpush2.msra.mxu0 0.0
        %1247 = vmatprep.subr.mxu0 0.0
        %1248 = vmatpush2.msra.mxu0 0.0
        %1249 = vmatprep.subr.mxu0 0.0
        %1250 = vmatpush2.msra.mxu0 0.0
        %1251 = vmatprep.subr.mxu0 0.0
        %1252 = vmatpush2.msra.mxu0 0.0
        %1253 = vmatprep.subr.mxu0 0.0
        %1254 = vmatpush2.msra.mxu0 0.0
        %1255 = vmatprep.subr.mxu0 0.0
        %1256 = vmatpush2.msra.mxu0 0.0
        %1257 = vmatprep.subr.mxu0 0.0
        %1258 = vmatpush2.msra.mxu0 0.0
        %1259 = vmatprep.subr.mxu0 0.0
        %1260 = vmatpush2.msra.mxu0 0.0
        %1261 = vmatprep.subr.mxu0 0.0
        %1262 = vmatpush2.msra.mxu0 0.0
        %1263 = vmatprep.subr.mxu0 0.0
        %1264 = vmatpush2.msra.mxu0 0.0
        %1265 = vmatprep.subr.mxu0 0.0
        %1266 = vmatpush2.msra.mxu0 0.0
        %1267 = vmatprep.subr.mxu0 0.0
        %1268 = vmatpush2.msra.mxu0 0.0
        %1269 = vmatprep.subr.mxu0 0.0
        %1270 = vmatpush2.msra.mxu0 0.0
        %1271 = vmatprep.mubr.f32.mxu0 0.0
        %1272 = vmatmul.mubr.f32.gmra.mxu0 %v1202
        %v1273 = vpop.f32.mrf.mxu0
        %v1274 = vadd.f32 %v1193, %v1273
        %v1275 = vpop.f32.mrf.mxu0
        %1276 = vmatprep.mubr.f32.mxu0 0.0
        %1277 = vmatmul.mubr.f32.gmra.mxu0 %v1205
        %v1278 = vpop.f32.mrf.mxu0
        %v1279 = vadd.f32 %v1198, %v1278
        %v1280 = vpop.f32.mrf.mxu0
        %1281 = vdwg.mxu0
        %1282 = vrot.lane.b32.xlu0 %v621, 64
        %v1283 = vpop.permute.xlu0 %1282
        %1284 = vrot.lane.b32.xlu0 %v627, 64
        %v1285 = vpop.permute.xlu0 %1284
        %1286 = vrot.lane.b32.xlu0 %v623, 64
        %v1287 = vpop.permute.xlu0 %1286
        %1288 = vrot.lane.b32.xlu0 %v629, 64
        %v1289 = vpop.permute.xlu0 %1288
        %v1290 = vsel %vm722, %v1283, 0
        %v1292 = vsel %vm722, %v1285, 0
        %v1294 = vsel %vm722, %v1287, 0
        %v1296 = vsel %vm722, %v1289, 0
        %1298 = vmatprep.subr.mxu0 0.0
        %1299 = vmatpush1.xpose.msra.mxu0 0.0
        %1300 = vmatprep.subr.mxu0 0.0
        %1301 = vmatpush1.xpose.msra.mxu0 0.0
        %1302 = vmatprep.subr.mxu0 0.0
        %1303 = vmatpush1.xpose.msra.mxu0 0.0
        %1304 = vmatprep.subr.mxu0 0.0
        %1305 = vmatpush1.xpose.msra.mxu0 0.0
        %1306 = vmatprep.subr.mxu0 0.0
        %1307 = vmatpush1.xpose.msra.mxu0 0.0
        %1308 = vmatprep.subr.mxu0 0.0
        %1309 = vmatpush1.xpose.msra.mxu0 0.0
        %1310 = vmatprep.subr.mxu0 0.0
        %1311 = vmatpush1.xpose.msra.mxu0 0.0
        %1312 = vmatprep.subr.mxu0 0.0
        %1313 = vmatpush1.xpose.msra.mxu0 0.0
        %1314 = vmatprep.subr.mxu0 0.0
        %1315 = vmatpush1.xpose.msra.mxu0 0.0
        %1316 = vmatprep.subr.mxu0 0.0
        %1317 = vmatpush1.xpose.msra.mxu0 0.0
        %1318 = vmatprep.subr.mxu0 0.0
        %1319 = vmatpush1.xpose.msra.mxu0 0.0
        %1320 = vmatprep.subr.mxu0 0.0
        %1321 = vmatpush1.xpose.msra.mxu0 0.0
        %1322 = vmatprep.subr.mxu0 0.0
        %1323 = vmatpush1.xpose.msra.mxu0 0.0
        %1324 = vmatprep.subr.mxu0 0.0
        %1325 = vmatpush1.xpose.msra.mxu0 0.0
        %1326 = vmatprep.subr.mxu0 0.0
        %1327 = vmatpush1.xpose.msra.mxu0 %v1296
        %1328 = vmatprep.subr.mxu0 0.0
        %1329 = vmatpush1.xpose.msra.mxu0 %v1294
        %1330 = vmatprep.subr.mxu0 0.0
        %1331 = vmatpush2.xpose.msra.mxu0 0.0
        %1332 = vmatprep.subr.mxu0 0.0
        %1333 = vmatpush2.xpose.msra.mxu0 0.0
        %1334 = vmatprep.subr.mxu0 0.0
        %1335 = vmatpush2.xpose.msra.mxu0 0.0
        %1336 = vmatprep.subr.mxu0 0.0
        %1337 = vmatpush2.xpose.msra.mxu0 0.0
        %1338 = vmatprep.subr.mxu0 0.0
        %1339 = vmatpush2.xpose.msra.mxu0 0.0
        %1340 = vmatprep.subr.mxu0 0.0
        %1341 = vmatpush2.xpose.msra.mxu0 0.0
        %1342 = vmatprep.subr.mxu0 0.0
        %1343 = vmatpush2.xpose.msra.mxu0 0.0
        %1344 = vmatprep.subr.mxu0 0.0
        %1345 = vmatpush2.xpose.msra.mxu0 0.0
        %1346 = vmatprep.subr.mxu0 0.0
        %1347 = vmatpush2.xpose.msra.mxu0 0.0
        %1348 = vmatprep.subr.mxu0 0.0
        %1349 = vmatpush2.xpose.msra.mxu0 0.0
        %1350 = vmatprep.subr.mxu0 0.0
        %1351 = vmatpush2.xpose.msra.mxu0 0.0
        %1352 = vmatprep.subr.mxu0 0.0
        %1353 = vmatpush2.xpose.msra.mxu0 0.0
        %1354 = vmatprep.subr.mxu0 0.0
        %1355 = vmatpush2.xpose.msra.mxu0 0.0
        %1356 = vmatprep.subr.mxu0 0.0
        %1357 = vmatpush2.xpose.msra.mxu0 0.0
        %1358 = vmatprep.subr.mxu0 0.0
        %1359 = vmatpush2.xpose.msra.mxu0 0.0
        %1360 = vmatprep.subr.mxu0 0.0
        %1361 = vmatpush2.xpose.msra.mxu0 0.0
        %1362 = vmatprep.mubr.f32.mxu0 0.0
        %1363 = vmatmul.mubr.f32.gmra.mxu0 %v1290
        %v1364 = vpop.f32.mrf.mxu0
        %v1365 = vadd.f32 0.0, %v1364
        %v1366 = vpop.f32.mrf.mxu0
        %1367 = vmatprep.mubr.f32.mxu0 0.0
        %1368 = vmatmul.mubr.f32.gmra.mxu0 %v1292
        %v1369 = vpop.f32.mrf.mxu0
        %v1370 = vadd.f32 0.0, %v1369
        %v1371 = vpop.f32.mrf.mxu0
        %1372 = vdwg.mxu0
        %v1373 = vsel %vm480, %v1365, -1e+30
        %v1374 = vsel %vm481, %v1370, -1e+30
        %v1375 = vsel %vm812, %v1373, -inf
        %1376 = vmax.xlane.f32.xlu0 %v1375
        %v1377 = vpop.xlane.xlu0 %1376
        %v1378 = vsel %vm812, %v1374, -inf
        %1379 = vmax.xlane.f32.xlu0 %v1378
        %v1380 = vpop.xlane.xlu0 %1379
        %v1381 = vsub.f32 %v1373, %v1377
        %v1382 = vsub.f32 %v1374, %v1380
        %v1383 = vmul.f32 %v1381, 1.442695
        %v1384 = vpow.pop %v1383
        %v1385 = vmul.f32 %v1382, 1.442695
        %v1386 = vpow.pop %v1385
        %v1387 = vsel %vm812, %v1384, 0.0
        %1388 = vadd.xlane.f32.xlu0 %v1387
        %v1389 = vpop.xlane.xlu0 %1388
        %v1390 = vsel %vm812, %v1386, 0.0
        %1391 = vadd.xlane.f32.xlu0 %v1390
        %v1392 = vpop.xlane.xlu0 %1391
        %v1393 = vrcp.pop %v1389
        %v1394 = vrcp.pop %v1392
        %v1395 = vmul.f32 %v1384, %v1393
        %v1396 = vmul.f32 %v1386, %v1394
        %1397 = vrot.lane.b32.xlu0 %v698, 64
        %v1398 = vpop.permute.xlu0 %1397
        %1399 = vrot.lane.b32.xlu0 %v703, 64
        %v1400 = vpop.permute.xlu0 %1399
        %v1404 = vsel %vm812, %v1395, 0
        %v1407 = vsel %vm812, %v1396, 0
        %1409 = vmatprep.subr.mxu0 0.0
        %1410 = vmatpush1.msra.mxu0 0.0
        %1411 = vmatprep.subr.mxu0 0.0
        %1412 = vmatpush1.msra.mxu0 0.0
        %1413 = vmatprep.subr.mxu0 0.0
        %1414 = vmatpush1.msra.mxu0 0.0
        %1415 = vmatprep.subr.mxu0 0.0
        %1416 = vmatpush1.msra.mxu0 0.0
        %1417 = vmatprep.subr.mxu0 0.0
        %1418 = vmatpush1.msra.mxu0 0.0
        %1419 = vmatprep.subr.mxu0 0.0
        %1420 = vmatpush1.msra.mxu0 0.0
        %1421 = vmatprep.subr.mxu0 0.0
        %1422 = vmatpush1.msra.mxu0 0.0
        %1423 = vmatprep.subr.mxu0 0.0
        %1424 = vmatpush1.msra.mxu0 0.0
        %1425 = vmatprep.subr.mxu0 0.0
        %1426 = vmatpush1.msra.mxu0 0.0
        %1427 = vmatprep.subr.mxu0 0.0
        %1428 = vmatpush1.msra.mxu0 0.0
        %1429 = vmatprep.subr.mxu0 0.0
        %1430 = vmatpush1.msra.mxu0 0.0
        %1431 = vmatprep.subr.mxu0 0.0
        %1432 = vmatpush1.msra.mxu0 0.0
        %1433 = vmatprep.subr.mxu0 0.0
        %1434 = vmatpush1.msra.mxu0 0.0
        %1435 = vmatprep.subr.mxu0 0.0
        %1436 = vmatpush1.msra.mxu0 0.0
        %1437 = vmatprep.subr.mxu0 0.0
        %1438 = vmatpush1.msra.mxu0 %v1400
        %1439 = vmatprep.subr.mxu0 0.0
        %1440 = vmatpush1.msra.mxu0 %v1398
        %1441 = vmatprep.subr.mxu0 0.0
        %1442 = vmatpush2.msra.mxu0 0.0
        %1443 = vmatprep.subr.mxu0 0.0
        %1444 = vmatpush2.msra.mxu0 0.0
        %1445 = vmatprep.subr.mxu0 0.0
        %1446 = vmatpush2.msra.mxu0 0.0
        %1447 = vmatprep.subr.mxu0 0.0
        %1448 = vmatpush2.msra.mxu0 0.0
        %1449 = vmatprep.subr.mxu0 0.0
        %1450 = vmatpush2.msra.mxu0 0.0
        %1451 = vmatprep.subr.mxu0 0.0
        %1452 = vmatpush2.msra.mxu0 0.0
        %1453 = vmatprep.subr.mxu0 0.0
        %1454 = vmatpush2.msra.mxu0 0.0
        %1455 = vmatprep.subr.mxu0 0.0
        %1456 = vmatpush2.msra.mxu0 0.0
        %1457 = vmatprep.subr.mxu0 0.0
        %1458 = vmatpush2.msra.mxu0 0.0
        %1459 = vmatprep.subr.mxu0 0.0
        %1460 = vmatpush2.msra.mxu0 0.0
        %1461 = vmatprep.subr.mxu0 0.0
        %1462 = vmatpush2.msra.mxu0 0.0
        %1463 = vmatprep.subr.mxu0 0.0
        %1464 = vmatpush2.msra.mxu0 0.0
        %1465 = vmatprep.subr.mxu0 0.0
        %1466 = vmatpush2.msra.mxu0 0.0
        %1467 = vmatprep.subr.mxu0 0.0
        %1468 = vmatpush2.msra.mxu0 0.0
        %1469 = vmatprep.subr.mxu0 0.0
        %1470 = vmatpush2.msra.mxu0 0.0
        %1471 = vmatprep.subr.mxu0 0.0
        %1472 = vmatpush2.msra.mxu0 0.0
        %1473 = vmatprep.mubr.f32.mxu0 0.0
        %1474 = vmatmul.mubr.f32.gmra.mxu0 %v1404
        %v1475 = vpop.f32.mrf.mxu0
        %v1476 = vadd.f32 0.0, %v1475
        %v1477 = vpop.f32.mrf.mxu0
        %1478 = vmatprep.mubr.f32.mxu0 0.0
        %1479 = vmatmul.mubr.f32.gmra.mxu0 %v1407
        %v1480 = vpop.f32.mrf.mxu0
        %v1481 = vadd.f32 0.0, %v1480
        %v1482 = vpop.f32.mrf.mxu0
        %1483 = vdwg.mxu0
        %v1485 = vsel %vm722, %v1476, 0
        %v1488 = vsel %vm722, %v1481, 0
        %1490 = vmatprep.subr.mxu0 0.0
        %1491 = vmatpush1.msra.mxu0 0.0
        %1492 = vmatprep.subr.mxu0 0.0
        %1493 = vmatpush1.msra.mxu0 0.0
        %1494 = vmatprep.subr.mxu0 0.0
        %1495 = vmatpush1.msra.mxu0 0.0
        %1496 = vmatprep.subr.mxu0 0.0
        %1497 = vmatpush1.msra.mxu0 0.0
        %1498 = vmatprep.subr.mxu0 0.0
        %1499 = vmatpush1.msra.mxu0 0.0
        %1500 = vmatprep.subr.mxu0 0.0
        %1501 = vmatpush1.msra.mxu0 0.0
        %1502 = vmatprep.subr.mxu0 0.0
        %1503 = vmatpush1.msra.mxu0 0.0
        %1504 = vmatprep.subr.mxu0 0.0
        %1505 = vmatpush1.msra.mxu0 0.0
        %1506 = vmatprep.subr.mxu0 0.0
        %1507 = vmatpush1.msra.mxu0 0.0
        %1508 = vmatprep.subr.mxu0 0.0
        %1509 = vmatpush1.msra.mxu0 0.0
        %1510 = vmatprep.subr.mxu0 0.0
        %1511 = vmatpush1.msra.mxu0 0.0
        %1512 = vmatprep.subr.mxu0 0.0
        %1513 = vmatpush1.msra.mxu0 0.0
        %1514 = vmatprep.subr.mxu0 0.0
        %1515 = vmatpush1.msra.mxu0 %v717
        %1516 = vmatprep.subr.mxu0 0.0
        %1517 = vmatpush1.msra.mxu0 %v716
        %1518 = vmatprep.subr.mxu0 0.0
        %1519 = vmatpush1.msra.mxu0 %v715
        %1520 = vmatprep.subr.mxu0 0.0
        %1521 = vmatpush1.msra.mxu0 %v714
        %1522 = vmatprep.subr.mxu0 0.0
        %1523 = vmatpush2.msra.mxu0 0.0
        %1524 = vmatprep.subr.mxu0 0.0
        %1525 = vmatpush2.msra.mxu0 0.0
        %1526 = vmatprep.subr.mxu0 0.0
        %1527 = vmatpush2.msra.mxu0 0.0
        %1528 = vmatprep.subr.mxu0 0.0
        %1529 = vmatpush2.msra.mxu0 0.0
        %1530 = vmatprep.subr.mxu0 0.0
        %1531 = vmatpush2.msra.mxu0 0.0
        %1532 = vmatprep.subr.mxu0 0.0
        %1533 = vmatpush2.msra.mxu0 0.0
        %1534 = vmatprep.subr.mxu0 0.0
        %1535 = vmatpush2.msra.mxu0 0.0
        %1536 = vmatprep.subr.mxu0 0.0
        %1537 = vmatpush2.msra.mxu0 0.0
        %1538 = vmatprep.subr.mxu0 0.0
        %1539 = vmatpush2.msra.mxu0 0.0
        %1540 = vmatprep.subr.mxu0 0.0
        %1541 = vmatpush2.msra.mxu0 0.0
        %1542 = vmatprep.subr.mxu0 0.0
        %1543 = vmatpush2.msra.mxu0 0.0
        %1544 = vmatprep.subr.mxu0 0.0
        %1545 = vmatpush2.msra.mxu0 0.0
        %1546 = vmatprep.subr.mxu0 0.0
        %1547 = vmatpush2.msra.mxu0 0.0
        %1548 = vmatprep.subr.mxu0 0.0
        %1549 = vmatpush2.msra.mxu0 0.0
        %1550 = vmatprep.subr.mxu0 0.0
        %1551 = vmatpush2.msra.mxu0 0.0
        %1552 = vmatprep.subr.mxu0 0.0
        %1553 = vmatpush2.msra.mxu0 0.0
        %1554 = vmatprep.mubr.f32.mxu0 0.0
        %1555 = vmatmul.mubr.f32.gmra.mxu0 %v1485
        %v1556 = vpop.f32.mrf.mxu0
        %v1557 = vadd.f32 0.0, %v1556
        %v1558 = vpop.f32.mrf.mxu0
        %1559 = vmatprep.mubr.f32.mxu0 0.0
        %1560 = vmatmul.mubr.f32.gmra.mxu0 %v1488
        %v1561 = vpop.f32.mrf.mxu0
        %v1562 = vadd.f32 0.0, %v1561
        %v1563 = vpop.f32.mrf.mxu0
        %1564 = vdwg.mxu0
        %v1565 = vadd.f32 %v1274, %v1557
        %v1566 = vadd.f32 %v1279, %v1562
        %1567 = vrot.lane.b32.xlu0 %v621, 32
        %v1568 = vpop.permute.xlu0 %1567
        %1569 = vrot.lane.b32.xlu0 %v627, 32
        %v1570 = vpop.permute.xlu0 %1569
        %1571 = vrot.lane.b32.xlu0 %v623, 32
        %v1572 = vpop.permute.xlu0 %1571
        %1573 = vrot.lane.b32.xlu0 %v629, 32
        %v1574 = vpop.permute.xlu0 %1573
        %v1575 = vsel %vm722, %v1568, 0
        %v1577 = vsel %vm722, %v1570, 0
        %v1579 = vsel %vm722, %v1572, 0
        %v1581 = vsel %vm722, %v1574, 0
        %1583 = vmatprep.subr.mxu0 0.0
        %1584 = vmatpush1.xpose.msra.mxu0 0.0
        %1585 = vmatprep.subr.mxu0 0.0
        %1586 = vmatpush1.xpose.msra.mxu0 0.0
        %1587 = vmatprep.subr.mxu0 0.0
        %1588 = vmatpush1.xpose.msra.mxu0 0.0
        %1589 = vmatprep.subr.mxu0 0.0
        %1590 = vmatpush1.xpose.msra.mxu0 0.0
        %1591 = vmatprep.subr.mxu0 0.0
        %1592 = vmatpush1.xpose.msra.mxu0 0.0
        %1593 = vmatprep.subr.mxu0 0.0
        %1594 = vmatpush1.xpose.msra.mxu0 0.0
        %1595 = vmatprep.subr.mxu0 0.0
        %1596 = vmatpush1.xpose.msra.mxu0 0.0
        %1597 = vmatprep.subr.mxu0 0.0
        %1598 = vmatpush1.xpose.msra.mxu0 0.0
        %1599 = vmatprep.subr.mxu0 0.0
        %1600 = vmatpush1.xpose.msra.mxu0 0.0
        %1601 = vmatprep.subr.mxu0 0.0
        %1602 = vmatpush1.xpose.msra.mxu0 0.0
        %1603 = vmatprep.subr.mxu0 0.0
        %1604 = vmatpush1.xpose.msra.mxu0 0.0
        %1605 = vmatprep.subr.mxu0 0.0
        %1606 = vmatpush1.xpose.msra.mxu0 0.0
        %1607 = vmatprep.subr.mxu0 0.0
        %1608 = vmatpush1.xpose.msra.mxu0 0.0
        %1609 = vmatprep.subr.mxu0 0.0
        %1610 = vmatpush1.xpose.msra.mxu0 0.0
        %1611 = vmatprep.subr.mxu0 0.0
        %1612 = vmatpush1.xpose.msra.mxu0 %v1581
        %1613 = vmatprep.subr.mxu0 0.0
        %1614 = vmatpush1.xpose.msra.mxu0 %v1579
        %1615 = vmatprep.subr.mxu0 0.0
        %1616 = vmatpush2.xpose.msra.mxu0 0.0
        %1617 = vmatprep.subr.mxu0 0.0
        %1618 = vmatpush2.xpose.msra.mxu0 0.0
        %1619 = vmatprep.subr.mxu0 0.0
        %1620 = vmatpush2.xpose.msra.mxu0 0.0
        %1621 = vmatprep.subr.mxu0 0.0
        %1622 = vmatpush2.xpose.msra.mxu0 0.0
        %1623 = vmatprep.subr.mxu0 0.0
        %1624 = vmatpush2.xpose.msra.mxu0 0.0
        %1625 = vmatprep.subr.mxu0 0.0
        %1626 = vmatpush2.xpose.msra.mxu0 0.0
        %1627 = vmatprep.subr.mxu0 0.0
        %1628 = vmatpush2.xpose.msra.mxu0 0.0
        %1629 = vmatprep.subr.mxu0 0.0
        %1630 = vmatpush2.xpose.msra.mxu0 0.0
        %1631 = vmatprep.subr.mxu0 0.0
        %1632 = vmatpush2.xpose.msra.mxu0 0.0
        %1633 = vmatprep.subr.mxu0 0.0
        %1634 = vmatpush2.xpose.msra.mxu0 0.0
        %1635 = vmatprep.subr.mxu0 0.0
        %1636 = vmatpush2.xpose.msra.mxu0 0.0
        %1637 = vmatprep.subr.mxu0 0.0
        %1638 = vmatpush2.xpose.msra.mxu0 0.0
        %1639 = vmatprep.subr.mxu0 0.0
        %1640 = vmatpush2.xpose.msra.mxu0 0.0
        %1641 = vmatprep.subr.mxu0 0.0
        %1642 = vmatpush2.xpose.msra.mxu0 0.0
        %1643 = vmatprep.subr.mxu0 0.0
        %1644 = vmatpush2.xpose.msra.mxu0 0.0
        %1645 = vmatprep.subr.mxu0 0.0
        %1646 = vmatpush2.xpose.msra.mxu0 0.0
        %1647 = vmatprep.mubr.f32.mxu0 0.0
        %1648 = vmatmul.mubr.f32.gmra.mxu0 %v1575
        %v1649 = vpop.f32.mrf.mxu0
        %v1650 = vadd.f32 0.0, %v1649
        %v1651 = vpop.f32.mrf.mxu0
        %1652 = vmatprep.mubr.f32.mxu0 0.0
        %1653 = vmatmul.mubr.f32.gmra.mxu0 %v1577
        %v1654 = vpop.f32.mrf.mxu0
        %v1655 = vadd.f32 0.0, %v1654
        %v1656 = vpop.f32.mrf.mxu0
        %1657 = vdwg.mxu0
        %v1658 = vsel %vm480, %v1650, -1e+30
        %v1659 = vsel %vm481, %v1655, -1e+30
        %v1660 = vsel %vm812, %v1658, -inf
        %1661 = vmax.xlane.f32.xlu0 %v1660
        %v1662 = vpop.xlane.xlu0 %1661
        %v1663 = vsel %vm812, %v1659, -inf
        %1664 = vmax.xlane.f32.xlu0 %v1663
        %v1665 = vpop.xlane.xlu0 %1664
        %v1666 = vsub.f32 %v1658, %v1662
        %v1667 = vsub.f32 %v1659, %v1665
        %v1668 = vmul.f32 %v1666, 1.442695
        %v1669 = vpow.pop %v1668
        %v1670 = vmul.f32 %v1667, 1.442695
        %v1671 = vpow.pop %v1670
        %v1672 = vsel %vm812, %v1669, 0.0
        %1673 = vadd.xlane.f32.xlu0 %v1672
        %v1674 = vpop.xlane.xlu0 %1673
        %v1675 = vsel %vm812, %v1671, 0.0
        %1676 = vadd.xlane.f32.xlu0 %v1675
        %v1677 = vpop.xlane.xlu0 %1676
        %v1678 = vrcp.pop %v1674
        %v1679 = vrcp.pop %v1677
        %v1680 = vmul.f32 %v1669, %v1678
        %v1681 = vmul.f32 %v1671, %v1679
        %1682 = vrot.lane.b32.xlu0 %v698, 32
        %v1683 = vpop.permute.xlu0 %1682
        %1684 = vrot.lane.b32.xlu0 %v703, 32
        %v1685 = vpop.permute.xlu0 %1684
        %v1689 = vsel %vm812, %v1680, 0
        %v1692 = vsel %vm812, %v1681, 0
        %1694 = vmatprep.subr.mxu0 0.0
        %1695 = vmatpush1.msra.mxu0 0.0
        %1696 = vmatprep.subr.mxu0 0.0
        %1697 = vmatpush1.msra.mxu0 0.0
        %1698 = vmatprep.subr.mxu0 0.0
        %1699 = vmatpush1.msra.mxu0 0.0
        %1700 = vmatprep.subr.mxu0 0.0
        %1701 = vmatpush1.msra.mxu0 0.0
        %1702 = vmatprep.subr.mxu0 0.0
        %1703 = vmatpush1.msra.mxu0 0.0
        %1704 = vmatprep.subr.mxu0 0.0
        %1705 = vmatpush1.msra.mxu0 0.0
        %1706 = vmatprep.subr.mxu0 0.0
        %1707 = vmatpush1.msra.mxu0 0.0
        %1708 = vmatprep.subr.mxu0 0.0
        %1709 = vmatpush1.msra.mxu0 0.0
        %1710 = vmatprep.subr.mxu0 0.0
        %1711 = vmatpush1.msra.mxu0 0.0
        %1712 = vmatprep.subr.mxu0 0.0
        %1713 = vmatpush1.msra.mxu0 0.0
        %1714 = vmatprep.subr.mxu0 0.0
        %1715 = vmatpush1.msra.mxu0 0.0
        %1716 = vmatprep.subr.mxu0 0.0
        %1717 = vmatpush1.msra.mxu0 0.0
        %1718 = vmatprep.subr.mxu0 0.0
        %1719 = vmatpush1.msra.mxu0 0.0
        %1720 = vmatprep.subr.mxu0 0.0
        %1721 = vmatpush1.msra.mxu0 0.0
        %1722 = vmatprep.subr.mxu0 0.0
        %1723 = vmatpush1.msra.mxu0 %v1685
        %1724 = vmatprep.subr.mxu0 0.0
        %1725 = vmatpush1.msra.mxu0 %v1683
        %1726 = vmatprep.subr.mxu0 0.0
        %1727 = vmatpush2.msra.mxu0 0.0
        %1728 = vmatprep.subr.mxu0 0.0
        %1729 = vmatpush2.msra.mxu0 0.0
        %1730 = vmatprep.subr.mxu0 0.0
        %1731 = vmatpush2.msra.mxu0 0.0
        %1732 = vmatprep.subr.mxu0 0.0
        %1733 = vmatpush2.msra.mxu0 0.0
        %1734 = vmatprep.subr.mxu0 0.0
        %1735 = vmatpush2.msra.mxu0 0.0
        %1736 = vmatprep.subr.mxu0 0.0
        %1737 = vmatpush2.msra.mxu0 0.0
        %1738 = vmatprep.subr.mxu0 0.0
        %1739 = vmatpush2.msra.mxu0 0.0
        %1740 = vmatprep.subr.mxu0 0.0
        %1741 = vmatpush2.msra.mxu0 0.0
        %1742 = vmatprep.subr.mxu0 0.0
        %1743 = vmatpush2.msra.mxu0 0.0
        %1744 = vmatprep.subr.mxu0 0.0
        %1745 = vmatpush2.msra.mxu0 0.0
        %1746 = vmatprep.subr.mxu0 0.0
        %1747 = vmatpush2.msra.mxu0 0.0
        %1748 = vmatprep.subr.mxu0 0.0
        %1749 = vmatpush2.msra.mxu0 0.0
        %1750 = vmatprep.subr.mxu0 0.0
        %1751 = vmatpush2.msra.mxu0 0.0
        %1752 = vmatprep.subr.mxu0 0.0
        %1753 = vmatpush2.msra.mxu0 0.0
        %1754 = vmatprep.subr.mxu0 0.0
        %1755 = vmatpush2.msra.mxu0 0.0
        %1756 = vmatprep.subr.mxu0 0.0
        %1757 = vmatpush2.msra.mxu0 0.0
        %1758 = vmatprep.mubr.f32.mxu0 0.0
        %1759 = vmatmul.mubr.f32.gmra.mxu0 %v1689
        %v1760 = vpop.f32.mrf.mxu0
        %v1761 = vadd.f32 0.0, %v1760
        %v1762 = vpop.f32.mrf.mxu0
        %1763 = vmatprep.mubr.f32.mxu0 0.0
        %1764 = vmatmul.mubr.f32.gmra.mxu0 %v1692
        %v1765 = vpop.f32.mrf.mxu0
        %v1766 = vadd.f32 0.0, %v1765
        %v1767 = vpop.f32.mrf.mxu0
        %1768 = vdwg.mxu0
        %v1770 = vsel %vm722, %v1761, 0
        %v1773 = vsel %vm722, %v1766, 0
        %1775 = vmatprep.subr.mxu0 0.0
        %1776 = vmatpush1.msra.mxu0 0.0
        %1777 = vmatprep.subr.mxu0 0.0
        %1778 = vmatpush1.msra.mxu0 0.0
        %1779 = vmatprep.subr.mxu0 0.0
        %1780 = vmatpush1.msra.mxu0 0.0
        %1781 = vmatprep.subr.mxu0 0.0
        %1782 = vmatpush1.msra.mxu0 0.0
        %1783 = vmatprep.subr.mxu0 0.0
        %1784 = vmatpush1.msra.mxu0 0.0
        %1785 = vmatprep.subr.mxu0 0.0
        %1786 = vmatpush1.msra.mxu0 0.0
        %1787 = vmatprep.subr.mxu0 0.0
        %1788 = vmatpush1.msra.mxu0 0.0
        %1789 = vmatprep.subr.mxu0 0.0
        %1790 = vmatpush1.msra.mxu0 0.0
        %1791 = vmatprep.subr.mxu0 0.0
        %1792 = vmatpush1.msra.mxu0 0.0
        %1793 = vmatprep.subr.mxu0 0.0
        %1794 = vmatpush1.msra.mxu0 0.0
        %1795 = vmatprep.subr.mxu0 0.0
        %1796 = vmatpush1.msra.mxu0 0.0
        %1797 = vmatprep.subr.mxu0 0.0
        %1798 = vmatpush1.msra.mxu0 0.0
        %1799 = vmatprep.subr.mxu0 0.0
        %1800 = vmatpush1.msra.mxu0 %v721
        %1801 = vmatprep.subr.mxu0 0.0
        %1802 = vmatpush1.msra.mxu0 %v720
        %1803 = vmatprep.subr.mxu0 0.0
        %1804 = vmatpush1.msra.mxu0 %v719
        %1805 = vmatprep.subr.mxu0 0.0
        %1806 = vmatpush1.msra.mxu0 %v718
        %1807 = vmatprep.subr.mxu0 0.0
        %1808 = vmatpush2.msra.mxu0 0.0
        %1809 = vmatprep.subr.mxu0 0.0
        %1810 = vmatpush2.msra.mxu0 0.0
        %1811 = vmatprep.subr.mxu0 0.0
        %1812 = vmatpush2.msra.mxu0 0.0
        %1813 = vmatprep.subr.mxu0 0.0
        %1814 = vmatpush2.msra.mxu0 0.0
        %1815 = vmatprep.subr.mxu0 0.0
        %1816 = vmatpush2.msra.mxu0 0.0
        %1817 = vmatprep.subr.mxu0 0.0
        %1818 = vmatpush2.msra.mxu0 0.0
        %1819 = vmatprep.subr.mxu0 0.0
        %1820 = vmatpush2.msra.mxu0 0.0
        %1821 = vmatprep.subr.mxu0 0.0
        %1822 = vmatpush2.msra.mxu0 0.0
        %1823 = vmatprep.subr.mxu0 0.0
        %1824 = vmatpush2.msra.mxu0 0.0
        %1825 = vmatprep.subr.mxu0 0.0
        %1826 = vmatpush2.msra.mxu0 0.0
        %1827 = vmatprep.subr.mxu0 0.0
        %1828 = vmatpush2.msra.mxu0 0.0
        %1829 = vmatprep.subr.mxu0 0.0
        %1830 = vmatpush2.msra.mxu0 0.0
        %1831 = vmatprep.subr.mxu0 0.0
        %1832 = vmatpush2.msra.mxu0 0.0
        %1833 = vmatprep.subr.mxu0 0.0
        %1834 = vmatpush2.msra.mxu0 0.0
        %1835 = vmatprep.subr.mxu0 0.0
        %1836 = vmatpush2.msra.mxu0 0.0
        %1837 = vmatprep.subr.mxu0 0.0
        %1838 = vmatpush2.msra.mxu0 0.0
        %1839 = vmatprep.mubr.f32.mxu0 0.0
        %1840 = vmatmul.mubr.f32.gmra.mxu0 %v1770
        %v1841 = vpop.f32.mrf.mxu0
        %v1842 = vadd.f32 0.0, %v1841
        %v1843 = vpop.f32.mrf.mxu0
        %1844 = vmatprep.mubr.f32.mxu0 0.0
        %1845 = vmatmul.mubr.f32.gmra.mxu0 %v1773
        %v1846 = vpop.f32.mrf.mxu0
        %v1847 = vadd.f32 0.0, %v1846
        %v1848 = vpop.f32.mrf.mxu0
        %1849 = vdwg.mxu0
        %v1850 = vadd.f32 %v1565, %v1842
        %v1851 = vadd.f32 %v1566, %v1847
        %v1852 = vadd.f32 %v473, %v1850
        %v1853 = vadd.f32 %v474, %v1851
        %v1854 = vmul.f32 %v1852, %v1852
        %v1855 = vmul.f32 %v1853, %v1853
        %1856 = vadd.xlane.f32.xlu0 %v1854
        %v1857 = vpop.xlane.xlu0 %1856
        %1858 = vadd.xlane.f32.xlu0 %v1855
        %v1859 = vpop.xlane.xlu0 %1858
        %v1860 = vmul.f32 %v1857, %v488
        %v1861 = vmul.f32 %v1859, %v488
        %v1862 = vadd.f32 %v1860, 1e-06
        %v1863 = vadd.f32 %v1861, 1e-06
        %v1864 = vrsqrt.pop %v1862
        %v1865 = vrsqrt.pop %v1863
        %v1866 = vmul.f32 %v1852, %v1864
        %v1867 = vmul.f32 %v1853, %v1865
        %v1868 = vld [vmem:[%s5] sm:$0x1]
        %v1870 = vlaneseq
        %v1871 = vshrl.u32 %v1870, 7
        %v1872 = vsub.s32 0, %v1871
        %v1873 = vrot.slane %v1868, %v1872
        %v1875 = vmul.f32 %v1866, %v1873
        %v1876 = vmul.f32 %v1867, %v1873
        %v1877 = vld [vmem:[#allocation5] sm:$0xff]
        %v1878 = vld [vmem:[#allocation5 + $0x8] sm:$0xff]
        %v1879 = vld [vmem:[#allocation5 + $0x10] sm:$0xff]
        %v1880 = vld [vmem:[#allocation5 + $0x18] sm:$0xff]
        %v1881 = vld [vmem:[#allocation5 + $0x20] sm:$0xff]
        %v1882 = vld [vmem:[#allocation5 + $0x28] sm:$0xff]
        %v1883 = vld [vmem:[#allocation5 + $0x30] sm:$0xff]
        %v1884 = vld [vmem:[#allocation5 + $0x38] sm:$0xff]
        %v1885 = vld [vmem:[#allocation5 + $0x40] sm:$0xff]
        %v1886 = vld [vmem:[#allocation5 + $0x48] sm:$0xff]
        %v1887 = vld [vmem:[#allocation5 + $0x50] sm:$0xff]
        %v1888 = vld [vmem:[#allocation5 + $0x58] sm:$0xff]
        %v1889 = vld [vmem:[#allocation5 + $0x60] sm:$0xff]
        %v1890 = vld [vmem:[#allocation5 + $0x68] sm:$0xff]
        %v1891 = vld [vmem:[#allocation5 + $0x70] sm:$0xff]
        %v1892 = vld [vmem:[#allocation5 + $0x78] sm:$0xff]
        %v1893 = vld [vmem:[#allocation5 + $0x80] sm:$0xff]
        %v1894 = vld [vmem:[#allocation5 + $0x88] sm:$0xff]
        %v1895 = vld [vmem:[#allocation5 + $0x90] sm:$0xff]
        %v1896 = vld [vmem:[#allocation5 + $0x98] sm:$0xff]
        %v1897 = vld [vmem:[#allocation5 + $0xa0] sm:$0xff]
        %v1898 = vld [vmem:[#allocation5 + $0xa8] sm:$0xff]
        %v1899 = vld [vmem:[#allocation5 + $0xb0] sm:$0xff]
        %v1900 = vld [vmem:[#allocation5 + $0xb8] sm:$0xff]
        %v1901 = vld [vmem:[#allocation5 + $0xc0] sm:$0xff]
        %v1902 = vld [vmem:[#allocation5 + $0xc8] sm:$0xff]
        %v1903 = vld [vmem:[#allocation5 + $0xd0] sm:$0xff]
        %v1904 = vld [vmem:[#allocation5 + $0xd8] sm:$0xff]
        %v1905 = vld [vmem:[#allocation5 + $0xe0] sm:$0xff]
        %v1906 = vld [vmem:[#allocation5 + $0xe8] sm:$0xff]
        %v1907 = vld [vmem:[#allocation5 + $0xf0] sm:$0xff]
        %v1908 = vld [vmem:[#allocation5 + $0xf8] sm:$0xff]
        %v1909 = vld [vmem:[#allocation5 + $0x100] sm:$0xff]
        %v1910 = vld [vmem:[#allocation5 + $0x108] sm:$0xff]
        %v1911 = vld [vmem:[#allocation5 + $0x110] sm:$0xff]
        %v1912 = vld [vmem:[#allocation5 + $0x118] sm:$0xff]
        %v1913 = vld [vmem:[#allocation5 + $0x120] sm:$0xff]
        %v1914 = vld [vmem:[#allocation5 + $0x128] sm:$0xff]
        %v1915 = vld [vmem:[#allocation5 + $0x130] sm:$0xff]
        %v1916 = vld [vmem:[#allocation5 + $0x138] sm:$0xff]
        %v1917 = vld [vmem:[#allocation5 + $0x140] sm:$0xff]
        %v1918 = vld [vmem:[#allocation5 + $0x148] sm:$0xff]
        %v1919 = vld [vmem:[#allocation5 + $0x150] sm:$0xff]
        %v1920 = vld [vmem:[#allocation5 + $0x158] sm:$0xff]
        %v1921 = vld [vmem:[#allocation5 + $0x160] sm:$0xff]
        %v1922 = vld [vmem:[#allocation5 + $0x168] sm:$0xff]
        %v1923 = vld [vmem:[#allocation5 + $0x170] sm:$0xff]
        %v1924 = vld [vmem:[#allocation5 + $0x178] sm:$0xff]
        %v1925 = vld [vmem:[#allocation5 + $0x180] sm:$0xff]
        %v1926 = vld [vmem:[#allocation5 + $0x188] sm:$0xff]
        %v1927 = vld [vmem:[#allocation5 + $0x190] sm:$0xff]
        %v1928 = vld [vmem:[#allocation5 + $0x198] sm:$0xff]
        %v1929 = vld [vmem:[#allocation5 + $0x1a0] sm:$0xff]
        %v1930 = vld [vmem:[#allocation5 + $0x1a8] sm:$0xff]
        %v1931 = vld [vmem:[#allocation5 + $0x1b0] sm:$0xff]
        %v1932 = vld [vmem:[#allocation5 + $0x1b8] sm:$0xff]
        %v1933 = vld [vmem:[#allocation5 + $0x1c0] sm:$0xff]
        %v1934 = vld [vmem:[#allocation5 + $0x1c8] sm:$0xff]
        %v1935 = vld [vmem:[#allocation5 + $0x1d0] sm:$0xff]
        %v1936 = vld [vmem:[#allocation5 + $0x1d8] sm:$0xff]
        %v1937 = vld [vmem:[#allocation5 + $0x1e0] sm:$0xff]
        %v1938 = vld [vmem:[#allocation5 + $0x1e8] sm:$0xff]
        %v1939 = vld [vmem:[#allocation5 + $0x1f0] sm:$0xff]
        %v1940 = vld [vmem:[#allocation5 + $0x1f8] sm:$0xff]
        %1941 = vmatprep.subr.mxu0 %v1938
        %1942 = vmatpush1.msra.mxu0 %v1937
        %1943 = vmatprep.subr.mxu0 %v1934
        %1944 = vmatpush1.msra.mxu0 %v1933
        %1945 = vmatprep.subr.mxu0 %v1930
        %1946 = vmatpush1.msra.mxu0 %v1929
        %1947 = vmatprep.subr.mxu0 %v1926
        %1948 = vmatpush1.msra.mxu0 %v1925
        %1949 = vmatprep.subr.mxu0 %v1922
        %1950 = vmatpush1.msra.mxu0 %v1921
        %1951 = vmatprep.subr.mxu0 %v1918
        %1952 = vmatpush1.msra.mxu0 %v1917
        %1953 = vmatprep.subr.mxu0 %v1914
        %1954 = vmatpush1.msra.mxu0 %v1913
        %1955 = vmatprep.subr.mxu0 %v1910
        %1956 = vmatpush1.msra.mxu0 %v1909
        %1957 = vmatprep.subr.mxu0 %v1906
        %1958 = vmatpush1.msra.mxu0 %v1905
        %1959 = vmatprep.subr.mxu0 %v1902
        %1960 = vmatpush1.msra.mxu0 %v1901
        %1961 = vmatprep.subr.mxu0 %v1898
        %1962 = vmatpush1.msra.mxu0 %v1897
        %1963 = vmatprep.subr.mxu0 %v1894
        %1964 = vmatpush1.msra.mxu0 %v1893
        %1965 = vmatprep.subr.mxu0 %v1890
        %1966 = vmatpush1.msra.mxu0 %v1889
        %1967 = vmatprep.subr.mxu0 %v1886
        %1968 = vmatpush1.msra.mxu0 %v1885
        %1969 = vmatprep.subr.mxu0 %v1882
        %1970 = vmatpush1.msra.mxu0 %v1881
        %1971 = vmatprep.subr.mxu0 %v1878
        %1972 = vmatpush1.msra.mxu0 %v1877
        %1973 = vmatprep.subr.mxu0 0.0
        %1974 = vmatpush2.msra.mxu0 0.0
        %1975 = vmatprep.subr.mxu0 0.0
        %1976 = vmatpush2.msra.mxu0 0.0
        %1977 = vmatprep.subr.mxu0 0.0
        %1978 = vmatpush2.msra.mxu0 0.0
        %1979 = vmatprep.subr.mxu0 0.0
        %1980 = vmatpush2.msra.mxu0 0.0
        %1981 = vmatprep.subr.mxu0 0.0
        %1982 = vmatpush2.msra.mxu0 0.0
        %1983 = vmatprep.subr.mxu0 0.0
        %1984 = vmatpush2.msra.mxu0 0.0
        %1985 = vmatprep.subr.mxu0 0.0
        %1986 = vmatpush2.msra.mxu0 0.0
        %1987 = vmatprep.subr.mxu0 0.0
        %1988 = vmatpush2.msra.mxu0 0.0
        %1989 = vmatprep.subr.mxu0 0.0
        %1990 = vmatpush2.msra.mxu0 0.0
        %1991 = vmatprep.subr.mxu0 0.0
        %1992 = vmatpush2.msra.mxu0 0.0
        %1993 = vmatprep.subr.mxu0 0.0
        %1994 = vmatpush2.msra.mxu0 0.0
        %1995 = vmatprep.subr.mxu0 0.0
        %1996 = vmatpush2.msra.mxu0 0.0
        %1997 = vmatprep.subr.mxu0 0.0
        %1998 = vmatpush2.msra.mxu0 0.0
        %1999 = vmatprep.subr.mxu0 0.0
        %2000 = vmatpush2.msra.mxu0 0.0
        %2001 = vmatprep.subr.mxu0 0.0
        %2002 = vmatpush2.msra.mxu0 0.0
        %2003 = vmatprep.subr.mxu0 0.0
        %2004 = vmatpush2.msra.mxu0 0.0
        %2005 = vmatprep.mubr.f32.mxu0 0.0
        %2006 = vmatmul.mubr.f32.gmra.mxu0 %v1875
        %v2007 = vpop.f32.mrf.mxu0
        %v2008 = vadd.f32 0.0, %v2007
        %v2009 = vpop.f32.mrf.mxu0
        %v2010 = vadd.f32 0.0, %v2009
        %2011 = vmatprep.mubr.f32.mxu0 0.0
        %2012 = vmatmul.mubr.f32.gmra.mxu0 %v1876
        %v2013 = vpop.f32.mrf.mxu0
        %v2014 = vadd.f32 0.0, %v2013
        %v2015 = vpop.f32.mrf.mxu0
        %v2016 = vadd.f32 0.0, %v2015
        %2017 = vdwg.mxu0
        %2018 = vmatprep.subr.mxu0 %v1940
        %2019 = vmatpush1.msra.mxu0 %v1939
        %2020 = vmatprep.subr.mxu0 %v1936
        %2021 = vmatpush1.msra.mxu0 %v1935
        %2022 = vmatprep.subr.mxu0 %v1932
        %2023 = vmatpush1.msra.mxu0 %v1931
        %2024 = vmatprep.subr.mxu0 %v1928
        %2025 = vmatpush1.msra.mxu0 %v1927
        %2026 = vmatprep.subr.mxu0 %v1924
        %2027 = vmatpush1.msra.mxu0 %v1923
        %2028 = vmatprep.subr.mxu0 %v1920
        %2029 = vmatpush1.msra.mxu0 %v1919
        %2030 = vmatprep.subr.mxu0 %v1916
        %2031 = vmatpush1.msra.mxu0 %v1915
        %2032 = vmatprep.subr.mxu0 %v1912
        %2033 = vmatpush1.msra.mxu0 %v1911
        %2034 = vmatprep.subr.mxu0 %v1908
        %2035 = vmatpush1.msra.mxu0 %v1907
        %2036 = vmatprep.subr.mxu0 %v1904
        %2037 = vmatpush1.msra.mxu0 %v1903
        %2038 = vmatprep.subr.mxu0 %v1900
        %2039 = vmatpush1.msra.mxu0 %v1899
        %2040 = vmatprep.subr.mxu0 %v1896
        %2041 = vmatpush1.msra.mxu0 %v1895
        %2042 = vmatprep.subr.mxu0 %v1892
        %2043 = vmatpush1.msra.mxu0 %v1891
        %2044 = vmatprep.subr.mxu0 %v1888
        %2045 = vmatpush1.msra.mxu0 %v1887
        %2046 = vmatprep.subr.mxu0 %v1884
        %2047 = vmatpush1.msra.mxu0 %v1883
        %2048 = vmatprep.subr.mxu0 %v1880
        %2049 = vmatpush1.msra.mxu0 %v1879
        %2050 = vmatprep.subr.mxu0 0.0
        %2051 = vmatpush2.msra.mxu0 0.0
        %2052 = vmatprep.subr.mxu0 0.0
        %2053 = vmatpush2.msra.mxu0 0.0
        %2054 = vmatprep.subr.mxu0 0.0
        %2055 = vmatpush2.msra.mxu0 0.0
        %2056 = vmatprep.subr.mxu0 0.0
        %2057 = vmatpush2.msra.mxu0 0.0
        %2058 = vmatprep.subr.mxu0 0.0
        %2059 = vmatpush2.msra.mxu0 0.0
        %2060 = vmatprep.subr.mxu0 0.0
        %2061 = vmatpush2.msra.mxu0 0.0
        %2062 = vmatprep.subr.mxu0 0.0
        %2063 = vmatpush2.msra.mxu0 0.0
        %2064 = vmatprep.subr.mxu0 0.0
        %2065 = vmatpush2.msra.mxu0 0.0
        %2066 = vmatprep.subr.mxu0 0.0
        %2067 = vmatpush2.msra.mxu0 0.0
        %2068 = vmatprep.subr.mxu0 0.0
        %2069 = vmatpush2.msra.mxu0 0.0
        %2070 = vmatprep.subr.mxu0 0.0
        %2071 = vmatpush2.msra.mxu0 0.0
        %2072 = vmatprep.subr.mxu0 0.0
        %2073 = vmatpush2.msra.mxu0 0.0
        %2074 = vmatprep.subr.mxu0 0.0
        %2075 = vmatpush2.msra.mxu0 0.0
        %2076 = vmatprep.subr.mxu0 0.0
        %2077 = vmatpush2.msra.mxu0 0.0
        %2078 = vmatprep.subr.mxu0 0.0
        %2079 = vmatpush2.msra.mxu0 0.0
        %2080 = vmatprep.subr.mxu0 0.0
        %2081 = vmatpush2.msra.mxu0 0.0
        %2082 = vmatprep.mubr.f32.mxu0 0.0
        %2083 = vmatmul.mubr.f32.gmra.mxu0 %v1875
        %v2084 = vpop.f32.mrf.mxu0
        %v2085 = vadd.f32 0.0, %v2084
        %v2086 = vpop.f32.mrf.mxu0
        %v2087 = vadd.f32 0.0, %v2086
        %2088 = vmatprep.mubr.f32.mxu0 0.0
        %2089 = vmatmul.mubr.f32.gmra.mxu0 %v1876
        %v2090 = vpop.f32.mrf.mxu0
        %v2091 = vadd.f32 0.0, %v2090
        %v2092 = vpop.f32.mrf.mxu0
        %v2093 = vadd.f32 0.0, %v2092
        %2094 = vdwg.mxu0
        %v2095 = vxor.u32 %v2008, 2147483648
        %v2096 = vxor.u32 %v2010, 2147483648
        %v2097 = vxor.u32 %v2014, 2147483648
        %v2098 = vxor.u32 %v2016, 2147483648
        %v2099 = vmul.f32 %v2095, 1.442695
        %v2100 = vpow.pop %v2099
        %v2101 = vmul.f32 %v2096, 1.442695
        %v2102 = vpow.pop %v2101
        %v2103 = vmul.f32 %v2097, 1.442695
        %v2104 = vpow.pop %v2103
        %v2105 = vmul.f32 %v2098, 1.442695
        %v2106 = vpow.pop %v2105
        %v2107 = vadd.f32 %v2100, 1.0
        %v2108 = vadd.f32 %v2102, 1.0
        %v2109 = vadd.f32 %v2104, 1.0
        %v2110 = vadd.f32 %v2106, 1.0
        %v2111 = vrcp.pop %v2107
        %v2112 = vmul.f32 1.0, %v2111
        %v2113 = vrcp.pop %v2108
        %v2114 = vmul.f32 1.0, %v2113
        %v2115 = vrcp.pop %v2109
        %v2116 = vmul.f32 1.0, %v2115
        %v2117 = vrcp.pop %v2110
        %v2118 = vmul.f32 1.0, %v2117
        %v2119 = vmul.f32 %v2008, %v2112
        %v2120 = vmul.f32 %v2010, %v2114
        %v2121 = vmul.f32 %v2014, %v2116
        %v2122 = vmul.f32 %v2016, %v2118
        %v2123 = vmul.f32 %v2119, %v2085
        %v2124 = vmul.f32 %v2120, %v2087
        %v2125 = vmul.f32 %v2121, %v2091
        %v2126 = vmul.f32 %v2122, %v2093
        %v2127 = vld [vmem:[#allocation7] sm:$0xff]
        %v2128 = vld [vmem:[#allocation7 + $0x8] sm:$0xff]
        %v2129 = vld [vmem:[#allocation7 + $0x10] sm:$0xff]
        %v2130 = vld [vmem:[#allocation7 + $0x18] sm:$0xff]
        %v2131 = vld [vmem:[#allocation7 + $0x20] sm:$0xff]
        %v2132 = vld [vmem:[#allocation7 + $0x28] sm:$0xff]
        %v2133 = vld [vmem:[#allocation7 + $0x30] sm:$0xff]
        %v2134 = vld [vmem:[#allocation7 + $0x38] sm:$0xff]
        %v2135 = vld [vmem:[#allocation7 + $0x40] sm:$0xff]
        %v2136 = vld [vmem:[#allocation7 + $0x48] sm:$0xff]
        %v2137 = vld [vmem:[#allocation7 + $0x50] sm:$0xff]
        %v2138 = vld [vmem:[#allocation7 + $0x58] sm:$0xff]
        %v2139 = vld [vmem:[#allocation7 + $0x60] sm:$0xff]
        %v2140 = vld [vmem:[#allocation7 + $0x68] sm:$0xff]
        %v2141 = vld [vmem:[#allocation7 + $0x70] sm:$0xff]
        %v2142 = vld [vmem:[#allocation7 + $0x78] sm:$0xff]
        %v2143 = vld [vmem:[#allocation7 + $0x80] sm:$0xff]
        %v2144 = vld [vmem:[#allocation7 + $0x88] sm:$0xff]
        %v2145 = vld [vmem:[#allocation7 + $0x90] sm:$0xff]
        %v2146 = vld [vmem:[#allocation7 + $0x98] sm:$0xff]
        %v2147 = vld [vmem:[#allocation7 + $0xa0] sm:$0xff]
        %v2148 = vld [vmem:[#allocation7 + $0xa8] sm:$0xff]
        %v2149 = vld [vmem:[#allocation7 + $0xb0] sm:$0xff]
        %v2150 = vld [vmem:[#allocation7 + $0xb8] sm:$0xff]
        %v2151 = vld [vmem:[#allocation7 + $0xc0] sm:$0xff]
        %v2152 = vld [vmem:[#allocation7 + $0xc8] sm:$0xff]
        %v2153 = vld [vmem:[#allocation7 + $0xd0] sm:$0xff]
        %v2154 = vld [vmem:[#allocation7 + $0xd8] sm:$0xff]
        %v2155 = vld [vmem:[#allocation7 + $0xe0] sm:$0xff]
        %v2156 = vld [vmem:[#allocation7 + $0xe8] sm:$0xff]
        %v2157 = vld [vmem:[#allocation7 + $0xf0] sm:$0xff]
        %v2158 = vld [vmem:[#allocation7 + $0xf8] sm:$0xff]
        %2159 = vmatprep.subr.mxu0 0.0
        %2160 = vmatpush1.msra.mxu0 %v2142
        %2161 = vmatprep.subr.mxu0 0.0
        %2162 = vmatpush1.msra.mxu0 %v2141
        %2163 = vmatprep.subr.mxu0 0.0
        %2164 = vmatpush1.msra.mxu0 %v2140
        %2165 = vmatprep.subr.mxu0 0.0
        %2166 = vmatpush1.msra.mxu0 %v2139
        %2167 = vmatprep.subr.mxu0 0.0
        %2168 = vmatpush1.msra.mxu0 %v2138
        %2169 = vmatprep.subr.mxu0 0.0
        %2170 = vmatpush1.msra.mxu0 %v2137
        %2171 = vmatprep.subr.mxu0 0.0
        %2172 = vmatpush1.msra.mxu0 %v2136
        %2173 = vmatprep.subr.mxu0 0.0
        %2174 = vmatpush1.msra.mxu0 %v2135
        %2175 = vmatprep.subr.mxu0 0.0
        %2176 = vmatpush1.msra.mxu0 %v2134
        %2177 = vmatprep.subr.mxu0 0.0
        %2178 = vmatpush1.msra.mxu0 %v2133
        %2179 = vmatprep.subr.mxu0 0.0
        %2180 = vmatpush1.msra.mxu0 %v2132
        %2181 = vmatprep.subr.mxu0 0.0
        %2182 = vmatpush1.msra.mxu0 %v2131
        %2183 = vmatprep.subr.mxu0 0.0
        %2184 = vmatpush1.msra.mxu0 %v2130
        %2185 = vmatprep.subr.mxu0 0.0
        %2186 = vmatpush1.msra.mxu0 %v2129
        %2187 = vmatprep.subr.mxu0 0.0
        %2188 = vmatpush1.msra.mxu0 %v2128
        %2189 = vmatprep.subr.mxu0 0.0
        %2190 = vmatpush1.msra.mxu0 %v2127
        %2191 = vmatprep.subr.mxu0 0.0
        %2192 = vmatpush2.msra.mxu0 %v2158
        %2193 = vmatprep.subr.mxu0 0.0
        %2194 = vmatpush2.msra.mxu0 %v2157
        %2195 = vmatprep.subr.mxu0 0.0
        %2196 = vmatpush2.msra.mxu0 %v2156
        %2197 = vmatprep.subr.mxu0 0.0
        %2198 = vmatpush2.msra.mxu0 %v2155
        %2199 = vmatprep.subr.mxu0 0.0
        %2200 = vmatpush2.msra.mxu0 %v2154
        %2201 = vmatprep.subr.mxu0 0.0
        %2202 = vmatpush2.msra.mxu0 %v2153
        %2203 = vmatprep.subr.mxu0 0.0
        %2204 = vmatpush2.msra.mxu0 %v2152
        %2205 = vmatprep.subr.mxu0 0.0
        %2206 = vmatpush2.msra.mxu0 %v2151
        %2207 = vmatprep.subr.mxu0 0.0
        %2208 = vmatpush2.msra.mxu0 %v2150
        %2209 = vmatprep.subr.mxu0 0.0
        %2210 = vmatpush2.msra.mxu0 %v2149
        %2211 = vmatprep.subr.mxu0 0.0
        %2212 = vmatpush2.msra.mxu0 %v2148
        %2213 = vmatprep.subr.mxu0 0.0
        %2214 = vmatpush2.msra.mxu0 %v2147
        %2215 = vmatprep.subr.mxu0 0.0
        %2216 = vmatpush2.msra.mxu0 %v2146
        %2217 = vmatprep.subr.mxu0 0.0
        %2218 = vmatpush2.msra.mxu0 %v2145
        %2219 = vmatprep.subr.mxu0 0.0
        %2220 = vmatpush2.msra.mxu0 %v2144
        %2221 = vmatprep.subr.mxu0 0.0
        %2222 = vmatpush2.msra.mxu0 %v2143
        %2223 = vmatprep.mubr.f32.mxu0 %v2124
        %2224 = vmatmul.mubr.f32.gmra.mxu0 %v2123
        %v2225 = vpop.f32.mrf.mxu0
        %v2226 = vadd.f32 0.0, %v2225
        %v2227 = vpop.f32.mrf.mxu0
        %2228 = vmatprep.mubr.f32.mxu0 %v2126
        %2229 = vmatmul.mubr.f32.gmra.mxu0 %v2125
        %v2230 = vpop.f32.mrf.mxu0
        %v2231 = vadd.f32 0.0, %v2230
        %v2232 = vpop.f32.mrf.mxu0
        %2233 = vdwg.mxu0
        %v2234 = vadd.f32 %v1852, %v2226
        %v2235 = vadd.f32 %v1853, %v2231
        %v2236 = vmul.f32 %v2234, %v2234
        %v2237 = vmul.f32 %v2235, %v2235
        %2238 = vadd.xlane.f32.xlu0 %v2236
        %v2239 = vpop.xlane.xlu0 %2238
        %2240 = vadd.xlane.f32.xlu0 %v2237
        %v2241 = vpop.xlane.xlu0 %2240
        %v2242 = vmul.f32 %v2239, %v488
        %v2243 = vmul.f32 %v2241, %v488
        %v2244 = vadd.f32 %v2242, 1e-06
        %v2245 = vadd.f32 %v2243, 1e-06
        %v2246 = vrsqrt.pop %v2244
        %v2247 = vrsqrt.pop %v2245
        %v2248 = vmul.f32 %v2234, %v2246
        %v2249 = vmul.f32 %v2235, %v2247
        %s2250 = scalar_lea.vmem %s2, 1
        %v2251 = vld [vmem:[%s2250] sm:$0x1]
        %v2253 = vlaneseq
        %v2254 = vshrl.u32 %v2253, 7
        %v2255 = vsub.s32 0, %v2254
        %v2256 = vrot.slane %v2251, %v2255
        %v2258 = vmul.f32 %v2248, %v2256
        %v2259 = vmul.f32 %v2249, %v2256
        %s2260 = scalar_lea.vmem [#allocation2], 384
        %v2261 = vld [vmem:[%s2260] sm:$0xff]
        %v2262 = vld [vmem:[%s2260 + $0x8] sm:$0xff]
        %v2263 = vld [vmem:[%s2260 + $0x10] sm:$0xff]
        %v2264 = vld [vmem:[%s2260 + $0x18] sm:$0xff]
        %v2265 = vld [vmem:[%s2260 + $0x20] sm:$0xff]
        %v2266 = vld [vmem:[%s2260 + $0x28] sm:$0xff]
        %v2267 = vld [vmem:[%s2260 + $0x30] sm:$0xff]
        %v2268 = vld [vmem:[%s2260 + $0x38] sm:$0xff]
        %v2269 = vld [vmem:[%s2260 + $0x40] sm:$0xff]
        %v2270 = vld [vmem:[%s2260 + $0x48] sm:$0xff]
        %v2271 = vld [vmem:[%s2260 + $0x50] sm:$0xff]
        %v2272 = vld [vmem:[%s2260 + $0x58] sm:$0xff]
        %v2273 = vld [vmem:[%s2260 + $0x60] sm:$0xff]
        %v2274 = vld [vmem:[%s2260 + $0x68] sm:$0xff]
        %v2275 = vld [vmem:[%s2260 + $0x70] sm:$0xff]
        %v2276 = vld [vmem:[%s2260 + $0x78] sm:$0xff]
        %v2277 = vld [vmem:[%s2260 + $0x80] sm:$0xff]
        %v2278 = vld [vmem:[%s2260 + $0x88] sm:$0xff]
        %v2279 = vld [vmem:[%s2260 + $0x90] sm:$0xff]
        %v2280 = vld [vmem:[%s2260 + $0x98] sm:$0xff]
        %v2281 = vld [vmem:[%s2260 + $0xa0] sm:$0xff]
        %v2282 = vld [vmem:[%s2260 + $0xa8] sm:$0xff]
        %v2283 = vld [vmem:[%s2260 + $0xb0] sm:$0xff]
        %v2284 = vld [vmem:[%s2260 + $0xb8] sm:$0xff]
        %v2285 = vld [vmem:[%s2260 + $0xc0] sm:$0xff]
        %v2286 = vld [vmem:[%s2260 + $0xc8] sm:$0xff]
        %v2287 = vld [vmem:[%s2260 + $0xd0] sm:$0xff]
        %v2288 = vld [vmem:[%s2260 + $0xd8] sm:$0xff]
        %v2289 = vld [vmem:[%s2260 + $0xe0] sm:$0xff]
        %v2290 = vld [vmem:[%s2260 + $0xe8] sm:$0xff]
        %v2291 = vld [vmem:[%s2260 + $0xf0] sm:$0xff]
        %v2292 = vld [vmem:[%s2260 + $0xf8] sm:$0xff]
        %v2293 = vld [vmem:[%s2260 + $0x100] sm:$0xff]
        %v2294 = vld [vmem:[%s2260 + $0x108] sm:$0xff]
        %v2295 = vld [vmem:[%s2260 + $0x110] sm:$0xff]
        %v2296 = vld [vmem:[%s2260 + $0x118] sm:$0xff]
        %v2297 = vld [vmem:[%s2260 + $0x120] sm:$0xff]
        %v2298 = vld [vmem:[%s2260 + $0x128] sm:$0xff]
        %v2299 = vld [vmem:[%s2260 + $0x130] sm:$0xff]
        %v2300 = vld [vmem:[%s2260 + $0x138] sm:$0xff]
        %v2301 = vld [vmem:[%s2260 + $0x140] sm:$0xff]
        %v2302 = vld [vmem:[%s2260 + $0x148] sm:$0xff]
        %v2303 = vld [vmem:[%s2260 + $0x150] sm:$0xff]
        %v2304 = vld [vmem:[%s2260 + $0x158] sm:$0xff]
        %v2305 = vld [vmem:[%s2260 + $0x160] sm:$0xff]
        %v2306 = vld [vmem:[%s2260 + $0x168] sm:$0xff]
        %v2307 = vld [vmem:[%s2260 + $0x170] sm:$0xff]
        %v2308 = vld [vmem:[%s2260 + $0x178] sm:$0xff]
        %2309 = vmatprep.subr.mxu0 %v2307
        %2310 = vmatpush1.msra.mxu0 %v2306
        %2311 = vmatprep.subr.mxu0 %v2304
        %2312 = vmatpush1.msra.mxu0 %v2303
        %2313 = vmatprep.subr.mxu0 %v2301
        %2314 = vmatpush1.msra.mxu0 %v2300
        %2315 = vmatprep.subr.mxu0 %v2298
        %2316 = vmatpush1.msra.mxu0 %v2297
        %2317 = vmatprep.subr.mxu0 %v2295
        %2318 = vmatpush1.msra.mxu0 %v2294
        %2319 = vmatprep.subr.mxu0 %v2292
        %2320 = vmatpush1.msra.mxu0 %v2291
        %2321 = vmatprep.subr.mxu0 %v2289
        %2322 = vmatpush1.msra.mxu0 %v2288
        %2323 = vmatprep.subr.mxu0 %v2286
        %2324 = vmatpush1.msra.mxu0 %v2285
        %2325 = vmatprep.subr.mxu0 %v2283
        %2326 = vmatpush1.msra.mxu0 %v2282
        %2327 = vmatprep.subr.mxu0 %v2280
        %2328 = vmatpush1.msra.mxu0 %v2279
        %2329 = vmatprep.subr.mxu0 %v2277
        %2330 = vmatpush1.msra.mxu0 %v2276
        %2331 = vmatprep.subr.mxu0 %v2274
        %2332 = vmatpush1.msra.mxu0 %v2273
        %2333 = vmatprep.subr.mxu0 %v2271
        %2334 = vmatpush1.msra.mxu0 %v2270
        %2335 = vmatprep.subr.mxu0 %v2268
        %2336 = vmatpush1.msra.mxu0 %v2267
        %2337 = vmatprep.subr.mxu0 %v2265
        %2338 = vmatpush1.msra.mxu0 %v2264
        %2339 = vmatprep.subr.mxu0 %v2262
        %2340 = vmatpush1.msra.mxu0 %v2261
        %2341 = vmatprep.subr.mxu0 0.0
        %2342 = vmatpush2.msra.mxu0 0.0
        %2343 = vmatprep.subr.mxu0 0.0
        %2344 = vmatpush2.msra.mxu0 0.0
        %2345 = vmatprep.subr.mxu0 0.0
        %2346 = vmatpush2.msra.mxu0 0.0
        %2347 = vmatprep.subr.mxu0 0.0
        %2348 = vmatpush2.msra.mxu0 0.0
        %2349 = vmatprep.subr.mxu0 0.0
        %2350 = vmatpush2.msra.mxu0 0.0
        %2351 = vmatprep.subr.mxu0 0.0
        %2352 = vmatpush2.msra.mxu0 0.0
        %2353 = vmatprep.subr.mxu0 0.0
        %2354 = vmatpush2.msra.mxu0 0.0
        %2355 = vmatprep.subr.mxu0 0.0
        %2356 = vmatpush2.msra.mxu0 0.0
        %2357 = vmatprep.subr.mxu0 0.0
        %2358 = vmatpush2.msra.mxu0 0.0
        %2359 = vmatprep.subr.mxu0 0.0
        %2360 = vmatpush2.msra.mxu0 0.0
        %2361 = vmatprep.subr.mxu0 0.0
        %2362 = vmatpush2.msra.mxu0 0.0
        %2363 = vmatprep.subr.mxu0 0.0
        %2364 = vmatpush2.msra.mxu0 0.0
        %2365 = vmatprep.subr.mxu0 0.0
        %2366 = vmatpush2.msra.mxu0 0.0
        %2367 = vmatprep.subr.mxu0 0.0
        %2368 = vmatpush2.msra.mxu0 0.0
        %2369 = vmatprep.subr.mxu0 0.0
        %2370 = vmatpush2.msra.mxu0 0.0
        %2371 = vmatprep.subr.mxu0 0.0
        %2372 = vmatpush2.msra.mxu0 0.0
        %2373 = vmatprep.mubr.f32.mxu0 0.0
        %2374 = vmatmul.mubr.f32.gmra.mxu0 %v2258
        %v2375 = vpop.f32.mrf.mxu0
        %v2376 = vadd.f32 0.0, %v2375
        %v2377 = vpop.f32.mrf.mxu0
        %v2378 = vadd.f32 0.0, %v2377
        %2379 = vmatprep.mubr.f32.mxu0 0.0
        %2380 = vmatmul.mubr.f32.gmra.mxu0 %v2259
        %v2381 = vpop.f32.mrf.mxu0
        %v2382 = vadd.f32 0.0, %v2381
        %v2383 = vpop.f32.mrf.mxu0
        %v2384 = vadd.f32 0.0, %v2383
        %2385 = vdwg.mxu0
        %2386 = vmatprep.subr.mxu0 0.0
        %2387 = vmatpush1.msra.mxu0 %v2308
        %2388 = vmatprep.subr.mxu0 0.0
        %2389 = vmatpush1.msra.mxu0 %v2305
        %2390 = vmatprep.subr.mxu0 0.0
        %2391 = vmatpush1.msra.mxu0 %v2302
        %2392 = vmatprep.subr.mxu0 0.0
        %2393 = vmatpush1.msra.mxu0 %v2299
        %2394 = vmatprep.subr.mxu0 0.0
        %2395 = vmatpush1.msra.mxu0 %v2296
        %2396 = vmatprep.subr.mxu0 0.0
        %2397 = vmatpush1.msra.mxu0 %v2293
        %2398 = vmatprep.subr.mxu0 0.0
        %2399 = vmatpush1.msra.mxu0 %v2290
        %2400 = vmatprep.subr.mxu0 0.0
        %2401 = vmatpush1.msra.mxu0 %v2287
        %2402 = vmatprep.subr.mxu0 0.0
        %2403 = vmatpush1.msra.mxu0 %v2284
        %2404 = vmatprep.subr.mxu0 0.0
        %2405 = vmatpush1.msra.mxu0 %v2281
        %2406 = vmatprep.subr.mxu0 0.0
        %2407 = vmatpush1.msra.mxu0 %v2278
        %2408 = vmatprep.subr.mxu0 0.0
        %2409 = vmatpush1.msra.mxu0 %v2275
        %2410 = vmatprep.subr.mxu0 0.0
        %2411 = vmatpush1.msra.mxu0 %v2272
        %2412 = vmatprep.subr.mxu0 0.0
        %2413 = vmatpush1.msra.mxu0 %v2269
        %2414 = vmatprep.subr.mxu0 0.0
        %2415 = vmatpush1.msra.mxu0 %v2266
        %2416 = vmatprep.subr.mxu0 0.0
        %2417 = vmatpush1.msra.mxu0 %v2263
        %2418 = vmatprep.subr.mxu0 0.0
        %2419 = vmatpush2.msra.mxu0 0.0
        %2420 = vmatprep.subr.mxu0 0.0
        %2421 = vmatpush2.msra.mxu0 0.0
        %2422 = vmatprep.subr.mxu0 0.0
        %2423 = vmatpush2.msra.mxu0 0.0
        %2424 = vmatprep.subr.mxu0 0.0
        %2425 = vmatpush2.msra.mxu0 0.0
        %2426 = vmatprep.subr.mxu0 0.0
        %2427 = vmatpush2.msra.mxu0 0.0
        %2428 = vmatprep.subr.mxu0 0.0
        %2429 = vmatpush2.msra.mxu0 0.0
        %2430 = vmatprep.subr.mxu0 0.0
        %2431 = vmatpush2.msra.mxu0 0.0
        %2432 = vmatprep.subr.mxu0 0.0
        %2433 = vmatpush2.msra.mxu0 0.0
        %2434 = vmatprep.subr.mxu0 0.0
        %2435 = vmatpush2.msra.mxu0 0.0
        %2436 = vmatprep.subr.mxu0 0.0
        %2437 = vmatpush2.msra.mxu0 0.0
        %2438 = vmatprep.subr.mxu0 0.0
        %2439 = vmatpush2.msra.mxu0 0.0
        %2440 = vmatprep.subr.mxu0 0.0
        %2441 = vmatpush2.msra.mxu0 0.0
        %2442 = vmatprep.subr.mxu0 0.0
        %2443 = vmatpush2.msra.mxu0 0.0
        %2444 = vmatprep.subr.mxu0 0.0
        %2445 = vmatpush2.msra.mxu0 0.0
        %2446 = vmatprep.subr.mxu0 0.0
        %2447 = vmatpush2.msra.mxu0 0.0
        %2448 = vmatprep.subr.mxu0 0.0
        %2449 = vmatpush2.msra.mxu0 0.0
        %2450 = vmatprep.mubr.f32.mxu0 0.0
        %2451 = vmatmul.mubr.f32.gmra.mxu0 %v2258
        %v2452 = vpop.f32.mrf.mxu0
        %v2453 = vadd.f32 0.0, %v2452
        %v2454 = vpop.f32.mrf.mxu0
        %2455 = vmatprep.mubr.f32.mxu0 0.0
        %2456 = vmatmul.mubr.f32.gmra.mxu0 %v2259
        %v2457 = vpop.f32.mrf.mxu0
        %v2458 = vadd.f32 0.0, %v2457
        %v2459 = vpop.f32.mrf.mxu0
        %2460 = vdwg.mxu0
        %s2461 = scalar_lea.vmem %s4, 128
        %v2462 = vld [vmem:[%s2461] sm:$0xff]
        %v2463 = vld [vmem:[%s2461 + $0x8] sm:$0xff]
        %v2464 = vld [vmem:[%s2461 + $0x10] sm:$0xff]
        %v2465 = vld [vmem:[%s2461 + $0x18] sm:$0xff]
        %v2466 = vld [vmem:[%s2461 + $0x20] sm:$0xff]
        %v2467 = vld [vmem:[%s2461 + $0x28] sm:$0xff]
        %v2468 = vld [vmem:[%s2461 + $0x30] sm:$0xff]
        %v2469 = vld [vmem:[%s2461 + $0x38] sm:$0xff]
        %v2470 = vld [vmem:[%s2461 + $0x40] sm:$0xff]
        %v2471 = vld [vmem:[%s2461 + $0x48] sm:$0xff]
        %v2472 = vld [vmem:[%s2461 + $0x50] sm:$0xff]
        %v2473 = vld [vmem:[%s2461 + $0x58] sm:$0xff]
        %v2474 = vld [vmem:[%s2461 + $0x60] sm:$0xff]
        %v2475 = vld [vmem:[%s2461 + $0x68] sm:$0xff]
        %v2476 = vld [vmem:[%s2461 + $0x70] sm:$0xff]
        %v2477 = vld [vmem:[%s2461 + $0x78] sm:$0xff]
        %v2479 = vsel %vm722, %v2376, 0
        %v2482 = vsel %vm722, %v2382, 0
        %v2485 = vsel %vm722, %v2378, 0
        %v2488 = vsel %vm722, %v2384, 0
        %2490 = vmatprep.subr.mxu0 0.0
        %2491 = vmatpush1.xpose.msra.mxu0 0.0
        %2492 = vmatprep.subr.mxu0 0.0
        %2493 = vmatpush1.xpose.msra.mxu0 0.0
        %2494 = vmatprep.subr.mxu0 0.0
        %2495 = vmatpush1.xpose.msra.mxu0 0.0
        %2496 = vmatprep.subr.mxu0 0.0
        %2497 = vmatpush1.xpose.msra.mxu0 0.0
        %2498 = vmatprep.subr.mxu0 0.0
        %2499 = vmatpush1.xpose.msra.mxu0 0.0
        %2500 = vmatprep.subr.mxu0 0.0
        %2501 = vmatpush1.xpose.msra.mxu0 0.0
        %2502 = vmatprep.subr.mxu0 0.0
        %2503 = vmatpush1.xpose.msra.mxu0 0.0
        %2504 = vmatprep.subr.mxu0 0.0
        %2505 = vmatpush1.xpose.msra.mxu0 0.0
        %2506 = vmatprep.subr.mxu0 0.0
        %2507 = vmatpush1.xpose.msra.mxu0 0.0
        %2508 = vmatprep.subr.mxu0 0.0
        %2509 = vmatpush1.xpose.msra.mxu0 0.0
        %2510 = vmatprep.subr.mxu0 0.0
        %2511 = vmatpush1.xpose.msra.mxu0 0.0
        %2512 = vmatprep.subr.mxu0 0.0
        %2513 = vmatpush1.xpose.msra.mxu0 0.0
        %2514 = vmatprep.subr.mxu0 0.0
        %2515 = vmatpush1.xpose.msra.mxu0 0.0
        %2516 = vmatprep.subr.mxu0 0.0
        %2517 = vmatpush1.xpose.msra.mxu0 0.0
        %2518 = vmatprep.subr.mxu0 0.0
        %2519 = vmatpush1.xpose.msra.mxu0 %v2488
        %2520 = vmatprep.subr.mxu0 0.0
        %2521 = vmatpush1.xpose.msra.mxu0 %v2485
        %2522 = vmatprep.subr.mxu0 0.0
        %2523 = vmatpush2.xpose.msra.mxu0 0.0
        %2524 = vmatprep.subr.mxu0 0.0
        %2525 = vmatpush2.xpose.msra.mxu0 0.0
        %2526 = vmatprep.subr.mxu0 0.0
        %2527 = vmatpush2.xpose.msra.mxu0 0.0
        %2528 = vmatprep.subr.mxu0 0.0
        %2529 = vmatpush2.xpose.msra.mxu0 0.0
        %2530 = vmatprep.subr.mxu0 0.0
        %2531 = vmatpush2.xpose.msra.mxu0 0.0
        %2532 = vmatprep.subr.mxu0 0.0
        %2533 = vmatpush2.xpose.msra.mxu0 0.0
        %2534 = vmatprep.subr.mxu0 0.0
        %2535 = vmatpush2.xpose.msra.mxu0 0.0
        %2536 = vmatprep.subr.mxu0 0.0
        %2537 = vmatpush2.xpose.msra.mxu0 0.0
        %2538 = vmatprep.subr.mxu0 0.0
        %2539 = vmatpush2.xpose.msra.mxu0 0.0
        %2540 = vmatprep.subr.mxu0 0.0
        %2541 = vmatpush2.xpose.msra.mxu0 0.0
        %2542 = vmatprep.subr.mxu0 0.0
        %2543 = vmatpush2.xpose.msra.mxu0 0.0
        %2544 = vmatprep.subr.mxu0 0.0
        %2545 = vmatpush2.xpose.msra.mxu0 0.0
        %2546 = vmatprep.subr.mxu0 0.0
        %2547 = vmatpush2.xpose.msra.mxu0 0.0
        %2548 = vmatprep.subr.mxu0 0.0
        %2549 = vmatpush2.xpose.msra.mxu0 0.0
        %2550 = vmatprep.subr.mxu0 0.0
        %2551 = vmatpush2.xpose.msra.mxu0 0.0
        %2552 = vmatprep.subr.mxu0 0.0
        %2553 = vmatpush2.xpose.msra.mxu0 0.0
        %2554 = vmatprep.mubr.f32.mxu0 0.0
        %2555 = vmatmul.mubr.f32.gmra.mxu0 %v2479
        %v2556 = vpop.f32.mrf.mxu0
        %v2557 = vadd.f32 0.0, %v2556
        %v2558 = vpop.f32.mrf.mxu0
        %2559 = vmatprep.mubr.f32.mxu0 0.0
        %2560 = vmatmul.mubr.f32.gmra.mxu0 %v2482
        %v2561 = vpop.f32.mrf.mxu0
        %v2562 = vadd.f32 0.0, %v2561
        %v2563 = vpop.f32.mrf.mxu0
        %2564 = vdwg.mxu0
        %v2565 = vsel %vm480, %v2557, -1e+30
        %v2566 = vsel %vm481, %v2562, -1e+30
        %v2567 = vsel %vm812, %v2565, -inf
        %2568 = vmax.xlane.f32.xlu0 %v2567
        %v2569 = vpop.xlane.xlu0 %2568
        %v2570 = vsel %vm812, %v2566, -inf
        %2571 = vmax.xlane.f32.xlu0 %v2570
        %v2572 = vpop.xlane.xlu0 %2571
        %v2573 = vsub.f32 %v2565, %v2569
        %v2574 = vsub.f32 %v2566, %v2572
        %v2575 = vmul.f32 %v2573, 1.442695
        %v2576 = vpow.pop %v2575
        %v2577 = vmul.f32 %v2574, 1.442695
        %v2578 = vpow.pop %v2577
        %v2579 = vsel %vm812, %v2576, 0.0
        %2580 = vadd.xlane.f32.xlu0 %v2579
        %v2581 = vpop.xlane.xlu0 %2580
        %v2582 = vsel %vm812, %v2578, 0.0
        %2583 = vadd.xlane.f32.xlu0 %v2582
        %v2584 = vpop.xlane.xlu0 %2583
        %v2585 = vrcp.pop %v2581
        %v2586 = vrcp.pop %v2584
        %v2587 = vmul.f32 %v2576, %v2585
        %v2588 = vmul.f32 %v2578, %v2586
        %v2590 = vsel %vm812, %v2587, 0
        %v2593 = vsel %vm812, %v2588, 0
        %2595 = vmatprep.subr.mxu0 0.0
        %2596 = vmatpush1.msra.mxu0 0.0
        %2597 = vmatprep.subr.mxu0 0.0
        %2598 = vmatpush1.msra.mxu0 0.0
        %2599 = vmatprep.subr.mxu0 0.0
        %2600 = vmatpush1.msra.mxu0 0.0
        %2601 = vmatprep.subr.mxu0 0.0
        %2602 = vmatpush1.msra.mxu0 0.0
        %2603 = vmatprep.subr.mxu0 0.0
        %2604 = vmatpush1.msra.mxu0 0.0
        %2605 = vmatprep.subr.mxu0 0.0
        %2606 = vmatpush1.msra.mxu0 0.0
        %2607 = vmatprep.subr.mxu0 0.0
        %2608 = vmatpush1.msra.mxu0 0.0
        %2609 = vmatprep.subr.mxu0 0.0
        %2610 = vmatpush1.msra.mxu0 0.0
        %2611 = vmatprep.subr.mxu0 0.0
        %2612 = vmatpush1.msra.mxu0 0.0
        %2613 = vmatprep.subr.mxu0 0.0
        %2614 = vmatpush1.msra.mxu0 0.0
        %2615 = vmatprep.subr.mxu0 0.0
        %2616 = vmatpush1.msra.mxu0 0.0
        %2617 = vmatprep.subr.mxu0 0.0
        %2618 = vmatpush1.msra.mxu0 0.0
        %2619 = vmatprep.subr.mxu0 0.0
        %2620 = vmatpush1.msra.mxu0 0.0
        %2621 = vmatprep.subr.mxu0 0.0
        %2622 = vmatpush1.msra.mxu0 0.0
        %2623 = vmatprep.subr.mxu0 0.0
        %2624 = vmatpush1.msra.mxu0 %v2458
        %2625 = vmatprep.subr.mxu0 0.0
        %2626 = vmatpush1.msra.mxu0 %v2453
        %2627 = vmatprep.subr.mxu0 0.0
        %2628 = vmatpush2.msra.mxu0 0.0
        %2629 = vmatprep.subr.mxu0 0.0
        %2630 = vmatpush2.msra.mxu0 0.0
        %2631 = vmatprep.subr.mxu0 0.0
        %2632 = vmatpush2.msra.mxu0 0.0
        %2633 = vmatprep.subr.mxu0 0.0
        %2634 = vmatpush2.msra.mxu0 0.0
        %2635 = vmatprep.subr.mxu0 0.0
        %2636 = vmatpush2.msra.mxu0 0.0
        %2637 = vmatprep.subr.mxu0 0.0
        %2638 = vmatpush2.msra.mxu0 0.0
        %2639 = vmatprep.subr.mxu0 0.0
        %2640 = vmatpush2.msra.mxu0 0.0
        %2641 = vmatprep.subr.mxu0 0.0
        %2642 = vmatpush2.msra.mxu0 0.0
        %2643 = vmatprep.subr.mxu0 0.0
        %2644 = vmatpush2.msra.mxu0 0.0
        %2645 = vmatprep.subr.mxu0 0.0
        %2646 = vmatpush2.msra.mxu0 0.0
        %2647 = vmatprep.subr.mxu0 0.0
        %2648 = vmatpush2.msra.mxu0 0.0
        %2649 = vmatprep.subr.mxu0 0.0
        %2650 = vmatpush2.msra.mxu0 0.0
        %2651 = vmatprep.subr.mxu0 0.0
        %2652 = vmatpush2.msra.mxu0 0.0
        %2653 = vmatprep.subr.mxu0 0.0
        %2654 = vmatpush2.msra.mxu0 0.0
        %2655 = vmatprep.subr.mxu0 0.0
        %2656 = vmatpush2.msra.mxu0 0.0
        %2657 = vmatprep.subr.mxu0 0.0
        %2658 = vmatpush2.msra.mxu0 0.0
        %2659 = vmatprep.mubr.f32.mxu0 0.0
        %2660 = vmatmul.mubr.f32.gmra.mxu0 %v2590
        %v2661 = vpop.f32.mrf.mxu0
        %v2662 = vadd.f32 0.0, %v2661
        %v2663 = vpop.f32.mrf.mxu0
        %2664 = vmatprep.mubr.f32.mxu0 0.0
        %2665 = vmatmul.mubr.f32.gmra.mxu0 %v2593
        %v2666 = vpop.f32.mrf.mxu0
        %v2667 = vadd.f32 0.0, %v2666
        %v2668 = vpop.f32.mrf.mxu0
        %2669 = vdwg.mxu0
        %2670 = vrot.lane.b32.xlu0 %v2376, 96
        %v2671 = vpop.permute.xlu0 %2670
        %2672 = vrot.lane.b32.xlu0 %v2382, 96
        %v2673 = vpop.permute.xlu0 %2672
        %2674 = vrot.lane.b32.xlu0 %v2378, 96
        %v2675 = vpop.permute.xlu0 %2674
        %2676 = vrot.lane.b32.xlu0 %v2384, 96
        %v2677 = vpop.permute.xlu0 %2676
        %v2678 = vsel %vm722, %v2671, 0
        %v2680 = vsel %vm722, %v2673, 0
        %v2682 = vsel %vm722, %v2675, 0
        %v2684 = vsel %vm722, %v2677, 0
        %2686 = vmatprep.subr.mxu0 0.0
        %2687 = vmatpush1.xpose.msra.mxu0 0.0
        %2688 = vmatprep.subr.mxu0 0.0
        %2689 = vmatpush1.xpose.msra.mxu0 0.0
        %2690 = vmatprep.subr.mxu0 0.0
        %2691 = vmatpush1.xpose.msra.mxu0 0.0
        %2692 = vmatprep.subr.mxu0 0.0
        %2693 = vmatpush1.xpose.msra.mxu0 0.0
        %2694 = vmatprep.subr.mxu0 0.0
        %2695 = vmatpush1.xpose.msra.mxu0 0.0
        %2696 = vmatprep.subr.mxu0 0.0
        %2697 = vmatpush1.xpose.msra.mxu0 0.0
        %2698 = vmatprep.subr.mxu0 0.0
        %2699 = vmatpush1.xpose.msra.mxu0 0.0
        %2700 = vmatprep.subr.mxu0 0.0
        %2701 = vmatpush1.xpose.msra.mxu0 0.0
        %2702 = vmatprep.subr.mxu0 0.0
        %2703 = vmatpush1.xpose.msra.mxu0 0.0
        %2704 = vmatprep.subr.mxu0 0.0
        %2705 = vmatpush1.xpose.msra.mxu0 0.0
        %2706 = vmatprep.subr.mxu0 0.0
        %2707 = vmatpush1.xpose.msra.mxu0 0.0
        %2708 = vmatprep.subr.mxu0 0.0
        %2709 = vmatpush1.xpose.msra.mxu0 0.0
        %2710 = vmatprep.subr.mxu0 0.0
        %2711 = vmatpush1.xpose.msra.mxu0 0.0
        %2712 = vmatprep.subr.mxu0 0.0
        %2713 = vmatpush1.xpose.msra.mxu0 0.0
        %2714 = vmatprep.subr.mxu0 0.0
        %2715 = vmatpush1.xpose.msra.mxu0 %v2684
        %2716 = vmatprep.subr.mxu0 0.0
        %2717 = vmatpush1.xpose.msra.mxu0 %v2682
        %2718 = vmatprep.subr.mxu0 0.0
        %2719 = vmatpush2.xpose.msra.mxu0 0.0
        %2720 = vmatprep.subr.mxu0 0.0
        %2721 = vmatpush2.xpose.msra.mxu0 0.0
        %2722 = vmatprep.subr.mxu0 0.0
        %2723 = vmatpush2.xpose.msra.mxu0 0.0
        %2724 = vmatprep.subr.mxu0 0.0
        %2725 = vmatpush2.xpose.msra.mxu0 0.0
        %2726 = vmatprep.subr.mxu0 0.0
        %2727 = vmatpush2.xpose.msra.mxu0 0.0
        %2728 = vmatprep.subr.mxu0 0.0
        %2729 = vmatpush2.xpose.msra.mxu0 0.0
        %2730 = vmatprep.subr.mxu0 0.0
        %2731 = vmatpush2.xpose.msra.mxu0 0.0
        %2732 = vmatprep.subr.mxu0 0.0
        %2733 = vmatpush2.xpose.msra.mxu0 0.0
        %2734 = vmatprep.subr.mxu0 0.0
        %2735 = vmatpush2.xpose.msra.mxu0 0.0
        %2736 = vmatprep.subr.mxu0 0.0
        %2737 = vmatpush2.xpose.msra.mxu0 0.0
        %2738 = vmatprep.subr.mxu0 0.0
        %2739 = vmatpush2.xpose.msra.mxu0 0.0
        %2740 = vmatprep.subr.mxu0 0.0
        %2741 = vmatpush2.xpose.msra.mxu0 0.0
        %2742 = vmatprep.subr.mxu0 0.0
        %2743 = vmatpush2.xpose.msra.mxu0 0.0
        %2744 = vmatprep.subr.mxu0 0.0
        %2745 = vmatpush2.xpose.msra.mxu0 0.0
        %2746 = vmatprep.subr.mxu0 0.0
        %2747 = vmatpush2.xpose.msra.mxu0 0.0
        %2748 = vmatprep.subr.mxu0 0.0
        %2749 = vmatpush2.xpose.msra.mxu0 0.0
        %2750 = vmatprep.mubr.f32.mxu0 0.0
        %2751 = vmatmul.mubr.f32.gmra.mxu0 %v2678
        %v2752 = vpop.f32.mrf.mxu0
        %v2753 = vadd.f32 0.0, %v2752
        %v2754 = vpop.f32.mrf.mxu0
        %2755 = vmatprep.mubr.f32.mxu0 0.0
        %2756 = vmatmul.mubr.f32.gmra.mxu0 %v2680
        %v2757 = vpop.f32.mrf.mxu0
        %v2758 = vadd.f32 0.0, %v2757
        %v2759 = vpop.f32.mrf.mxu0
        %2760 = vdwg.mxu0
        %v2761 = vsel %vm480, %v2753, -1e+30
        %v2762 = vsel %vm481, %v2758, -1e+30
        %v2763 = vsel %vm812, %v2761, -inf
        %2764 = vmax.xlane.f32.xlu0 %v2763
        %v2765 = vpop.xlane.xlu0 %2764
        %v2766 = vsel %vm812, %v2762, -inf
        %2767 = vmax.xlane.f32.xlu0 %v2766
        %v2768 = vpop.xlane.xlu0 %2767
        %v2769 = vsub.f32 %v2761, %v2765
        %v2770 = vsub.f32 %v2762, %v2768
        %v2771 = vmul.f32 %v2769, 1.442695
        %v2772 = vpow.pop %v2771
        %v2773 = vmul.f32 %v2770, 1.442695
        %v2774 = vpow.pop %v2773
        %v2775 = vsel %vm812, %v2772, 0.0
        %2776 = vadd.xlane.f32.xlu0 %v2775
        %v2777 = vpop.xlane.xlu0 %2776
        %v2778 = vsel %vm812, %v2774, 0.0
        %2779 = vadd.xlane.f32.xlu0 %v2778
        %v2780 = vpop.xlane.xlu0 %2779
        %v2781 = vrcp.pop %v2777
        %v2782 = vrcp.pop %v2780
        %v2783 = vmul.f32 %v2772, %v2781
        %v2784 = vmul.f32 %v2774, %v2782
        %2787 = vrot.lane.b32.xlu0 %v2453, 96
        %v2788 = vpop.permute.xlu0 %2787
        %2789 = vrot.lane.b32.xlu0 %v2458, 96
        %v2790 = vpop.permute.xlu0 %2789
        %v2794 = vsel %vm812, %v2783, 0
        %v2797 = vsel %vm812, %v2784, 0
        %2799 = vmatprep.subr.mxu0 0.0
        %2800 = vmatpush1.msra.mxu0 0.0
        %2801 = vmatprep.subr.mxu0 0.0
        %2802 = vmatpush1.msra.mxu0 0.0
        %2803 = vmatprep.subr.mxu0 0.0
        %2804 = vmatpush1.msra.mxu0 0.0
        %2805 = vmatprep.subr.mxu0 0.0
        %2806 = vmatpush1.msra.mxu0 0.0
        %2807 = vmatprep.subr.mxu0 0.0
        %2808 = vmatpush1.msra.mxu0 0.0
        %2809 = vmatprep.subr.mxu0 0.0
        %2810 = vmatpush1.msra.mxu0 0.0
        %2811 = vmatprep.subr.mxu0 0.0
        %2812 = vmatpush1.msra.mxu0 0.0
        %2813 = vmatprep.subr.mxu0 0.0
        %2814 = vmatpush1.msra.mxu0 0.0
        %2815 = vmatprep.subr.mxu0 0.0
        %2816 = vmatpush1.msra.mxu0 0.0
        %2817 = vmatprep.subr.mxu0 0.0
        %2818 = vmatpush1.msra.mxu0 0.0
        %2819 = vmatprep.subr.mxu0 0.0
        %2820 = vmatpush1.msra.mxu0 0.0
        %2821 = vmatprep.subr.mxu0 0.0
        %2822 = vmatpush1.msra.mxu0 0.0
        %2823 = vmatprep.subr.mxu0 0.0
        %2824 = vmatpush1.msra.mxu0 0.0
        %2825 = vmatprep.subr.mxu0 0.0
        %2826 = vmatpush1.msra.mxu0 0.0
        %2827 = vmatprep.subr.mxu0 0.0
        %2828 = vmatpush1.msra.mxu0 %v2790
        %2829 = vmatprep.subr.mxu0 0.0
        %2830 = vmatpush1.msra.mxu0 %v2788
        %2831 = vmatprep.subr.mxu0 0.0
        %2832 = vmatpush2.msra.mxu0 0.0
        %2833 = vmatprep.subr.mxu0 0.0
        %2834 = vmatpush2.msra.mxu0 0.0
        %2835 = vmatprep.subr.mxu0 0.0
        %2836 = vmatpush2.msra.mxu0 0.0
        %2837 = vmatprep.subr.mxu0 0.0
        %2838 = vmatpush2.msra.mxu0 0.0
        %2839 = vmatprep.subr.mxu0 0.0
        %2840 = vmatpush2.msra.mxu0 0.0
        %2841 = vmatprep.subr.mxu0 0.0
        %2842 = vmatpush2.msra.mxu0 0.0
        %2843 = vmatprep.subr.mxu0 0.0
        %2844 = vmatpush2.msra.mxu0 0.0
        %2845 = vmatprep.subr.mxu0 0.0
        %2846 = vmatpush2.msra.mxu0 0.0
        %2847 = vmatprep.subr.mxu0 0.0
        %2848 = vmatpush2.msra.mxu0 0.0
        %2849 = vmatprep.subr.mxu0 0.0
        %2850 = vmatpush2.msra.mxu0 0.0
        %2851 = vmatprep.subr.mxu0 0.0
        %2852 = vmatpush2.msra.mxu0 0.0
        %2853 = vmatprep.subr.mxu0 0.0
        %2854 = vmatpush2.msra.mxu0 0.0
        %2855 = vmatprep.subr.mxu0 0.0
        %2856 = vmatpush2.msra.mxu0 0.0
        %2857 = vmatprep.subr.mxu0 0.0
        %2858 = vmatpush2.msra.mxu0 0.0
        %2859 = vmatprep.subr.mxu0 0.0
        %2860 = vmatpush2.msra.mxu0 0.0
        %2861 = vmatprep.subr.mxu0 0.0
        %2862 = vmatpush2.msra.mxu0 0.0
        %2863 = vmatprep.mubr.f32.mxu0 0.0
        %2864 = vmatmul.mubr.f32.gmra.mxu0 %v2794
        %v2865 = vpop.f32.mrf.mxu0
        %v2866 = vadd.f32 0.0, %v2865
        %v2867 = vpop.f32.mrf.mxu0
        %2868 = vmatprep.mubr.f32.mxu0 0.0
        %2869 = vmatmul.mubr.f32.gmra.mxu0 %v2797
        %v2870 = vpop.f32.mrf.mxu0
        %v2871 = vadd.f32 0.0, %v2870
        %v2872 = vpop.f32.mrf.mxu0
        %2873 = vdwg.mxu0
        %v2875 = vsel %vm722, %v2866, 0
        %v2878 = vsel %vm722, %v2871, 0
        %2880 = vmatprep.subr.mxu0 0.0
        %2881 = vmatpush1.msra.mxu0 0.0
        %2882 = vmatprep.subr.mxu0 0.0
        %2883 = vmatpush1.msra.mxu0 0.0
        %2884 = vmatprep.subr.mxu0 0.0
        %2885 = vmatpush1.msra.mxu0 0.0
        %2886 = vmatprep.subr.mxu0 0.0
        %2887 = vmatpush1.msra.mxu0 0.0
        %2888 = vmatprep.subr.mxu0 0.0
        %2889 = vmatpush1.msra.mxu0 0.0
        %2890 = vmatprep.subr.mxu0 0.0
        %2891 = vmatpush1.msra.mxu0 0.0
        %2892 = vmatprep.subr.mxu0 0.0
        %2893 = vmatpush1.msra.mxu0 0.0
        %2894 = vmatprep.subr.mxu0 0.0
        %2895 = vmatpush1.msra.mxu0 0.0
        %2896 = vmatprep.subr.mxu0 0.0
        %2897 = vmatpush1.msra.mxu0 0.0
        %2898 = vmatprep.subr.mxu0 0.0
        %2899 = vmatpush1.msra.mxu0 0.0
        %2900 = vmatprep.subr.mxu0 0.0
        %2901 = vmatpush1.msra.mxu0 0.0
        %2902 = vmatprep.subr.mxu0 0.0
        %2903 = vmatpush1.msra.mxu0 0.0
        %2904 = vmatprep.subr.mxu0 0.0
        %2905 = vmatpush1.msra.mxu0 %v2469
        %2906 = vmatprep.subr.mxu0 0.0
        %2907 = vmatpush1.msra.mxu0 %v2468
        %2908 = vmatprep.subr.mxu0 0.0
        %2909 = vmatpush1.msra.mxu0 %v2467
        %2910 = vmatprep.subr.mxu0 0.0
        %2911 = vmatpush1.msra.mxu0 %v2466
        %2912 = vmatprep.subr.mxu0 0.0
        %2913 = vmatpush2.msra.mxu0 0.0
        %2914 = vmatprep.subr.mxu0 0.0
        %2915 = vmatpush2.msra.mxu0 0.0
        %2916 = vmatprep.subr.mxu0 0.0
        %2917 = vmatpush2.msra.mxu0 0.0
        %2918 = vmatprep.subr.mxu0 0.0
        %2919 = vmatpush2.msra.mxu0 0.0
        %2920 = vmatprep.subr.mxu0 0.0
        %2921 = vmatpush2.msra.mxu0 0.0
        %2922 = vmatprep.subr.mxu0 0.0
        %2923 = vmatpush2.msra.mxu0 0.0
        %2924 = vmatprep.subr.mxu0 0.0
        %2925 = vmatpush2.msra.mxu0 0.0
        %2926 = vmatprep.subr.mxu0 0.0
        %2927 = vmatpush2.msra.mxu0 0.0
        %2928 = vmatprep.subr.mxu0 0.0
        %2929 = vmatpush2.msra.mxu0 0.0
        %2930 = vmatprep.subr.mxu0 0.0
        %2931 = vmatpush2.msra.mxu0 0.0
        %2932 = vmatprep.subr.mxu0 0.0
        %2933 = vmatpush2.msra.mxu0 0.0
        %2934 = vmatprep.subr.mxu0 0.0
        %2935 = vmatpush2.msra.mxu0 0.0
        %2936 = vmatprep.subr.mxu0 0.0
        %2937 = vmatpush2.msra.mxu0 0.0
        %2938 = vmatprep.subr.mxu0 0.0
        %2939 = vmatpush2.msra.mxu0 0.0
        %2940 = vmatprep.subr.mxu0 0.0
        %2941 = vmatpush2.msra.mxu0 0.0
        %2942 = vmatprep.subr.mxu0 0.0
        %2943 = vmatpush2.msra.mxu0 0.0
        %2944 = vmatprep.mubr.f32.mxu0 0.0
        %2945 = vmatmul.mubr.f32.gmra.mxu0 %v2875
        %v2946 = vpop.f32.mrf.mxu0
        %v2947 = vadd.f32 0.0, %v2946
        %v2948 = vpop.f32.mrf.mxu0
        %2949 = vmatprep.mubr.f32.mxu0 0.0
        %2950 = vmatmul.mubr.f32.gmra.mxu0 %v2878
        %v2951 = vpop.f32.mrf.mxu0
        %v2952 = vadd.f32 0.0, %v2951
        %v2953 = vpop.f32.mrf.mxu0
        %2954 = vdwg.mxu0
        %v2956 = vsel %vm722, %v2662, 0
        %v2959 = vsel %vm722, %v2667, 0
        %2961 = vmatprep.subr.mxu0 0.0
        %2962 = vmatpush1.msra.mxu0 0.0
        %2963 = vmatprep.subr.mxu0 0.0
        %2964 = vmatpush1.msra.mxu0 0.0
        %2965 = vmatprep.subr.mxu0 0.0
        %2966 = vmatpush1.msra.mxu0 0.0
        %2967 = vmatprep.subr.mxu0 0.0
        %2968 = vmatpush1.msra.mxu0 0.0
        %2969 = vmatprep.subr.mxu0 0.0
        %2970 = vmatpush1.msra.mxu0 0.0
        %2971 = vmatprep.subr.mxu0 0.0
        %2972 = vmatpush1.msra.mxu0 0.0
        %2973 = vmatprep.subr.mxu0 0.0
        %2974 = vmatpush1.msra.mxu0 0.0
        %2975 = vmatprep.subr.mxu0 0.0
        %2976 = vmatpush1.msra.mxu0 0.0
        %2977 = vmatprep.subr.mxu0 0.0
        %2978 = vmatpush1.msra.mxu0 0.0
        %2979 = vmatprep.subr.mxu0 0.0
        %2980 = vmatpush1.msra.mxu0 0.0
        %2981 = vmatprep.subr.mxu0 0.0
        %2982 = vmatpush1.msra.mxu0 0.0
        %2983 = vmatprep.subr.mxu0 0.0
        %2984 = vmatpush1.msra.mxu0 0.0
        %2985 = vmatprep.subr.mxu0 0.0
        %2986 = vmatpush1.msra.mxu0 %v2465
        %2987 = vmatprep.subr.mxu0 0.0
        %2988 = vmatpush1.msra.mxu0 %v2464
        %2989 = vmatprep.subr.mxu0 0.0
        %2990 = vmatpush1.msra.mxu0 %v2463
        %2991 = vmatprep.subr.mxu0 0.0
        %2992 = vmatpush1.msra.mxu0 %v2462
        %2993 = vmatprep.subr.mxu0 0.0
        %2994 = vmatpush2.msra.mxu0 0.0
        %2995 = vmatprep.subr.mxu0 0.0
        %2996 = vmatpush2.msra.mxu0 0.0
        %2997 = vmatprep.subr.mxu0 0.0
        %2998 = vmatpush2.msra.mxu0 0.0
        %2999 = vmatprep.subr.mxu0 0.0
        %3000 = vmatpush2.msra.mxu0 0.0
        %3001 = vmatprep.subr.mxu0 0.0
        %3002 = vmatpush2.msra.mxu0 0.0
        %3003 = vmatprep.subr.mxu0 0.0
        %3004 = vmatpush2.msra.mxu0 0.0
        %3005 = vmatprep.subr.mxu0 0.0
        %3006 = vmatpush2.msra.mxu0 0.0
        %3007 = vmatprep.subr.mxu0 0.0
        %3008 = vmatpush2.msra.mxu0 0.0
        %3009 = vmatprep.subr.mxu0 0.0
        %3010 = vmatpush2.msra.mxu0 0.0
        %3011 = vmatprep.subr.mxu0 0.0
        %3012 = vmatpush2.msra.mxu0 0.0
        %3013 = vmatprep.subr.mxu0 0.0
        %3014 = vmatpush2.msra.mxu0 0.0
        %3015 = vmatprep.subr.mxu0 0.0
        %3016 = vmatpush2.msra.mxu0 0.0
        %3017 = vmatprep.subr.mxu0 0.0
        %3018 = vmatpush2.msra.mxu0 0.0
        %3019 = vmatprep.subr.mxu0 0.0
        %3020 = vmatpush2.msra.mxu0 0.0
        %3021 = vmatprep.subr.mxu0 0.0
        %3022 = vmatpush2.msra.mxu0 0.0
        %3023 = vmatprep.subr.mxu0 0.0
        %3024 = vmatpush2.msra.mxu0 0.0
        %3025 = vmatprep.mubr.f32.mxu0 0.0
        %3026 = vmatmul.mubr.f32.gmra.mxu0 %v2956
        %v3027 = vpop.f32.mrf.mxu0
        %v3028 = vadd.f32 %v2947, %v3027
        %v3029 = vpop.f32.mrf.mxu0
        %3030 = vmatprep.mubr.f32.mxu0 0.0
        %3031 = vmatmul.mubr.f32.gmra.mxu0 %v2959
        %v3032 = vpop.f32.mrf.mxu0
        %v3033 = vadd.f32 %v2952, %v3032
        %v3034 = vpop.f32.mrf.mxu0
        %3035 = vdwg.mxu0
        %3036 = vrot.lane.b32.xlu0 %v2376, 64
        %v3037 = vpop.permute.xlu0 %3036
        %3038 = vrot.lane.b32.xlu0 %v2382, 64
        %v3039 = vpop.permute.xlu0 %3038
        %3040 = vrot.lane.b32.xlu0 %v2378, 64
        %v3041 = vpop.permute.xlu0 %3040
        %3042 = vrot.lane.b32.xlu0 %v2384, 64
        %v3043 = vpop.permute.xlu0 %3042
        %v3044 = vsel %vm722, %v3037, 0
        %v3046 = vsel %vm722, %v3039, 0
        %v3048 = vsel %vm722, %v3041, 0
        %v3050 = vsel %vm722, %v3043, 0
        %3052 = vmatprep.subr.mxu0 0.0
        %3053 = vmatpush1.xpose.msra.mxu0 0.0
        %3054 = vmatprep.subr.mxu0 0.0
        %3055 = vmatpush1.xpose.msra.mxu0 0.0
        %3056 = vmatprep.subr.mxu0 0.0
        %3057 = vmatpush1.xpose.msra.mxu0 0.0
        %3058 = vmatprep.subr.mxu0 0.0
        %3059 = vmatpush1.xpose.msra.mxu0 0.0
        %3060 = vmatprep.subr.mxu0 0.0
        %3061 = vmatpush1.xpose.msra.mxu0 0.0
        %3062 = vmatprep.subr.mxu0 0.0
        %3063 = vmatpush1.xpose.msra.mxu0 0.0
        %3064 = vmatprep.subr.mxu0 0.0
        %3065 = vmatpush1.xpose.msra.mxu0 0.0
        %3066 = vmatprep.subr.mxu0 0.0
        %3067 = vmatpush1.xpose.msra.mxu0 0.0
        %3068 = vmatprep.subr.mxu0 0.0
        %3069 = vmatpush1.xpose.msra.mxu0 0.0
        %3070 = vmatprep.subr.mxu0 0.0
        %3071 = vmatpush1.xpose.msra.mxu0 0.0
        %3072 = vmatprep.subr.mxu0 0.0
        %3073 = vmatpush1.xpose.msra.mxu0 0.0
        %3074 = vmatprep.subr.mxu0 0.0
        %3075 = vmatpush1.xpose.msra.mxu0 0.0
        %3076 = vmatprep.subr.mxu0 0.0
        %3077 = vmatpush1.xpose.msra.mxu0 0.0
        %3078 = vmatprep.subr.mxu0 0.0
        %3079 = vmatpush1.xpose.msra.mxu0 0.0
        %3080 = vmatprep.subr.mxu0 0.0
        %3081 = vmatpush1.xpose.msra.mxu0 %v3050
        %3082 = vmatprep.subr.mxu0 0.0
        %3083 = vmatpush1.xpose.msra.mxu0 %v3048
        %3084 = vmatprep.subr.mxu0 0.0
        %3085 = vmatpush2.xpose.msra.mxu0 0.0
        %3086 = vmatprep.subr.mxu0 0.0
        %3087 = vmatpush2.xpose.msra.mxu0 0.0
        %3088 = vmatprep.subr.mxu0 0.0
        %3089 = vmatpush2.xpose.msra.mxu0 0.0
        %3090 = vmatprep.subr.mxu0 0.0
        %3091 = vmatpush2.xpose.msra.mxu0 0.0
        %3092 = vmatprep.subr.mxu0 0.0
        %3093 = vmatpush2.xpose.msra.mxu0 0.0
        %3094 = vmatprep.subr.mxu0 0.0
        %3095 = vmatpush2.xpose.msra.mxu0 0.0
        %3096 = vmatprep.subr.mxu0 0.0
        %3097 = vmatpush2.xpose.msra.mxu0 0.0
        %3098 = vmatprep.subr.mxu0 0.0
        %3099 = vmatpush2.xpose.msra.mxu0 0.0
        %3100 = vmatprep.subr.mxu0 0.0
        %3101 = vmatpush2.xpose.msra.mxu0 0.0
        %3102 = vmatprep.subr.mxu0 0.0
        %3103 = vmatpush2.xpose.msra.mxu0 0.0
        %3104 = vmatprep.subr.mxu0 0.0
        %3105 = vmatpush2.xpose.msra.mxu0 0.0
        %3106 = vmatprep.subr.mxu0 0.0
        %3107 = vmatpush2.xpose.msra.mxu0 0.0
        %3108 = vmatprep.subr.mxu0 0.0
        %3109 = vmatpush2.xpose.msra.mxu0 0.0
        %3110 = vmatprep.subr.mxu0 0.0
        %3111 = vmatpush2.xpose.msra.mxu0 0.0
        %3112 = vmatprep.subr.mxu0 0.0
        %3113 = vmatpush2.xpose.msra.mxu0 0.0
        %3114 = vmatprep.subr.mxu0 0.0
        %3115 = vmatpush2.xpose.msra.mxu0 0.0
        %3116 = vmatprep.mubr.f32.mxu0 0.0
        %3117 = vmatmul.mubr.f32.gmra.mxu0 %v3044
        %v3118 = vpop.f32.mrf.mxu0
        %v3119 = vadd.f32 0.0, %v3118
        %v3120 = vpop.f32.mrf.mxu0
        %3121 = vmatprep.mubr.f32.mxu0 0.0
        %3122 = vmatmul.mubr.f32.gmra.mxu0 %v3046
        %v3123 = vpop.f32.mrf.mxu0
        %v3124 = vadd.f32 0.0, %v3123
        %v3125 = vpop.f32.mrf.mxu0
        %3126 = vdwg.mxu0
        %v3127 = vsel %vm480, %v3119, -1e+30
        %v3128 = vsel %vm481, %v3124, -1e+30
        %v3129 = vsel %vm812, %v3127, -inf
        %3130 = vmax.xlane.f32.xlu0 %v3129
        %v3131 = vpop.xlane.xlu0 %3130
        %v3132 = vsel %vm812, %v3128, -inf
        %3133 = vmax.xlane.f32.xlu0 %v3132
        %v3134 = vpop.xlane.xlu0 %3133
        %v3135 = vsub.f32 %v3127, %v3131
        %v3136 = vsub.f32 %v3128, %v3134
        %v3137 = vmul.f32 %v3135, 1.442695
        %v3138 = vpow.pop %v3137
        %v3139 = vmul.f32 %v3136, 1.442695
        %v3140 = vpow.pop %v3139
        %v3141 = vsel %vm812, %v3138, 0.0
        %3142 = vadd.xlane.f32.xlu0 %v3141
        %v3143 = vpop.xlane.xlu0 %3142
        %v3144 = vsel %vm812, %v3140, 0.0
        %3145 = vadd.xlane.f32.xlu0 %v3144
        %v3146 = vpop.xlane.xlu0 %3145
        %v3147 = vrcp.pop %v3143
        %v3148 = vrcp.pop %v3146
        %v3149 = vmul.f32 %v3138, %v3147
        %v3150 = vmul.f32 %v3140, %v3148
        %3151 = vrot.lane.b32.xlu0 %v2453, 64
        %v3152 = vpop.permute.xlu0 %3151
        %3153 = vrot.lane.b32.xlu0 %v2458, 64
        %v3154 = vpop.permute.xlu0 %3153
        %v3158 = vsel %vm812, %v3149, 0
        %v3161 = vsel %vm812, %v3150, 0
        %3163 = vmatprep.subr.mxu0 0.0
        %3164 = vmatpush1.msra.mxu0 0.0
        %3165 = vmatprep.subr.mxu0 0.0
        %3166 = vmatpush1.msra.mxu0 0.0
        %3167 = vmatprep.subr.mxu0 0.0
        %3168 = vmatpush1.msra.mxu0 0.0
        %3169 = vmatprep.subr.mxu0 0.0
        %3170 = vmatpush1.msra.mxu0 0.0
        %3171 = vmatprep.subr.mxu0 0.0
        %3172 = vmatpush1.msra.mxu0 0.0
        %3173 = vmatprep.subr.mxu0 0.0
        %3174 = vmatpush1.msra.mxu0 0.0
        %3175 = vmatprep.subr.mxu0 0.0
        %3176 = vmatpush1.msra.mxu0 0.0
        %3177 = vmatprep.subr.mxu0 0.0
        %3178 = vmatpush1.msra.mxu0 0.0
        %3179 = vmatprep.subr.mxu0 0.0
        %3180 = vmatpush1.msra.mxu0 0.0
        %3181 = vmatprep.subr.mxu0 0.0
        %3182 = vmatpush1.msra.mxu0 0.0
        %3183 = vmatprep.subr.mxu0 0.0
        %3184 = vmatpush1.msra.mxu0 0.0
        %3185 = vmatprep.subr.mxu0 0.0
        %3186 = vmatpush1.msra.mxu0 0.0
        %3187 = vmatprep.subr.mxu0 0.0
        %3188 = vmatpush1.msra.mxu0 0.0
        %3189 = vmatprep.subr.mxu0 0.0
        %3190 = vmatpush1.msra.mxu0 0.0
        %3191 = vmatprep.subr.mxu0 0.0
        %3192 = vmatpush1.msra.mxu0 %v3154
        %3193 = vmatprep.subr.mxu0 0.0
        %3194 = vmatpush1.msra.mxu0 %v3152
        %3195 = vmatprep.subr.mxu0 0.0
        %3196 = vmatpush2.msra.mxu0 0.0
        %3197 = vmatprep.subr.mxu0 0.0
        %3198 = vmatpush2.msra.mxu0 0.0
        %3199 = vmatprep.subr.mxu0 0.0
        %3200 = vmatpush2.msra.mxu0 0.0
        %3201 = vmatprep.subr.mxu0 0.0
        %3202 = vmatpush2.msra.mxu0 0.0
        %3203 = vmatprep.subr.mxu0 0.0
        %3204 = vmatpush2.msra.mxu0 0.0
        %3205 = vmatprep.subr.mxu0 0.0
        %3206 = vmatpush2.msra.mxu0 0.0
        %3207 = vmatprep.subr.mxu0 0.0
        %3208 = vmatpush2.msra.mxu0 0.0
        %3209 = vmatprep.subr.mxu0 0.0
        %3210 = vmatpush2.msra.mxu0 0.0
        %3211 = vmatprep.subr.mxu0 0.0
        %3212 = vmatpush2.msra.mxu0 0.0
        %3213 = vmatprep.subr.mxu0 0.0
        %3214 = vmatpush2.msra.mxu0 0.0
        %3215 = vmatprep.subr.mxu0 0.0
        %3216 = vmatpush2.msra.mxu0 0.0
        %3217 = vmatprep.subr.mxu0 0.0
        %3218 = vmatpush2.msra.mxu0 0.0
        %3219 = vmatprep.subr.mxu0 0.0
        %3220 = vmatpush2.msra.mxu0 0.0
        %3221 = vmatprep.subr.mxu0 0.0
        %3222 = vmatpush2.msra.mxu0 0.0
        %3223 = vmatprep.subr.mxu0 0.0
        %3224 = vmatpush2.msra.mxu0 0.0
        %3225 = vmatprep.subr.mxu0 0.0
        %3226 = vmatpush2.msra.mxu0 0.0
        %3227 = vmatprep.mubr.f32.mxu0 0.0
        %3228 = vmatmul.mubr.f32.gmra.mxu0 %v3158
        %v3229 = vpop.f32.mrf.mxu0
        %v3230 = vadd.f32 0.0, %v3229
        %v3231 = vpop.f32.mrf.mxu0
        %3232 = vmatprep.mubr.f32.mxu0 0.0
        %3233 = vmatmul.mubr.f32.gmra.mxu0 %v3161
        %v3234 = vpop.f32.mrf.mxu0
        %v3235 = vadd.f32 0.0, %v3234
        %v3236 = vpop.f32.mrf.mxu0
        %3237 = vdwg.mxu0
        %v3239 = vsel %vm722, %v3230, 0
        %v3242 = vsel %vm722, %v3235, 0
        %3244 = vmatprep.subr.mxu0 0.0
        %3245 = vmatpush1.msra.mxu0 0.0
        %3246 = vmatprep.subr.mxu0 0.0
        %3247 = vmatpush1.msra.mxu0 0.0
        %3248 = vmatprep.subr.mxu0 0.0
        %3249 = vmatpush1.msra.mxu0 0.0
        %3250 = vmatprep.subr.mxu0 0.0
        %3251 = vmatpush1.msra.mxu0 0.0
        %3252 = vmatprep.subr.mxu0 0.0
        %3253 = vmatpush1.msra.mxu0 0.0
        %3254 = vmatprep.subr.mxu0 0.0
        %3255 = vmatpush1.msra.mxu0 0.0
        %3256 = vmatprep.subr.mxu0 0.0
        %3257 = vmatpush1.msra.mxu0 0.0
        %3258 = vmatprep.subr.mxu0 0.0
        %3259 = vmatpush1.msra.mxu0 0.0
        %3260 = vmatprep.subr.mxu0 0.0
        %3261 = vmatpush1.msra.mxu0 0.0
        %3262 = vmatprep.subr.mxu0 0.0
        %3263 = vmatpush1.msra.mxu0 0.0
        %3264 = vmatprep.subr.mxu0 0.0
        %3265 = vmatpush1.msra.mxu0 0.0
        %3266 = vmatprep.subr.mxu0 0.0
        %3267 = vmatpush1.msra.mxu0 0.0
        %3268 = vmatprep.subr.mxu0 0.0
        %3269 = vmatpush1.msra.mxu0 %v2473
        %3270 = vmatprep.subr.mxu0 0.0
        %3271 = vmatpush1.msra.mxu0 %v2472
        %3272 = vmatprep.subr.mxu0 0.0
        %3273 = vmatpush1.msra.mxu0 %v2471
        %3274 = vmatprep.subr.mxu0 0.0
        %3275 = vmatpush1.msra.mxu0 %v2470
        %3276 = vmatprep.subr.mxu0 0.0
        %3277 = vmatpush2.msra.mxu0 0.0
        %3278 = vmatprep.subr.mxu0 0.0
        %3279 = vmatpush2.msra.mxu0 0.0
        %3280 = vmatprep.subr.mxu0 0.0
        %3281 = vmatpush2.msra.mxu0 0.0
        %3282 = vmatprep.subr.mxu0 0.0
        %3283 = vmatpush2.msra.mxu0 0.0
        %3284 = vmatprep.subr.mxu0 0.0
        %3285 = vmatpush2.msra.mxu0 0.0
        %3286 = vmatprep.subr.mxu0 0.0
        %3287 = vmatpush2.msra.mxu0 0.0
        %3288 = vmatprep.subr.mxu0 0.0
        %3289 = vmatpush2.msra.mxu0 0.0
        %3290 = vmatprep.subr.mxu0 0.0
        %3291 = vmatpush2.msra.mxu0 0.0
        %3292 = vmatprep.subr.mxu0 0.0
        %3293 = vmatpush2.msra.mxu0 0.0
        %3294 = vmatprep.subr.mxu0 0.0
        %3295 = vmatpush2.msra.mxu0 0.0
        %3296 = vmatprep.subr.mxu0 0.0
        %3297 = vmatpush2.msra.mxu0 0.0
        %3298 = vmatprep.subr.mxu0 0.0
        %3299 = vmatpush2.msra.mxu0 0.0
        %3300 = vmatprep.subr.mxu0 0.0
        %3301 = vmatpush2.msra.mxu0 0.0
        %3302 = vmatprep.subr.mxu0 0.0
        %3303 = vmatpush2.msra.mxu0 0.0
        %3304 = vmatprep.subr.mxu0 0.0
        %3305 = vmatpush2.msra.mxu0 0.0
        %3306 = vmatprep.subr.mxu0 0.0
        %3307 = vmatpush2.msra.mxu0 0.0
        %3308 = vmatprep.mubr.f32.mxu0 0.0
        %3309 = vmatmul.mubr.f32.gmra.mxu0 %v3239
        %v3310 = vpop.f32.mrf.mxu0
        %v3311 = vadd.f32 0.0, %v3310
        %v3312 = vpop.f32.mrf.mxu0
        %3313 = vmatprep.mubr.f32.mxu0 0.0
        %3314 = vmatmul.mubr.f32.gmra.mxu0 %v3242
        %v3315 = vpop.f32.mrf.mxu0
        %v3316 = vadd.f32 0.0, %v3315
        %v3317 = vpop.f32.mrf.mxu0
        %3318 = vdwg.mxu0
        %v3319 = vadd.f32 %v3028, %v3311
        %v3320 = vadd.f32 %v3033, %v3316
        %3321 = vrot.lane.b32.xlu0 %v2376, 32
        %v3322 = vpop.permute.xlu0 %3321
        %3323 = vrot.lane.b32.xlu0 %v2382, 32
        %v3324 = vpop.permute.xlu0 %3323
        %3325 = vrot.lane.b32.xlu0 %v2378, 32
        %v3326 = vpop.permute.xlu0 %3325
        %3327 = vrot.lane.b32.xlu0 %v2384, 32
        %v3328 = vpop.permute.xlu0 %3327
        %v3329 = vsel %vm722, %v3322, 0
        %v3331 = vsel %vm722, %v3324, 0
        %v3333 = vsel %vm722, %v3326, 0
        %v3335 = vsel %vm722, %v3328, 0
        %3337 = vmatprep.subr.mxu0 0.0
        %3338 = vmatpush1.xpose.msra.mxu0 0.0
        %3339 = vmatprep.subr.mxu0 0.0
        %3340 = vmatpush1.xpose.msra.mxu0 0.0
        %3341 = vmatprep.subr.mxu0 0.0
        %3342 = vmatpush1.xpose.msra.mxu0 0.0
        %3343 = vmatprep.subr.mxu0 0.0
        %3344 = vmatpush1.xpose.msra.mxu0 0.0
        %3345 = vmatprep.subr.mxu0 0.0
        %3346 = vmatpush1.xpose.msra.mxu0 0.0
        %3347 = vmatprep.subr.mxu0 0.0
        %3348 = vmatpush1.xpose.msra.mxu0 0.0
        %3349 = vmatprep.subr.mxu0 0.0
        %3350 = vmatpush1.xpose.msra.mxu0 0.0
        %3351 = vmatprep.subr.mxu0 0.0
        %3352 = vmatpush1.xpose.msra.mxu0 0.0
        %3353 = vmatprep.subr.mxu0 0.0
        %3354 = vmatpush1.xpose.msra.mxu0 0.0
        %3355 = vmatprep.subr.mxu0 0.0
        %3356 = vmatpush1.xpose.msra.mxu0 0.0
        %3357 = vmatprep.subr.mxu0 0.0
        %3358 = vmatpush1.xpose.msra.mxu0 0.0
        %3359 = vmatprep.subr.mxu0 0.0
        %3360 = vmatpush1.xpose.msra.mxu0 0.0
        %3361 = vmatprep.subr.mxu0 0.0
        %3362 = vmatpush1.xpose.msra.mxu0 0.0
        %3363 = vmatprep.subr.mxu0 0.0
        %3364 = vmatpush1.xpose.msra.mxu0 0.0
        %3365 = vmatprep.subr.mxu0 0.0
        %3366 = vmatpush1.xpose.msra.mxu0 %v3335
        %3367 = vmatprep.subr.mxu0 0.0
        %3368 = vmatpush1.xpose.msra.mxu0 %v3333
        %3369 = vmatprep.subr.mxu0 0.0
        %3370 = vmatpush2.xpose.msra.mxu0 0.0
        %3371 = vmatprep.subr.mxu0 0.0
        %3372 = vmatpush2.xpose.msra.mxu0 0.0
        %3373 = vmatprep.subr.mxu0 0.0
        %3374 = vmatpush2.xpose.msra.mxu0 0.0
        %3375 = vmatprep.subr.mxu0 0.0
        %3376 = vmatpush2.xpose.msra.mxu0 0.0
        %3377 = vmatprep.subr.mxu0 0.0
        %3378 = vmatpush2.xpose.msra.mxu0 0.0
        %3379 = vmatprep.subr.mxu0 0.0
        %3380 = vmatpush2.xpose.msra.mxu0 0.0
        %3381 = vmatprep.subr.mxu0 0.0
        %3382 = vmatpush2.xpose.msra.mxu0 0.0
        %3383 = vmatprep.subr.mxu0 0.0
        %3384 = vmatpush2.xpose.msra.mxu0 0.0
        %3385 = vmatprep.subr.mxu0 0.0
        %3386 = vmatpush2.xpose.msra.mxu0 0.0
        %3387 = vmatprep.subr.mxu0 0.0
        %3388 = vmatpush2.xpose.msra.mxu0 0.0
        %3389 = vmatprep.subr.mxu0 0.0
        %3390 = vmatpush2.xpose.msra.mxu0 0.0
        %3391 = vmatprep.subr.mxu0 0.0
        %3392 = vmatpush2.xpose.msra.mxu0 0.0
        %3393 = vmatprep.subr.mxu0 0.0
        %3394 = vmatpush2.xpose.msra.mxu0 0.0
        %3395 = vmatprep.subr.mxu0 0.0
        %3396 = vmatpush2.xpose.msra.mxu0 0.0
        %3397 = vmatprep.subr.mxu0 0.0
        %3398 = vmatpush2.xpose.msra.mxu0 0.0
        %3399 = vmatprep.subr.mxu0 0.0
        %3400 = vmatpush2.xpose.msra.mxu0 0.0
        %3401 = vmatprep.mubr.f32.mxu0 0.0
        %3402 = vmatmul.mubr.f32.gmra.mxu0 %v3329
        %v3403 = vpop.f32.mrf.mxu0
        %v3404 = vadd.f32 0.0, %v3403
        %v3405 = vpop.f32.mrf.mxu0
        %3406 = vmatprep.mubr.f32.mxu0 0.0
        %3407 = vmatmul.mubr.f32.gmra.mxu0 %v3331
        %v3408 = vpop.f32.mrf.mxu0
        %v3409 = vadd.f32 0.0, %v3408
        %v3410 = vpop.f32.mrf.mxu0
        %3411 = vdwg.mxu0
        %v3412 = vsel %vm480, %v3404, -1e+30
        %v3413 = vsel %vm481, %v3409, -1e+30
        %v3414 = vsel %vm812, %v3412, -inf
        %3415 = vmax.xlane.f32.xlu0 %v3414
        %v3416 = vpop.xlane.xlu0 %3415
        %v3417 = vsel %vm812, %v3413, -inf
        %3418 = vmax.xlane.f32.xlu0 %v3417
        %v3419 = vpop.xlane.xlu0 %3418
        %v3420 = vsub.f32 %v3412, %v3416
        %v3421 = vsub.f32 %v3413, %v3419
        %v3422 = vmul.f32 %v3420, 1.442695
        %v3423 = vpow.pop %v3422
        %v3424 = vmul.f32 %v3421, 1.442695
        %v3425 = vpow.pop %v3424
        %v3426 = vsel %vm812, %v3423, 0.0
        %3427 = vadd.xlane.f32.xlu0 %v3426
        %v3428 = vpop.xlane.xlu0 %3427
        %v3429 = vsel %vm812, %v3425, 0.0
        %3430 = vadd.xlane.f32.xlu0 %v3429
        %v3431 = vpop.xlane.xlu0 %3430
        %v3432 = vrcp.pop %v3428
        %v3433 = vrcp.pop %v3431
        %v3434 = vmul.f32 %v3423, %v3432
        %v3435 = vmul.f32 %v3425, %v3433
        %3436 = vrot.lane.b32.xlu0 %v2453, 32
        %v3437 = vpop.permute.xlu0 %3436
        %3438 = vrot.lane.b32.xlu0 %v2458, 32
        %v3439 = vpop.permute.xlu0 %3438
        %v3443 = vsel %vm812, %v3434, 0
        %v3446 = vsel %vm812, %v3435, 0
        %3448 = vmatprep.subr.mxu0 0.0
        %3449 = vmatpush1.msra.mxu0 0.0
        %3450 = vmatprep.subr.mxu0 0.0
        %3451 = vmatpush1.msra.mxu0 0.0
        %3452 = vmatprep.subr.mxu0 0.0
        %3453 = vmatpush1.msra.mxu0 0.0
        %3454 = vmatprep.subr.mxu0 0.0
        %3455 = vmatpush1.msra.mxu0 0.0
        %3456 = vmatprep.subr.mxu0 0.0
        %3457 = vmatpush1.msra.mxu0 0.0
        %3458 = vmatprep.subr.mxu0 0.0
        %3459 = vmatpush1.msra.mxu0 0.0
        %3460 = vmatprep.subr.mxu0 0.0
        %3461 = vmatpush1.msra.mxu0 0.0
        %3462 = vmatprep.subr.mxu0 0.0
        %3463 = vmatpush1.msra.mxu0 0.0
        %3464 = vmatprep.subr.mxu0 0.0
        %3465 = vmatpush1.msra.mxu0 0.0
        %3466 = vmatprep.subr.mxu0 0.0
        %3467 = vmatpush1.msra.mxu0 0.0
        %3468 = vmatprep.subr.mxu0 0.0
        %3469 = vmatpush1.msra.mxu0 0.0
        %3470 = vmatprep.subr.mxu0 0.0
        %3471 = vmatpush1.msra.mxu0 0.0
        %3472 = vmatprep.subr.mxu0 0.0
        %3473 = vmatpush1.msra.mxu0 0.0
        %3474 = vmatprep.subr.mxu0 0.0
        %3475 = vmatpush1.msra.mxu0 0.0
        %3476 = vmatprep.subr.mxu0 0.0
        %3477 = vmatpush1.msra.mxu0 %v3439
        %3478 = vmatprep.subr.mxu0 0.0
        %3479 = vmatpush1.msra.mxu0 %v3437
        %3480 = vmatprep.subr.mxu0 0.0
        %3481 = vmatpush2.msra.mxu0 0.0
        %3482 = vmatprep.subr.mxu0 0.0
        %3483 = vmatpush2.msra.mxu0 0.0
        %3484 = vmatprep.subr.mxu0 0.0
        %3485 = vmatpush2.msra.mxu0 0.0
        %3486 = vmatprep.subr.mxu0 0.0
        %3487 = vmatpush2.msra.mxu0 0.0
        %3488 = vmatprep.subr.mxu0 0.0
        %3489 = vmatpush2.msra.mxu0 0.0
        %3490 = vmatprep.subr.mxu0 0.0
        %3491 = vmatpush2.msra.mxu0 0.0
        %3492 = vmatprep.subr.mxu0 0.0
        %3493 = vmatpush2.msra.mxu0 0.0
        %3494 = vmatprep.subr.mxu0 0.0
        %3495 = vmatpush2.msra.mxu0 0.0
        %3496 = vmatprep.subr.mxu0 0.0
        %3497 = vmatpush2.msra.mxu0 0.0
        %3498 = vmatprep.subr.mxu0 0.0
        %3499 = vmatpush2.msra.mxu0 0.0
        %3500 = vmatprep.subr.mxu0 0.0
        %3501 = vmatpush2.msra.mxu0 0.0
        %3502 = vmatprep.subr.mxu0 0.0
        %3503 = vmatpush2.msra.mxu0 0.0
        %3504 = vmatprep.subr.mxu0 0.0
        %3505 = vmatpush2.msra.mxu0 0.0
        %3506 = vmatprep.subr.mxu0 0.0
        %3507 = vmatpush2.msra.mxu0 0.0
        %3508 = vmatprep.subr.mxu0 0.0
        %3509 = vmatpush2.msra.mxu0 0.0
        %3510 = vmatprep.subr.mxu0 0.0
        %3511 = vmatpush2.msra.mxu0 0.0
        %3512 = vmatprep.mubr.f32.mxu0 0.0
        %3513 = vmatmul.mubr.f32.gmra.mxu0 %v3443
        %v3514 = vpop.f32.mrf.mxu0
        %v3515 = vadd.f32 0.0, %v3514
        %v3516 = vpop.f32.mrf.mxu0
        %3517 = vmatprep.mubr.f32.mxu0 0.0
        %3518 = vmatmul.mubr.f32.gmra.mxu0 %v3446
        %v3519 = vpop.f32.mrf.mxu0
        %v3520 = vadd.f32 0.0, %v3519
        %v3521 = vpop.f32.mrf.mxu0
        %3522 = vdwg.mxu0
        %v3524 = vsel %vm722, %v3515, 0
        %v3527 = vsel %vm722, %v3520, 0
        %3529 = vmatprep.subr.mxu0 0.0
        %3530 = vmatpush1.msra.mxu0 0.0
        %3531 = vmatprep.subr.mxu0 0.0
        %3532 = vmatpush1.msra.mxu0 0.0
        %3533 = vmatprep.subr.mxu0 0.0
        %3534 = vmatpush1.msra.mxu0 0.0
        %3535 = vmatprep.subr.mxu0 0.0
        %3536 = vmatpush1.msra.mxu0 0.0
        %3537 = vmatprep.subr.mxu0 0.0
        %3538 = vmatpush1.msra.mxu0 0.0
        %3539 = vmatprep.subr.mxu0 0.0
        %3540 = vmatpush1.msra.mxu0 0.0
        %3541 = vmatprep.subr.mxu0 0.0
        %3542 = vmatpush1.msra.mxu0 0.0
        %3543 = vmatprep.subr.mxu0 0.0
        %3544 = vmatpush1.msra.mxu0 0.0
        %3545 = vmatprep.subr.mxu0 0.0
        %3546 = vmatpush1.msra.mxu0 0.0
        %3547 = vmatprep.subr.mxu0 0.0
        %3548 = vmatpush1.msra.mxu0 0.0
        %3549 = vmatprep.subr.mxu0 0.0
        %3550 = vmatpush1.msra.mxu0 0.0
        %3551 = vmatprep.subr.mxu0 0.0
        %3552 = vmatpush1.msra.mxu0 0.0
        %3553 = vmatprep.subr.mxu0 0.0
        %3554 = vmatpush1.msra.mxu0 %v2477
        %3555 = vmatprep.subr.mxu0 0.0
        %3556 = vmatpush1.msra.mxu0 %v2476
        %3557 = vmatprep.subr.mxu0 0.0
        %3558 = vmatpush1.msra.mxu0 %v2475
        %3559 = vmatprep.subr.mxu0 0.0
        %3560 = vmatpush1.msra.mxu0 %v2474
        %3561 = vmatprep.subr.mxu0 0.0
        %3562 = vmatpush2.msra.mxu0 0.0
        %3563 = vmatprep.subr.mxu0 0.0
        %3564 = vmatpush2.msra.mxu0 0.0
        %3565 = vmatprep.subr.mxu0 0.0
        %3566 = vmatpush2.msra.mxu0 0.0
        %3567 = vmatprep.subr.mxu0 0.0
        %3568 = vmatpush2.msra.mxu0 0.0
        %3569 = vmatprep.subr.mxu0 0.0
        %3570 = vmatpush2.msra.mxu0 0.0
        %3571 = vmatprep.subr.mxu0 0.0
        %3572 = vmatpush2.msra.mxu0 0.0
        %3573 = vmatprep.subr.mxu0 0.0
        %3574 = vmatpush2.msra.mxu0 0.0
        %3575 = vmatprep.subr.mxu0 0.0
        %3576 = vmatpush2.msra.mxu0 0.0
        %3577 = vmatprep.subr.mxu0 0.0
        %3578 = vmatpush2.msra.mxu0 0.0
        %3579 = vmatprep.subr.mxu0 0.0
        %3580 = vmatpush2.msra.mxu0 0.0
        %3581 = vmatprep.subr.mxu0 0.0
        %3582 = vmatpush2.msra.mxu0 0.0
        %3583 = vmatprep.subr.mxu0 0.0
        %3584 = vmatpush2.msra.mxu0 0.0
        %3585 = vmatprep.subr.mxu0 0.0
        %3586 = vmatpush2.msra.mxu0 0.0
        %3587 = vmatprep.subr.mxu0 0.0
        %3588 = vmatpush2.msra.mxu0 0.0
        %3589 = vmatprep.subr.mxu0 0.0
        %3590 = vmatpush2.msra.mxu0 0.0
        %3591 = vmatprep.subr.mxu0 0.0
        %3592 = vmatpush2.msra.mxu0 0.0
        %3593 = vmatprep.mubr.f32.mxu0 0.0
        %3594 = vmatmul.mubr.f32.gmra.mxu0 %v3524
        %v3595 = vpop.f32.mrf.mxu0
        %v3596 = vadd.f32 0.0, %v3595
        %v3597 = vpop.f32.mrf.mxu0
        %3598 = vmatprep.mubr.f32.mxu0 0.0
        %3599 = vmatmul.mubr.f32.gmra.mxu0 %v3527
        %v3600 = vpop.f32.mrf.mxu0
        %v3601 = vadd.f32 0.0, %v3600
        %v3602 = vpop.f32.mrf.mxu0
        %3603 = vdwg.mxu0
        %v3604 = vadd.f32 %v3319, %v3596
        %v3605 = vadd.f32 %v3320, %v3601
        %v3606 = vadd.f32 %v2234, %v3604
        %v3607 = vadd.f32 %v2235, %v3605
        %v3608 = vmul.f32 %v3606, %v3606
        %v3609 = vmul.f32 %v3607, %v3607
        %3610 = vadd.xlane.f32.xlu0 %v3608
        %v3611 = vpop.xlane.xlu0 %3610
        %3612 = vadd.xlane.f32.xlu0 %v3609
        %v3613 = vpop.xlane.xlu0 %3612
        %v3614 = vmul.f32 %v3611, %v488
        %v3615 = vmul.f32 %v3613, %v488
        %v3616 = vadd.f32 %v3614, 1e-06
        %v3617 = vadd.f32 %v3615, 1e-06
        %v3618 = vrsqrt.pop %v3616
        %v3619 = vrsqrt.pop %v3617
        %v3620 = vmul.f32 %v3606, %v3618
        %v3621 = vmul.f32 %v3607, %v3619
        %s3622 = scalar_lea.vmem %s5, 1
        %v3623 = vld [vmem:[%s3622] sm:$0x1]
        %v3625 = vlaneseq
        %v3626 = vshrl.u32 %v3625, 7
        %v3627 = vsub.s32 0, %v3626
        %v3628 = vrot.slane %v3623, %v3627
        %v3630 = vmul.f32 %v3620, %v3628
        %v3631 = vmul.f32 %v3621, %v3628
        %s3632 = scalar_lea.vmem [#allocation5], 512
        %v3633 = vld [vmem:[%s3632] sm:$0xff]
        %v3634 = vld [vmem:[%s3632 + $0x8] sm:$0xff]
        %v3635 = vld [vmem:[%s3632 + $0x10] sm:$0xff]
        %v3636 = vld [vmem:[%s3632 + $0x18] sm:$0xff]
        %v3637 = vld [vmem:[%s3632 + $0x20] sm:$0xff]
        %v3638 = vld [vmem:[%s3632 + $0x28] sm:$0xff]
        %v3639 = vld [vmem:[%s3632 + $0x30] sm:$0xff]
        %v3640 = vld [vmem:[%s3632 + $0x38] sm:$0xff]
        %v3641 = vld [vmem:[%s3632 + $0x40] sm:$0xff]
        %v3642 = vld [vmem:[%s3632 + $0x48] sm:$0xff]
        %v3643 = vld [vmem:[%s3632 + $0x50] sm:$0xff]
        %v3644 = vld [vmem:[%s3632 + $0x58] sm:$0xff]
        %v3645 = vld [vmem:[%s3632 + $0x60] sm:$0xff]
        %v3646 = vld [vmem:[%s3632 + $0x68] sm:$0xff]
        %v3647 = vld [vmem:[%s3632 + $0x70] sm:$0xff]
        %v3648 = vld [vmem:[%s3632 + $0x78] sm:$0xff]
        %v3649 = vld [vmem:[%s3632 + $0x80] sm:$0xff]
        %v3650 = vld [vmem:[%s3632 + $0x88] sm:$0xff]
        %v3651 = vld [vmem:[%s3632 + $0x90] sm:$0xff]
        %v3652 = vld [vmem:[%s3632 + $0x98] sm:$0xff]
        %v3653 = vld [vmem:[%s3632 + $0xa0] sm:$0xff]
        %v3654 = vld [vmem:[%s3632 + $0xa8] sm:$0xff]
        %v3655 = vld [vmem:[%s3632 + $0xb0] sm:$0xff]
        %v3656 = vld [vmem:[%s3632 + $0xb8] sm:$0xff]
        %v3657 = vld [vmem:[%s3632 + $0xc0] sm:$0xff]
        %v3658 = vld [vmem:[%s3632 + $0xc8] sm:$0xff]
        %v3659 = vld [vmem:[%s3632 + $0xd0] sm:$0xff]
        %v3660 = vld [vmem:[%s3632 + $0xd8] sm:$0xff]
        %v3661 = vld [vmem:[%s3632 + $0xe0] sm:$0xff]
        %v3662 = vld [vmem:[%s3632 + $0xe8] sm:$0xff]
        %v3663 = vld [vmem:[%s3632 + $0xf0] sm:$0xff]
        %v3664 = vld [vmem:[%s3632 + $0xf8] sm:$0xff]
        %v3665 = vld [vmem:[%s3632 + $0x100] sm:$0xff]
        %v3666 = vld [vmem:[%s3632 + $0x108] sm:$0xff]
        %v3667 = vld [vmem:[%s3632 + $0x110] sm:$0xff]
        %v3668 = vld [vmem:[%s3632 + $0x118] sm:$0xff]
        %v3669 = vld [vmem:[%s3632 + $0x120] sm:$0xff]
        %v3670 = vld [vmem:[%s3632 + $0x128] sm:$0xff]
        %v3671 = vld [vmem:[%s3632 + $0x130] sm:$0xff]
        %v3672 = vld [vmem:[%s3632 + $0x138] sm:$0xff]
        %v3673 = vld [vmem:[%s3632 + $0x140] sm:$0xff]
        %v3674 = vld [vmem:[%s3632 + $0x148] sm:$0xff]
        %v3675 = vld [vmem:[%s3632 + $0x150] sm:$0xff]
        %v3676 = vld [vmem:[%s3632 + $0x158] sm:$0xff]
        %v3677 = vld [vmem:[%s3632 + $0x160] sm:$0xff]
        %v3678 = vld [vmem:[%s3632 + $0x168] sm:$0xff]
        %v3679 = vld [vmem:[%s3632 + $0x170] sm:$0xff]
        %v3680 = vld [vmem:[%s3632 + $0x178] sm:$0xff]
        %v3681 = vld [vmem:[%s3632 + $0x180] sm:$0xff]
        %v3682 = vld [vmem:[%s3632 + $0x188] sm:$0xff]
        %v3683 = vld [vmem:[%s3632 + $0x190] sm:$0xff]
        %v3684 = vld [vmem:[%s3632 + $0x198] sm:$0xff]
        %v3685 = vld [vmem:[%s3632 + $0x1a0] sm:$0xff]
        %v3686 = vld [vmem:[%s3632 + $0x1a8] sm:$0xff]
        %v3687 = vld [vmem:[%s3632 + $0x1b0] sm:$0xff]
        %v3688 = vld [vmem:[%s3632 + $0x1b8] sm:$0xff]
        %v3689 = vld [vmem:[%s3632 + $0x1c0] sm:$0xff]
        %v3690 = vld [vmem:[%s3632 + $0x1c8] sm:$0xff]
        %v3691 = vld [vmem:[%s3632 + $0x1d0] sm:$0xff]
        %v3692 = vld [vmem:[%s3632 + $0x1d8] sm:$0xff]
        %v3693 = vld [vmem:[%s3632 + $0x1e0] sm:$0xff]
        %v3694 = vld [vmem:[%s3632 + $0x1e8] sm:$0xff]
        %v3695 = vld [vmem:[%s3632 + $0x1f0] sm:$0xff]
        %v3696 = vld [vmem:[%s3632 + $0x1f8] sm:$0xff]
        %3697 = vmatprep.subr.mxu0 %v3694
        %3698 = vmatpush1.msra.mxu0 %v3693
        %3699 = vmatprep.subr.mxu0 %v3690
        %3700 = vmatpush1.msra.mxu0 %v3689
        %3701 = vmatprep.subr.mxu0 %v3686
        %3702 = vmatpush1.msra.mxu0 %v3685
        %3703 = vmatprep.subr.mxu0 %v3682
        %3704 = vmatpush1.msra.mxu0 %v3681
        %3705 = vmatprep.subr.mxu0 %v3678
        %3706 = vmatpush1.msra.mxu0 %v3677
        %3707 = vmatprep.subr.mxu0 %v3674
        %3708 = vmatpush1.msra.mxu0 %v3673
        %3709 = vmatprep.subr.mxu0 %v3670
        %3710 = vmatpush1.msra.mxu0 %v3669
        %3711 = vmatprep.subr.mxu0 %v3666
        %3712 = vmatpush1.msra.mxu0 %v3665
        %3713 = vmatprep.subr.mxu0 %v3662
        %3714 = vmatpush1.msra.mxu0 %v3661
        %3715 = vmatprep.subr.mxu0 %v3658
        %3716 = vmatpush1.msra.mxu0 %v3657
        %3717 = vmatprep.subr.mxu0 %v3654
        %3718 = vmatpush1.msra.mxu0 %v3653
        %3719 = vmatprep.subr.mxu0 %v3650
        %3720 = vmatpush1.msra.mxu0 %v3649
        %3721 = vmatprep.subr.mxu0 %v3646
        %3722 = vmatpush1.msra.mxu0 %v3645
        %3723 = vmatprep.subr.mxu0 %v3642
        %3724 = vmatpush1.msra.mxu0 %v3641
        %3725 = vmatprep.subr.mxu0 %v3638
        %3726 = vmatpush1.msra.mxu0 %v3637
        %3727 = vmatprep.subr.mxu0 %v3634
        %3728 = vmatpush1.msra.mxu0 %v3633
        %3729 = vmatprep.subr.mxu0 0.0
        %3730 = vmatpush2.msra.mxu0 0.0
        %3731 = vmatprep.subr.mxu0 0.0
        %3732 = vmatpush2.msra.mxu0 0.0
        %3733 = vmatprep.subr.mxu0 0.0
        %3734 = vmatpush2.msra.mxu0 0.0
        %3735 = vmatprep.subr.mxu0 0.0
        %3736 = vmatpush2.msra.mxu0 0.0
        %3737 = vmatprep.subr.mxu0 0.0
        %3738 = vmatpush2.msra.mxu0 0.0
        %3739 = vmatprep.subr.mxu0 0.0
        %3740 = vmatpush2.msra.mxu0 0.0
        %3741 = vmatprep.subr.mxu0 0.0
        %3742 = vmatpush2.msra.mxu0 0.0
        %3743 = vmatprep.subr.mxu0 0.0
        %3744 = vmatpush2.msra.mxu0 0.0
        %3745 = vmatprep.subr.mxu0 0.0
        %3746 = vmatpush2.msra.mxu0 0.0
        %3747 = vmatprep.subr.mxu0 0.0
        %3748 = vmatpush2.msra.mxu0 0.0
        %3749 = vmatprep.subr.mxu0 0.0
        %3750 = vmatpush2.msra.mxu0 0.0
        %3751 = vmatprep.subr.mxu0 0.0
        %3752 = vmatpush2.msra.mxu0 0.0
        %3753 = vmatprep.subr.mxu0 0.0
        %3754 = vmatpush2.msra.mxu0 0.0
        %3755 = vmatprep.subr.mxu0 0.0
        %3756 = vmatpush2.msra.mxu0 0.0
        %3757 = vmatprep.subr.mxu0 0.0
        %3758 = vmatpush2.msra.mxu0 0.0
        %3759 = vmatprep.subr.mxu0 0.0
        %3760 = vmatpush2.msra.mxu0 0.0
        %3761 = vmatprep.mubr.f32.mxu0 0.0
        %3762 = vmatmul.mubr.f32.gmra.mxu0 %v3630
        %v3763 = vpop.f32.mrf.mxu0
        %v3764 = vadd.f32 0.0, %v3763
        %v3765 = vpop.f32.mrf.mxu0
        %v3766 = vadd.f32 0.0, %v3765
        %3767 = vmatprep.mubr.f32.mxu0 0.0
        %3768 = vmatmul.mubr.f32.gmra.mxu0 %v3631
        %v3769 = vpop.f32.mrf.mxu0
        %v3770 = vadd.f32 0.0, %v3769
        %v3771 = vpop.f32.mrf.mxu0
        %v3772 = vadd.f32 0.0, %v3771
        %3773 = vdwg.mxu0
        %3774 = vmatprep.subr.mxu0 %v3696
        %3775 = vmatpush1.msra.mxu0 %v3695
        %3776 = vmatprep.subr.mxu0 %v3692
        %3777 = vmatpush1.msra.mxu0 %v3691
        %3778 = vmatprep.subr.mxu0 %v3688
        %3779 = vmatpush1.msra.mxu0 %v3687
        %3780 = vmatprep.subr.mxu0 %v3684
        %3781 = vmatpush1.msra.mxu0 %v3683
        %3782 = vmatprep.subr.mxu0 %v3680
        %3783 = vmatpush1.msra.mxu0 %v3679
        %3784 = vmatprep.subr.mxu0 %v3676
        %3785 = vmatpush1.msra.mxu0 %v3675
        %3786 = vmatprep.subr.mxu0 %v3672
        %3787 = vmatpush1.msra.mxu0 %v3671
        %3788 = vmatprep.subr.mxu0 %v3668
        %3789 = vmatpush1.msra.mxu0 %v3667
        %3790 = vmatprep.subr.mxu0 %v3664
        %3791 = vmatpush1.msra.mxu0 %v3663
        %3792 = vmatprep.subr.mxu0 %v3660
        %3793 = vmatpush1.msra.mxu0 %v3659
        %3794 = vmatprep.subr.mxu0 %v3656
        %3795 = vmatpush1.msra.mxu0 %v3655
        %3796 = vmatprep.subr.mxu0 %v3652
        %3797 = vmatpush1.msra.mxu0 %v3651
        %3798 = vmatprep.subr.mxu0 %v3648
        %3799 = vmatpush1.msra.mxu0 %v3647
        %3800 = vmatprep.subr.mxu0 %v3644
        %3801 = vmatpush1.msra.mxu0 %v3643
        %3802 = vmatprep.subr.mxu0 %v3640
        %3803 = vmatpush1.msra.mxu0 %v3639
        %3804 = vmatprep.subr.mxu0 %v3636
        %3805 = vmatpush1.msra.mxu0 %v3635
        %3806 = vmatprep.subr.mxu0 0.0
        %3807 = vmatpush2.msra.mxu0 0.0
        %3808 = vmatprep.subr.mxu0 0.0
        %3809 = vmatpush2.msra.mxu0 0.0
        %3810 = vmatprep.subr.mxu0 0.0
        %3811 = vmatpush2.msra.mxu0 0.0
        %3812 = vmatprep.subr.mxu0 0.0
        %3813 = vmatpush2.msra.mxu0 0.0
        %3814 = vmatprep.subr.mxu0 0.0
        %3815 = vmatpush2.msra.mxu0 0.0
        %3816 = vmatprep.subr.mxu0 0.0
        %3817 = vmatpush2.msra.mxu0 0.0
        %3818 = vmatprep.subr.mxu0 0.0
        %3819 = vmatpush2.msra.mxu0 0.0
        %3820 = vmatprep.subr.mxu0 0.0
        %3821 = vmatpush2.msra.mxu0 0.0
        %3822 = vmatprep.subr.mxu0 0.0
        %3823 = vmatpush2.msra.mxu0 0.0
        %3824 = vmatprep.subr.mxu0 0.0
        %3825 = vmatpush2.msra.mxu0 0.0
        %3826 = vmatprep.subr.mxu0 0.0
        %3827 = vmatpush2.msra.mxu0 0.0
        %3828 = vmatprep.subr.mxu0 0.0
        %3829 = vmatpush2.msra.mxu0 0.0
        %3830 = vmatprep.subr.mxu0 0.0
        %3831 = vmatpush2.msra.mxu0 0.0
        %3832 = vmatprep.subr.mxu0 0.0
        %3833 = vmatpush2.msra.mxu0 0.0
        %3834 = vmatprep.subr.mxu0 0.0
        %3835 = vmatpush2.msra.mxu0 0.0
        %3836 = vmatprep.subr.mxu0 0.0
        %3837 = vmatpush2.msra.mxu0 0.0
        %3838 = vmatprep.mubr.f32.mxu0 0.0
        %3839 = vmatmul.mubr.f32.gmra.mxu0 %v3630
        %v3840 = vpop.f32.mrf.mxu0
        %v3841 = vadd.f32 0.0, %v3840
        %v3842 = vpop.f32.mrf.mxu0
        %v3843 = vadd.f32 0.0, %v3842
        %3844 = vmatprep.mubr.f32.mxu0 0.0
        %3845 = vmatmul.mubr.f32.gmra.mxu0 %v3631
        %v3846 = vpop.f32.mrf.mxu0
        %v3847 = vadd.f32 0.0, %v3846
        %v3848 = vpop.f32.mrf.mxu0
        %v3849 = vadd.f32 0.0, %v3848
        %3850 = vdwg.mxu0
        %v3851 = vxor.u32 %v3764, 2147483648
        %v3852 = vxor.u32 %v3766, 2147483648
        %v3853 = vxor.u32 %v3770, 2147483648
        %v3854 = vxor.u32 %v3772, 2147483648
        %v3855 = vmul.f32 %v3851, 1.442695
        %v3856 = vpow.pop %v3855
        %v3857 = vmul.f32 %v3852, 1.442695
        %v3858 = vpow.pop %v3857
        %v3859 = vmul.f32 %v3853, 1.442695
        %v3860 = vpow.pop %v3859
        %v3861 = vmul.f32 %v3854, 1.442695
        %v3862 = vpow.pop %v3861
        %v3863 = vadd.f32 %v3856, 1.0
        %v3864 = vadd.f32 %v3858, 1.0
        %v3865 = vadd.f32 %v3860, 1.0
        %v3866 = vadd.f32 %v3862, 1.0
        %v3867 = vrcp.pop %v3863
        %v3868 = vmul.f32 1.0, %v3867
        %v3869 = vrcp.pop %v3864
        %v3870 = vmul.f32 1.0, %v3869
        %v3871 = vrcp.pop %v3865
        %v3872 = vmul.f32 1.0, %v3871
        %v3873 = vrcp.pop %v3866
        %v3874 = vmul.f32 1.0, %v3873
        %v3875 = vmul.f32 %v3764, %v3868
        %v3876 = vmul.f32 %v3766, %v3870
        %v3877 = vmul.f32 %v3770, %v3872
        %v3878 = vmul.f32 %v3772, %v3874
        %v3879 = vmul.f32 %v3875, %v3841
        %v3880 = vmul.f32 %v3876, %v3843
        %v3881 = vmul.f32 %v3877, %v3847
        %v3882 = vmul.f32 %v3878, %v3849
        %s3883 = scalar_lea.vmem [#allocation7], 256
        %v3884 = vld [vmem:[%s3883] sm:$0xff]
        %v3885 = vld [vmem:[%s3883 + $0x8] sm:$0xff]
        %v3886 = vld [vmem:[%s3883 + $0x10] sm:$0xff]
        %v3887 = vld [vmem:[%s3883 + $0x18] sm:$0xff]
        %v3888 = vld [vmem:[%s3883 + $0x20] sm:$0xff]
        %v3889 = vld [vmem:[%s3883 + $0x28] sm:$0xff]
        %v3890 = vld [vmem:[%s3883 + $0x30] sm:$0xff]
        %v3891 = vld [vmem:[%s3883 + $0x38] sm:$0xff]
        %v3892 = vld [vmem:[%s3883 + $0x40] sm:$0xff]
        %v3893 = vld [vmem:[%s3883 + $0x48] sm:$0xff]
        %v3894 = vld [vmem:[%s3883 + $0x50] sm:$0xff]
        %v3895 = vld [vmem:[%s3883 + $0x58] sm:$0xff]
        %v3896 = vld [vmem:[%s3883 + $0x60] sm:$0xff]
        %v3897 = vld [vmem:[%s3883 + $0x68] sm:$0xff]
        %v3898 = vld [vmem:[%s3883 + $0x70] sm:$0xff]
        %v3899 = vld [vmem:[%s3883 + $0x78] sm:$0xff]
        %v3900 = vld [vmem:[%s3883 + $0x80] sm:$0xff]
        %v3901 = vld [vmem:[%s3883 + $0x88] sm:$0xff]
        %v3902 = vld [vmem:[%s3883 + $0x90] sm:$0xff]
        %v3903 = vld [vmem:[%s3883 + $0x98] sm:$0xff]
        %v3904 = vld [vmem:[%s3883 + $0xa0] sm:$0xff]
        %v3905 = vld [vmem:[%s3883 + $0xa8] sm:$0xff]
        %v3906 = vld [vmem:[%s3883 + $0xb0] sm:$0xff]
        %v3907 = vld [vmem:[%s3883 + $0xb8] sm:$0xff]
        %v3908 = vld [vmem:[%s3883 + $0xc0] sm:$0xff]
        %v3909 = vld [vmem:[%s3883 + $0xc8] sm:$0xff]
        %v3910 = vld [vmem:[%s3883 + $0xd0] sm:$0xff]
        %v3911 = vld [vmem:[%s3883 + $0xd8] sm:$0xff]
        %v3912 = vld [vmem:[%s3883 + $0xe0] sm:$0xff]
        %v3913 = vld [vmem:[%s3883 + $0xe8] sm:$0xff]
        %v3914 = vld [vmem:[%s3883 + $0xf0] sm:$0xff]
        %v3915 = vld [vmem:[%s3883 + $0xf8] sm:$0xff]
        %3916 = vmatprep.subr.mxu0 0.0
        %3917 = vmatpush1.msra.mxu0 %v3899
        %3918 = vmatprep.subr.mxu0 0.0
        %3919 = vmatpush1.msra.mxu0 %v3898
        %3920 = vmatprep.subr.mxu0 0.0
        %3921 = vmatpush1.msra.mxu0 %v3897
        %3922 = vmatprep.subr.mxu0 0.0
        %3923 = vmatpush1.msra.mxu0 %v3896
        %3924 = vmatprep.subr.mxu0 0.0
        %3925 = vmatpush1.msra.mxu0 %v3895
        %3926 = vmatprep.subr.mxu0 0.0
        %3927 = vmatpush1.msra.mxu0 %v3894
        %3928 = vmatprep.subr.mxu0 0.0
        %3929 = vmatpush1.msra.mxu0 %v3893
        %3930 = vmatprep.subr.mxu0 0.0
        %3931 = vmatpush1.msra.mxu0 %v3892
        %3932 = vmatprep.subr.mxu0 0.0
        %3933 = vmatpush1.msra.mxu0 %v3891
        %3934 = vmatprep.subr.mxu0 0.0
        %3935 = vmatpush1.msra.mxu0 %v3890
        %3936 = vmatprep.subr.mxu0 0.0
        %3937 = vmatpush1.msra.mxu0 %v3889
        %3938 = vmatprep.subr.mxu0 0.0
        %3939 = vmatpush1.msra.mxu0 %v3888
        %3940 = vmatprep.subr.mxu0 0.0
        %3941 = vmatpush1.msra.mxu0 %v3887
        %3942 = vmatprep.subr.mxu0 0.0
        %3943 = vmatpush1.msra.mxu0 %v3886
        %3944 = vmatprep.subr.mxu0 0.0
        %3945 = vmatpush1.msra.mxu0 %v3885
        %3946 = vmatprep.subr.mxu0 0.0
        %3947 = vmatpush1.msra.mxu0 %v3884
        %3948 = vmatprep.subr.mxu0 0.0
        %3949 = vmatpush2.msra.mxu0 %v3915
        %3950 = vmatprep.subr.mxu0 0.0
        %3951 = vmatpush2.msra.mxu0 %v3914
        %3952 = vmatprep.subr.mxu0 0.0
        %3953 = vmatpush2.msra.mxu0 %v3913
        %3954 = vmatprep.subr.mxu0 0.0
        %3955 = vmatpush2.msra.mxu0 %v3912
        %3956 = vmatprep.subr.mxu0 0.0
        %3957 = vmatpush2.msra.mxu0 %v3911
        %3958 = vmatprep.subr.mxu0 0.0
        %3959 = vmatpush2.msra.mxu0 %v3910
        %3960 = vmatprep.subr.mxu0 0.0
        %3961 = vmatpush2.msra.mxu0 %v3909
        %3962 = vmatprep.subr.mxu0 0.0
        %3963 = vmatpush2.msra.mxu0 %v3908
        %3964 = vmatprep.subr.mxu0 0.0
        %3965 = vmatpush2.msra.mxu0 %v3907
        %3966 = vmatprep.subr.mxu0 0.0
        %3967 = vmatpush2.msra.mxu0 %v3906
        %3968 = vmatprep.subr.mxu0 0.0
        %3969 = vmatpush2.msra.mxu0 %v3905
        %3970 = vmatprep.subr.mxu0 0.0
        %3971 = vmatpush2.msra.mxu0 %v3904
        %3972 = vmatprep.subr.mxu0 0.0
        %3973 = vmatpush2.msra.mxu0 %v3903
        %3974 = vmatprep.subr.mxu0 0.0
        %3975 = vmatpush2.msra.mxu0 %v3902
        %3976 = vmatprep.subr.mxu0 0.0
        %3977 = vmatpush2.msra.mxu0 %v3901
        %3978 = vmatprep.subr.mxu0 0.0
        %3979 = vmatpush2.msra.mxu0 %v3900
        %3980 = vmatprep.mubr.f32.mxu0 %v3880
        %3981 = vmatmul.mubr.f32.gmra.mxu0 %v3879
        %v3982 = vpop.f32.mrf.mxu0
        %v3983 = vadd.f32 0.0, %v3982
        %v3984 = vpop.f32.mrf.mxu0
        %3985 = vmatprep.mubr.f32.mxu0 %v3882
        %3986 = vmatmul.mubr.f32.gmra.mxu0 %v3881
        %v3987 = vpop.f32.mrf.mxu0
        %v3988 = vadd.f32 0.0, %v3987
        %v3989 = vpop.f32.mrf.mxu0
        %3990 = vdwg.mxu0
        %v3991 = vadd.f32 %v3606, %v3983
        %v3992 = vadd.f32 %v3607, %v3988
        %v3993 = vmul.f32 %v3991, %v3991
        %v3994 = vmul.f32 %v3992, %v3992
        %3995 = vadd.xlane.f32.xlu0 %v3993
        %v3996 = vpop.xlane.xlu0 %3995
        %3997 = vadd.xlane.f32.xlu0 %v3994
        %v3998 = vpop.xlane.xlu0 %3997
        %v3999 = vmul.f32 %v3996, %v488
        %v4000 = vmul.f32 %v3998, %v488
        %v4001 = vadd.f32 %v3999, 1e-06
        %v4002 = vadd.f32 %v4000, 1e-06
        %v4003 = vrsqrt.pop %v4001
        %v4004 = vrsqrt.pop %v4002
        %v4005 = vmul.f32 %v3991, %v4003
        %v4006 = vmul.f32 %v3992, %v4004
        %v4007 = vld [vmem:[%s8] sm:$0x1]
        %v4009 = vlaneseq
        %v4010 = vshrl.u32 %v4009, 7
        %v4011 = vsub.s32 0, %v4010
        %v4012 = vrot.slane %v4007, %v4011
        %v4014 = vmul.f32 %v4005, %v4012
        %v4015 = vmul.f32 %v4006, %v4012
        %v4016 = vld [vmem:[#allocation8] sm:$0xff]
        %v4017 = vld [vmem:[#allocation8 + $0x8] sm:$0xff]
        %v4018 = vld [vmem:[#allocation8 + $0x10] sm:$0xff]
        %v4019 = vld [vmem:[#allocation8 + $0x18] sm:$0xff]
        %v4020 = vld [vmem:[#allocation8 + $0x20] sm:$0xff]
        %v4021 = vld [vmem:[#allocation8 + $0x28] sm:$0xff]
        %v4022 = vld [vmem:[#allocation8 + $0x30] sm:$0xff]
        %v4023 = vld [vmem:[#allocation8 + $0x38] sm:$0xff]
        %v4024 = vld [vmem:[#allocation8 + $0x40] sm:$0xff]
        %v4025 = vld [vmem:[#allocation8 + $0x48] sm:$0xff]
        %v4026 = vld [vmem:[#allocation8 + $0x50] sm:$0xff]
        %v4027 = vld [vmem:[#allocation8 + $0x58] sm:$0xff]
        %v4028 = vld [vmem:[#allocation8 + $0x60] sm:$0xff]
        %v4029 = vld [vmem:[#allocation8 + $0x68] sm:$0xff]
        %v4030 = vld [vmem:[#allocation8 + $0x70] sm:$0xff]
        %v4031 = vld [vmem:[#allocation8 + $0x78] sm:$0xff]
        %v4032 = vld [vmem:[#allocation8 + $0x80] sm:$0xff]
        %v4033 = vld [vmem:[#allocation8 + $0x88] sm:$0xff]
        %v4034 = vld [vmem:[#allocation8 + $0x90] sm:$0xff]
        %v4035 = vld [vmem:[#allocation8 + $0x98] sm:$0xff]
        %v4036 = vld [vmem:[#allocation8 + $0xa0] sm:$0xff]
        %v4037 = vld [vmem:[#allocation8 + $0xa8] sm:$0xff]
        %v4038 = vld [vmem:[#allocation8 + $0xb0] sm:$0xff]
        %v4039 = vld [vmem:[#allocation8 + $0xb8] sm:$0xff]
        %v4040 = vld [vmem:[#allocation8 + $0xc0] sm:$0xff]
        %v4041 = vld [vmem:[#allocation8 + $0xc8] sm:$0xff]
        %v4042 = vld [vmem:[#allocation8 + $0xd0] sm:$0xff]
        %v4043 = vld [vmem:[#allocation8 + $0xd8] sm:$0xff]
        %v4044 = vld [vmem:[#allocation8 + $0xe0] sm:$0xff]
        %v4045 = vld [vmem:[#allocation8 + $0xe8] sm:$0xff]
        %v4046 = vld [vmem:[#allocation8 + $0xf0] sm:$0xff]
        %v4047 = vld [vmem:[#allocation8 + $0xf8] sm:$0xff]
        %4048 = vmatprep.subr.mxu0 %v4047
        %4049 = vmatpush1.msra.mxu0 %v4046
        %4050 = vmatprep.subr.mxu0 %v4045
        %4051 = vmatpush1.msra.mxu0 %v4044
        %4052 = vmatprep.subr.mxu0 %v4043
        %4053 = vmatpush1.msra.mxu0 %v4042
        %4054 = vmatprep.subr.mxu0 %v4041
        %4055 = vmatpush1.msra.mxu0 %v4040
        %4056 = vmatprep.subr.mxu0 %v4039
        %4057 = vmatpush1.msra.mxu0 %v4038
        %4058 = vmatprep.subr.mxu0 %v4037
        %4059 = vmatpush1.msra.mxu0 %v4036
        %4060 = vmatprep.subr.mxu0 %v4035
        %4061 = vmatpush1.msra.mxu0 %v4034
        %4062 = vmatprep.subr.mxu0 %v4033
        %4063 = vmatpush1.msra.mxu0 %v4032
        %4064 = vmatprep.subr.mxu0 %v4031
        %4065 = vmatpush1.msra.mxu0 %v4030
        %4066 = vmatprep.subr.mxu0 %v4029
        %4067 = vmatpush1.msra.mxu0 %v4028
        %4068 = vmatprep.subr.mxu0 %v4027
        %4069 = vmatpush1.msra.mxu0 %v4026
        %4070 = vmatprep.subr.mxu0 %v4025
        %4071 = vmatpush1.msra.mxu0 %v4024
        %4072 = vmatprep.subr.mxu0 %v4023
        %4073 = vmatpush1.msra.mxu0 %v4022
        %4074 = vmatprep.subr.mxu0 %v4021
        %4075 = vmatpush1.msra.mxu0 %v4020
        %4076 = vmatprep.subr.mxu0 %v4019
        %4077 = vmatpush1.msra.mxu0 %v4018
        %4078 = vmatprep.subr.mxu0 %v4017
        %4079 = vmatpush1.msra.mxu0 %v4016
        %4080 = vmatprep.subr.mxu0 0.0
        %4081 = vmatpush2.msra.mxu0 0.0
        %4082 = vmatprep.subr.mxu0 0.0
        %4083 = vmatpush2.msra.mxu0 0.0
        %4084 = vmatprep.subr.mxu0 0.0
        %4085 = vmatpush2.msra.mxu0 0.0
        %4086 = vmatprep.subr.mxu0 0.0
        %4087 = vmatpush2.msra.mxu0 0.0
        %4088 = vmatprep.subr.mxu0 0.0
        %4089 = vmatpush2.msra.mxu0 0.0
        %4090 = vmatprep.subr.mxu0 0.0
        %4091 = vmatpush2.msra.mxu0 0.0
        %4092 = vmatprep.subr.mxu0 0.0
        %4093 = vmatpush2.msra.mxu0 0.0
        %4094 = vmatprep.subr.mxu0 0.0
        %4095 = vmatpush2.msra.mxu0 0.0
        %4096 = vmatprep.subr.mxu0 0.0
        %4097 = vmatpush2.msra.mxu0 0.0
        %4098 = vmatprep.subr.mxu0 0.0
        %4099 = vmatpush2.msra.mxu0 0.0
        %4100 = vmatprep.subr.mxu0 0.0
        %4101 = vmatpush2.msra.mxu0 0.0
        %4102 = vmatprep.subr.mxu0 0.0
        %4103 = vmatpush2.msra.mxu0 0.0
        %4104 = vmatprep.subr.mxu0 0.0
        %4105 = vmatpush2.msra.mxu0 0.0
        %4106 = vmatprep.subr.mxu0 0.0
        %4107 = vmatpush2.msra.mxu0 0.0
        %4108 = vmatprep.subr.mxu0 0.0
        %4109 = vmatpush2.msra.mxu0 0.0
        %4110 = vmatprep.subr.mxu0 0.0
        %4111 = vmatpush2.msra.mxu0 0.0
        %4112 = vmatprep.mubr.f32.mxu0 0.0
        %4113 = vmatmul.mubr.f32.gmra.mxu0 %v4014
        %v4114 = vpop.f32.mrf.mxu0
        %v4115 = vadd.f32 0.0, %v4114
        %v4116 = vpop.f32.mrf.mxu0
        %v4117 = vadd.f32 0.0, %v4116
        %4118 = vmatprep.mubr.f32.mxu0 0.0
        %4119 = vmatmul.mubr.f32.gmra.mxu0 %v4015
        %v4120 = vpop.f32.mrf.mxu0
        %v4121 = vadd.f32 0.0, %v4120
        %v4122 = vpop.f32.mrf.mxu0
        %v4123 = vadd.f32 0.0, %v4122
        %4124 = vdwg.mxu0
        %4125 = vst [vmem:[%s454] sm:$0xff] %v4115
        %4126 = vst [vmem:[%s454 + $0x8] sm:$0xff] %v4117
        %4127 = vst [vmem:[%s454 + $0x10] sm:$0xff] %v4121
        %4128 = vst [vmem:[%s454 + $0x18] sm:$0xff] %v4123
        %v4129 = vld [vmem:[%s469] sm:$0xff]
        %v4130 = vld [vmem:[%s469 + $0x8] sm:$0xff]
        %vm4131 = vcmp.ge.s32.totalorder %v4129, 0
        %vm4132 = vcmp.ge.s32.totalorder %v4130, 0
        %v4133 = vsel %vm4131, 1, 0
        %v4134 = vsel %vm4132, 1, 0
        %v4135 = vcvt.s32.f32 %v4133
        %v4136 = vcvt.s32.f32 %v4134
        %v4137 = vmax.f32 %v4115, %v4117
        %4138 = vmax.xlane.f32.xlu0 %v4137
        %v4139 = vpop.xlane.xlu0 %4138
        %v4140 = vmax.f32 %v4121, %v4123
        %4141 = vmax.xlane.f32.xlu0 %v4140
        %v4142 = vpop.xlane.xlu0 %4141
        %v4143 = vsub.f32 %v4115, %v4139
        %v4144 = vsub.f32 %v4117, %v4139
        %v4145 = vsub.f32 %v4121, %v4142
        %v4146 = vsub.f32 %v4123, %v4142
        %v4147 = vmul.f32 %v4143, 1.442695
        %v4148 = vpow.pop %v4147
        %v4149 = vmul.f32 %v4144, 1.442695
        %v4150 = vpow.pop %v4149
        %v4151 = vmul.f32 %v4145, 1.442695
        %v4152 = vpow.pop %v4151
        %v4153 = vmul.f32 %v4146, 1.442695
        %v4154 = vpow.pop %v4153
        %v4155 = vadd.f32 %v4148, %v4150
        %4156 = vadd.xlane.f32.xlu0 %v4155
        %v4157 = vpop.xlane.xlu0 %4156
        %v4158 = vadd.f32 %v4152, %v4154
        %4159 = vadd.xlane.f32.xlu0 %v4158
        %v4160 = vpop.xlane.xlu0 %4159
        %v4161 = vlog2.pop %v4157
        %v4162 = vmul.f32 %v4161, 0.6931472
        %v4163 = vlog2.pop %v4160
        %v4164 = vmul.f32 %v4163, 0.6931472
        %v4165 = vadd.f32 %v4139, %v4162
        %v4166 = vadd.f32 %v4142, %v4164
        %v4167 = vadd.s32 %v479, 128
        %4168 = vset.pattern.permute.xlu0 0
        %4169 = vperm.xlu0 %4168, %v4129
        %v4170 = vpop.permute.xlu0 %4169
        %4171 = vset.pattern.permute.xlu0 0
        %4172 = vperm.xlu0 %4171, %v4130
        %v4173 = vpop.permute.xlu0 %4172
        %vm4174 = vcmp.eq.s32.totalorder %v479, %v4170
        %vm4175 = vcmp.eq.s32.totalorder %v4167, %v4170
        %vm4176 = vcmp.eq.s32.totalorder %v479, %v4173
        %vm4177 = vcmp.eq.s32.totalorder %v4167, %v4173
        %v4178 = vsel %vm4174, %v4115, 0.0
        %v4179 = vsel %vm4175, %v4117, 0.0
        %v4180 = vsel %vm4176, %v4121, 0.0
        %v4181 = vsel %vm4177, %v4123, 0.0
        %v4182 = vadd.f32 %v4178, %v4179
        %4183 = vadd.xlane.f32.xlu0 %v4182
        %v4184 = vpop.xlane.xlu0 %4183
        %v4185 = vadd.f32 %v4180, %v4181
        %4186 = vadd.xlane.f32.xlu0 %v4185
        %v4187 = vpop.xlane.xlu0 %4186
        %v4188 = vmul.f32 %v4135, %v4165
        %v4189 = vmul.f32 %v4136, %v4166
        %v4190 = vsub.f32 %v4188, %v4184
        %v4191 = vsub.f32 %v4189, %v4187
        %vm4192 = vcmask 7168
        %v4193 = vsel %vm4192, %v4190, 0.0
        %v4194 = vsel %vm4192, %v4191, 0.0
        %v4195 = vadd.f32 %v4193, %v4194
        %v4196 = vrot.slane %v4195, 4
        %v4197 = vadd.f32 %v4195, %v4196
        %v4198 = vrot.slane %v4197, 2
        %v4199 = vadd.f32 %v4197, %v4198
        %v4200 = vrot.slane %v4199, 1
        %v4201 = vadd.f32 %v4199, %v4200
        %vm4202 = vcmask 0
        %4203 = vst.msk [vmem:[%s472] sm:$0x1] %vm4202, %v4201
        %s4204 = sand.u32 %s257, 1
        %s4205 = scalar_lea.sflag [#allocation4], %s4204
        %s4206 = sand.u32 %s257, 1
        %s4207 = smul.addr %s4206, 32
        %s4208 = scalar_lea.vmem [#allocation10], %s4207
        %p4209 = scmp.lt.s32.totalorder %s29, 1
        %s4210 = scalar_select %p4209, %s29, 1
        %s4211 = scalar_lea.vmem %s11, %s4210
        // Predicated region
        $region77: #{language_model_forward.1} parent=59 // pred_check
          %p4212 = pneg %p267
        $region78: #{language_model_forward.1} parent=59 // pred_check_branch
          %4214 = sbr.rel (%p4212) target = $region80
        $region79: #{language_model_forward.1} parent=59 // pred_region
          %s4216 = ssub.s32 512, 512
          %4217 = vsyncadd %s4205, %s4216
          %s4218 = smul.addr %s29, 4
          %s4219 = smul.addr %s4218, 128
          %s4220 = scalar_lea.hbm %s10, %s4219
          %s4221 = sshll.u32 %s4208, 4
          %s4222 = int_to_ptr.vmem [resolvable:$true] %s4221
          %4227 = dma.vmem_to_hbm [thread:$0]  %s4222, 512, %s4220, %s4205, 256, 256, 16
        $region80: #{language_model_forward.1} parent=59 // pred_fallthru
          _
        // Predicated region
        $region81: #{language_model_forward.1} parent=59 // pred_check
          %p4228 = pneg %p293
        $region82: #{language_model_forward.1} parent=59 // pred_check_branch
          %4230 = sbr.rel (%p4228) target = $region84
        $region83: #{language_model_forward.1} parent=59 // pred_region
          _
        $region84: #{language_model_forward.1} parent=59 // pred_fallthru
          _
      $region60: #{language_model_forward.1} parent=5 // pred_fallthru
        _
      %p4231 = scmp.le.s32.totalorder 2, %s24
      // Predicated region
      $region85: #{language_model_forward.1} parent=5 // pred_check
        %p4232 = pneg %p4231
      $region86: #{language_model_forward.1} parent=5 // pred_check_branch
        %4234 = sbr.rel (%p4232) target = $region88
      $region87: #{language_model_forward.1} parent=5 // pred_region
        %s4235 = ssub.s32 %s24, 2
        // Predicated region
        $region89: #{language_model_forward.1} parent=87 // pred_check
          %p4236 = pneg %p273
        $region90: #{language_model_forward.1} parent=87 // pred_check_branch
          %4238 = sbr.rel (%p4236) target = $region92
        $region91: #{language_model_forward.1} parent=87 // pred_region
          %s4239 = sand.u32 %s258, 1
          %s4240 = scalar_lea.sflag [#allocation4], %s4239
          %s4241 = sand.u32 %s258, 1
          %s4242 = smul.addr %s4241, 32
          %s4243 = scalar_lea.vmem [#allocation10], %s4242
          %4244 = dma.done %s4240, 512
        $region92: #{language_model_forward.1} parent=87 // pred_fallthru
          _
        // Predicated region
        $region93: #{language_model_forward.1} parent=87 // pred_check
          %p4245 = pneg %p299
        $region94: #{language_model_forward.1} parent=87 // pred_check_branch
          %4247 = sbr.rel (%p4245) target = $region96
        $region95: #{language_model_forward.1} parent=87 // pred_region
          %p4248 = scmp.lt.s32.totalorder %s30, 1
          %s4249 = scalar_select %p4248, %s30, 1
          %s4250 = scalar_lea.vmem %s11, %s4249
        $region96: #{language_model_forward.1} parent=87 // pred_fallthru
          _
      $region88: #{language_model_forward.1} parent=5 // pred_fallthru
        _
    $region6: #{language_model_forward.1} parent=1 // loop_footer
      %s28 = sadd.s32 1, %s24
    $region7: #{language_model_forward.1} parent=1 // loop_footer_branch
      %23 = sbr.rel target = $region3
    $region8: #{language_model_forward.1} parent=1 // loop_exit
      _
    %4251 = vsyncpa [#allocation3], 1
    %s4252 = scalar_lea.sflag [#allocation3], 1
    %4253 = vsyncpa %s4252, 1
    %4254 = vsyncpa [#allocation6], 1
    %4255 = vsyncpa [#allocation9], 1
    %4256 = vsyncpa [#allocation4], 1
    %s4257 = scalar_lea.sflag [#allocation4], 1
    %4258 = vsyncpa %s4257, 1

</llo_original>
